<compile_context>
chip_gen: v5e
topology: v5e:2x2
jax: 0.10.0
libtpu: 0.0.40
codegen_flags: <defaults>
</compile_context>

<pallas_src>
import functools

import jax
import jax.numpy as jnp
from jax.experimental import pallas as pl
from jax.experimental.pallas import tpu as pltpu

KH = KW = 5
CIN = 3
COUT = 16                # 10 (regular) + 3 (bayar) + 3 (srm)
KTAPS = CIN * KH * KW    # 75
KROW = CIN * KW          # 15 taps per kernel row


def _preprocess_kernel(x_ref, w_ref, o_ref, *, TH, WC, compute_dtype):
    # x_ref: (1, CIN, 1, TH+4, WC+4) halo'd, replicate-padded row slab
    # w_ref: (KH, COUT, KROW)        packed weights, per-row taps ordered (ci, kw)
    # o_ref: (1, COUT, TH*WC)        flat-spatial output tile (lane dense)
    acc = None
    for kh in range(KH):
        taps = []
        for ci in range(CIN):
            for kw in range(KW):
                t = x_ref[0, ci, 0, kh:kh + TH, kw:kw + WC]   # static [TH, WC] window
                taps.append(t.astype(compute_dtype))
        # Per-kh im2col slab: [15, TH, WC] -> [15, TH*WC]; WC % 128 == 0 keeps
        # the reshape lane-aligned (view, not a VMEM copy).
        p = jnp.stack(taps, axis=0).reshape(KROW, TH * WC)
        d = jnp.dot(w_ref[kh], p, preferred_element_type=jnp.float32)
        acc = d if acc is None else acc + d
    o_ref[0] = acc.astype(o_ref.dtype)


def _vmem_limit_bytes():
    """Per-generation VMEM budget with headroom (≈48 MiB v7x, ≈96 MiB v5e/v6e)."""
    try:
        cap = pltpu.get_tpu_info().vmem_capacity_bytes
    except Exception:
        cap = 64 * 1024 * 1024
    return int(min(cap * 3 // 4, 100 * 1024 * 1024))


def _pick_block_rows(H, WC, budget_px=32768):
    """Largest row tile TH with H % TH == 0 and TH*WC <= budget_px (if possible)."""
    cap = min(H, max(1, budget_px // max(WC, 1)))
    for th in range(cap, 0, -1):
        if H % th == 0:
            return th
    return 1


def preprocess_pallas(x_nchw, w_oihw, *, block_rows=None, compute_dtype=jnp.float32):
    """x_nchw: [N, 3, H, W]; w_oihw: [16, 3, 5, 5].
    Returns [N, 16, H, W] float32 (== torch Preprocess.forward output)."""
    N, C, H, W = x_nchw.shape
    assert C == CIN and w_oihw.shape == (COUT, CIN, KH, KW)

    WC = ((W + 127) // 128) * 128            # lane-aligned compute width
    TH = block_rows if block_rows is not None else _pick_block_rows(H, WC)
    assert H % TH == 0, (H, TH)
    n_slabs = H // TH

    x = x_nchw.astype(jnp.float32)

    # ---- Non-overlapping, halo'd, replicate-padded row slabs in HBM ----------
    # Row replicate padding falls out of clamping the gathered row indices.
    r = jnp.arange(TH + 4)
    row_idx = jnp.clip(jnp.arange(n_slabs)[:, None] * TH + r[None, :] - 2, 0, H - 1)
    slabs = jnp.take(x, row_idx.reshape(-1), axis=2)            # [N,C,n_slabs*(TH+4),W]
    slabs = slabs.reshape(N, CIN, n_slabs, TH + 4, W)
    # Width: replicate 2 cols each side, then zero-pad to the lane-aligned
    # compute width (garbage lands only in output cols >= W, cropped below).
    slabs = jnp.pad(slabs, ((0, 0),) * 4 + ((2, 2),), mode="edge")
    if WC > W:
        slabs = jnp.pad(slabs, ((0, 0),) * 4 + ((0, WC - W),))

    # Weights [O, I, kh, kw] -> [kh, O, I*kw], matching the per-kh tap order.
    w = w_oihw.astype(compute_dtype).transpose(2, 0, 1, 3).reshape(KH, COUT, KROW)

    kernel = functools.partial(_preprocess_kernel, TH=TH, WC=WC,
                               compute_dtype=compute_dtype)

    cost = pl.CostEstimate(
        flops=2 * COUT * KTAPS * N * H * WC,
        transcendentals=0,
        bytes_accessed=int(slabs.size * 4 + w.size * w.dtype.itemsize
                           + N * COUT * H * WC * 4),
    )

    out_flat = pl.pallas_call(
        kernel,
        out_shape=jax.ShapeDtypeStruct((N, COUT, H * WC), jnp.float32),
        grid_spec=pltpu.PrefetchScalarGridSpec(
            num_scalar_prefetch=0,
            grid=(N, n_slabs),
            in_specs=[
                # One halo'd row slab per grid step -> streamed, double-buffered,
                # VMEM use is O(TH*WC) and image-size independent.
                pl.BlockSpec((1, CIN, 1, TH + 4, WC + 4),
                             lambda n, i: (n, 0, i, 0, 0)),
                # Tiny packed weights (4.8 KiB), constant index_map -> resident.
                pl.BlockSpec((KH, COUT, KROW), lambda n, i: (0, 0, 0)),
            ],
            out_specs=pl.BlockSpec((1, COUT, TH * WC), lambda n, i: (n, 0, i)),
        ),
        compiler_params=pltpu.CompilerParams(
            dimension_semantics=("parallel", "parallel"),
            vmem_limit_bytes=_vmem_limit_bytes(),
        ),
        cost_estimate=cost,
    )(slabs, w)

    # Metadata-only reshape; crop only needed when W was lane-padded.
    out = out_flat.reshape(N, COUT, H, WC)
    if WC > W:
        out = out[:, :, :, :W]
    return out


def _reference(x_nchw, w_oihw):
    # Pure-JAX reference: replicate pad + VALID conv.
    x_pad = jnp.pad(x_nchw, ((0, 0), (0, 0), (2, 2), (2, 2)), mode="edge")
    return jax.lax.conv_general_dilated(
        x_pad, w_oihw, window_strides=(1, 1), padding="VALID",
        dimension_numbers=("NCHW", "OIHW", "NCHW"))


if __name__ == "__main__":
    key = jax.random.PRNGKey(0)
    kx, kr, kb, ks = jax.random.split(key, 4)

    N, H, W = 2, 16, 16
    x = jax.random.normal(kx, (N, CIN, H, W), dtype=jnp.float32)

    # Deterministic synthetic weights matching the module's conv shapes.
    w_regular = 0.1 * jax.random.normal(kr, (10, 3, 5, 5), dtype=jnp.float32)
    w_bayar = 0.1 * jax.random.normal(kb, (3, 3, 5, 5), dtype=jnp.float32)
    w_srm = 0.1 * jax.random.normal(ks, (3, 3, 5, 5), dtype=jnp.float32)
    w_all = jnp.concatenate([w_regular, w_bayar, w_srm], axis=0)  # [16,3,5,5]

    ref = _reference(x, w_all)

    # Default f32 path (lane-padded width, single row slab).
    out = jax.block_until_ready(preprocess_pallas(x, w_all))
    assert out.shape == (N, COUT, H, W)
    assert jnp.allclose(out, ref, atol=1e-4, rtol=1e-4)

    # bf16-patch path (native MXU input on v6e/v7x); f32 accumulation.
    out_bf = jax.block_until_ready(
        preprocess_pallas(x, w_all, compute_dtype=jnp.bfloat16))
    assert jnp.allclose(out_bf, ref, atol=3e-2, rtol=3e-2)

    # Lane-aligned width (no crop) + multi-slab streamed grid path.
    H2, W2 = 32, 128
    x2 = jax.random.normal(kx, (1, CIN, H2, W2), dtype=jnp.float32)
    out2 = jax.block_until_ready(preprocess_pallas(x2, w_all, block_rows=16))
    ref2 = _reference(x2, w_all)
    assert jnp.allclose(out2, ref2, atol=1e-4, rtol=1e-4)

    print("KERNEL_OK")
</pallas_src>

<mosaic_0001>
module attributes {stable_mosaic.version = 11 : i64} {
  func.func @_preprocess_kernel(%arg0: i32, %arg1: i32, %arg2: memref<1x3x1x20x132xf32, #tpu.memory_space<vmem>>, %arg3: memref<5x16x15xf32, #tpu.memory_space<vmem>>, %arg4: memref<1x16x2048xf32, #tpu.memory_space<vmem>>) attributes {dimension_semantics = [#tpu.dimension_semantics<parallel>, #tpu.dimension_semantics<parallel>], iteration_bounds = array<i64: 2, 1>, scalar_prefetch = 0 : i64, scratch_operands = 0 : i64, tpu.core_type = #tpu.core_type<tc>, window_params = [{transform_indices = @transform_0, window_bounds = array<i64: 1, 3, 1, 20, 132>}, {pipeline_mode = #tpu.pipeline_mode<synchronous>, transform_indices = @transform_1, window_bounds = array<i64: 5, 16, 15>}, {transform_indices = @transform_2, window_bounds = array<i64: 1, 16, 2048>}]} {
    %c0 = arith.constant 0 : index
    %c0_0 = arith.constant 0 : index
    %c0_1 = arith.constant 0 : index
    %c0_2 = arith.constant 0 : index
    %c0_3 = arith.constant 0 : index
    %0 = vector.load %arg2[%c0, %c0_0, %c0_1, %c0_2, %c0_3] : memref<1x3x1x20x132xf32, #tpu.memory_space<vmem>>, vector<1x1x1x16x128xf32>
    %1 = vector.shape_cast %0 : vector<1x1x1x16x128xf32> to vector<16x128xf32>
    %c0_4 = arith.constant 0 : index
    %c0_5 = arith.constant 0 : index
    %c0_6 = arith.constant 0 : index
    %c0_7 = arith.constant 0 : index
    %c1 = arith.constant 1 : index
    %2 = vector.load %arg2[%c0_4, %c0_5, %c0_6, %c0_7, %c1] : memref<1x3x1x20x132xf32, #tpu.memory_space<vmem>>, vector<1x1x1x16x128xf32>
    %3 = vector.shape_cast %2 : vector<1x1x1x16x128xf32> to vector<16x128xf32>
    %c0_8 = arith.constant 0 : index
    %c0_9 = arith.constant 0 : index
    %c0_10 = arith.constant 0 : index
    %c0_11 = arith.constant 0 : index
    %c2 = arith.constant 2 : index
    %4 = vector.load %arg2[%c0_8, %c0_9, %c0_10, %c0_11, %c2] : memref<1x3x1x20x132xf32, #tpu.memory_space<vmem>>, vector<1x1x1x16x128xf32>
    %5 = vector.shape_cast %4 : vector<1x1x1x16x128xf32> to vector<16x128xf32>
    %c0_12 = arith.constant 0 : index
    %c0_13 = arith.constant 0 : index
    %c0_14 = arith.constant 0 : index
    %c0_15 = arith.constant 0 : index
    %c3 = arith.constant 3 : index
    %6 = vector.load %arg2[%c0_12, %c0_13, %c0_14, %c0_15, %c3] : memref<1x3x1x20x132xf32, #tpu.memory_space<vmem>>, vector<1x1x1x16x128xf32>
    %7 = vector.shape_cast %6 : vector<1x1x1x16x128xf32> to vector<16x128xf32>
    %c0_16 = arith.constant 0 : index
    %c0_17 = arith.constant 0 : index
    %c0_18 = arith.constant 0 : index
    %c0_19 = arith.constant 0 : index
    %c4 = arith.constant 4 : index
    %8 = vector.load %arg2[%c0_16, %c0_17, %c0_18, %c0_19, %c4] : memref<1x3x1x20x132xf32, #tpu.memory_space<vmem>>, vector<1x1x1x16x128xf32>
    %9 = vector.shape_cast %8 : vector<1x1x1x16x128xf32> to vector<16x128xf32>
    %c0_20 = arith.constant 0 : index
    %c1_21 = arith.constant 1 : index
    %c0_22 = arith.constant 0 : index
    %c0_23 = arith.constant 0 : index
    %c0_24 = arith.constant 0 : index
    %10 = vector.load %arg2[%c0_20, %c1_21, %c0_22, %c0_23, %c0_24] : memref<1x3x1x20x132xf32, #tpu.memory_space<vmem>>, vector<1x1x1x16x128xf32>
    %11 = vector.shape_cast %10 : vector<1x1x1x16x128xf32> to vector<16x128xf32>
    %c0_25 = arith.constant 0 : index
    %c1_26 = arith.constant 1 : index
    %c0_27 = arith.constant 0 : index
    %c0_28 = arith.constant 0 : index
    %c1_29 = arith.constant 1 : index
    %12 = vector.load %arg2[%c0_25, %c1_26, %c0_27, %c0_28, %c1_29] : memref<1x3x1x20x132xf32, #tpu.memory_space<vmem>>, vector<1x1x1x16x128xf32>
    %13 = vector.shape_cast %12 : vector<1x1x1x16x128xf32> to vector<16x128xf32>
    %c0_30 = arith.constant 0 : index
    %c1_31 = arith.constant 1 : index
    %c0_32 = arith.constant 0 : index
    %c0_33 = arith.constant 0 : index
    %c2_34 = arith.constant 2 : index
    %14 = vector.load %arg2[%c0_30, %c1_31, %c0_32, %c0_33, %c2_34] : memref<1x3x1x20x132xf32, #tpu.memory_space<vmem>>, vector<1x1x1x16x128xf32>
    %15 = vector.shape_cast %14 : vector<1x1x1x16x128xf32> to vector<16x128xf32>
    %c0_35 = arith.constant 0 : index
    %c1_36 = arith.constant 1 : index
    %c0_37 = arith.constant 0 : index
    %c0_38 = arith.constant 0 : index
    %c3_39 = arith.constant 3 : index
    %16 = vector.load %arg2[%c0_35, %c1_36, %c0_37, %c0_38, %c3_39] : memref<1x3x1x20x132xf32, #tpu.memory_space<vmem>>, vector<1x1x1x16x128xf32>
    %17 = vector.shape_cast %16 : vector<1x1x1x16x128xf32> to vector<16x128xf32>
    %c0_40 = arith.constant 0 : index
    %c1_41 = arith.constant 1 : index
    %c0_42 = arith.constant 0 : index
    %c0_43 = arith.constant 0 : index
    %c4_44 = arith.constant 4 : index
    %18 = vector.load %arg2[%c0_40, %c1_41, %c0_42, %c0_43, %c4_44] : memref<1x3x1x20x132xf32, #tpu.memory_space<vmem>>, vector<1x1x1x16x128xf32>
    %19 = vector.shape_cast %18 : vector<1x1x1x16x128xf32> to vector<16x128xf32>
    %c0_45 = arith.constant 0 : index
    %c2_46 = arith.constant 2 : index
    %c0_47 = arith.constant 0 : index
    %c0_48 = arith.constant 0 : index
    %c0_49 = arith.constant 0 : index
    %20 = vector.load %arg2[%c0_45, %c2_46, %c0_47, %c0_48, %c0_49] : memref<1x3x1x20x132xf32, #tpu.memory_space<vmem>>, vector<1x1x1x16x128xf32>
    %21 = vector.shape_cast %20 : vector<1x1x1x16x128xf32> to vector<16x128xf32>
    %c0_50 = arith.constant 0 : index
    %c2_51 = arith.constant 2 : index
    %c0_52 = arith.constant 0 : index
    %c0_53 = arith.constant 0 : index
    %c1_54 = arith.constant 1 : index
    %22 = vector.load %arg2[%c0_50, %c2_51, %c0_52, %c0_53, %c1_54] : memref<1x3x1x20x132xf32, #tpu.memory_space<vmem>>, vector<1x1x1x16x128xf32>
    %23 = vector.shape_cast %22 : vector<1x1x1x16x128xf32> to vector<16x128xf32>
    %c0_55 = arith.constant 0 : index
    %c2_56 = arith.constant 2 : index
    %c0_57 = arith.constant 0 : index
    %c0_58 = arith.constant 0 : index
    %c2_59 = arith.constant 2 : index
    %24 = vector.load %arg2[%c0_55, %c2_56, %c0_57, %c0_58, %c2_59] : memref<1x3x1x20x132xf32, #tpu.memory_space<vmem>>, vector<1x1x1x16x128xf32>
    %25 = vector.shape_cast %24 : vector<1x1x1x16x128xf32> to vector<16x128xf32>
    %c0_60 = arith.constant 0 : index
    %c2_61 = arith.constant 2 : index
    %c0_62 = arith.constant 0 : index
    %c0_63 = arith.constant 0 : index
    %c3_64 = arith.constant 3 : index
    %26 = vector.load %arg2[%c0_60, %c2_61, %c0_62, %c0_63, %c3_64] : memref<1x3x1x20x132xf32, #tpu.memory_space<vmem>>, vector<1x1x1x16x128xf32>
    %27 = vector.shape_cast %26 : vector<1x1x1x16x128xf32> to vector<16x128xf32>
    %c0_65 = arith.constant 0 : index
    %c2_66 = arith.constant 2 : index
    %c0_67 = arith.constant 0 : index
    %c0_68 = arith.constant 0 : index
    %c4_69 = arith.constant 4 : index
    %28 = vector.load %arg2[%c0_65, %c2_66, %c0_67, %c0_68, %c4_69] : memref<1x3x1x20x132xf32, #tpu.memory_space<vmem>>, vector<1x1x1x16x128xf32>
    %29 = vector.shape_cast %28 : vector<1x1x1x16x128xf32> to vector<16x128xf32>
    %30 = vector.shape_cast %1 : vector<16x128xf32> to vector<1x16x128xf32>
    %31 = vector.shape_cast %3 : vector<16x128xf32> to vector<1x16x128xf32>
    %32 = vector.shape_cast %5 : vector<16x128xf32> to vector<1x16x128xf32>
    %33 = vector.shape_cast %7 : vector<16x128xf32> to vector<1x16x128xf32>
    %34 = vector.shape_cast %9 : vector<16x128xf32> to vector<1x16x128xf32>
    %35 = vector.shape_cast %11 : vector<16x128xf32> to vector<1x16x128xf32>
    %36 = vector.shape_cast %13 : vector<16x128xf32> to vector<1x16x128xf32>
    %37 = vector.shape_cast %15 : vector<16x128xf32> to vector<1x16x128xf32>
    %38 = vector.shape_cast %17 : vector<16x128xf32> to vector<1x16x128xf32>
    %39 = vector.shape_cast %19 : vector<16x128xf32> to vector<1x16x128xf32>
    %40 = vector.shape_cast %21 : vector<16x128xf32> to vector<1x16x128xf32>
    %41 = vector.shape_cast %23 : vector<16x128xf32> to vector<1x16x128xf32>
    %42 = vector.shape_cast %25 : vector<16x128xf32> to vector<1x16x128xf32>
    %43 = vector.shape_cast %27 : vector<16x128xf32> to vector<1x16x128xf32>
    %44 = vector.shape_cast %29 : vector<16x128xf32> to vector<1x16x128xf32>
    %45 = tpu.concatenate %30, %31, %32, %33, %34, %35, %36, %37, %38, %39, %40, %41, %42, %43, %44 in 0 : vector<1x16x128xf32>, vector<1x16x128xf32>, vector<1x16x128xf32>, vector<1x16x128xf32>, vector<1x16x128xf32>, vector<1x16x128xf32>, vector<1x16x128xf32>, vector<1x16x128xf32>, vector<1x16x128xf32>, vector<1x16x128xf32>, vector<1x16x128xf32>, vector<1x16x128xf32>, vector<1x16x128xf32>, vector<1x16x128xf32>, vector<1x16x128xf32> -> vector<15x16x128xf32>
    %46 = vector.shape_cast %45 : vector<15x16x128xf32> to vector<15x2048xf32>
    %c0_70 = arith.constant 0 : index
    %c0_71 = arith.constant 0 : index
    %c0_72 = arith.constant 0 : index
    %47 = vector.load %arg3[%c0_70, %c0_71, %c0_72] : memref<5x16x15xf32, #tpu.memory_space<vmem>>, vector<1x16x15xf32>
    %48 = vector.shape_cast %47 : vector<1x16x15xf32> to vector<16x15xf32>
    %cst = arith.constant dense<0.000000e+00> : vector<16x2048xf32>
    %49 = tpu.matmul %48, %46, %cst {dimension_numbers = #tpu.dot_dimension_numbers<[1], [0], [0], [1], [0, 0, 1, 1], [], []>} : vector<16x15xf32>, vector<15x2048xf32>, vector<16x2048xf32> -> vector<16x2048xf32>
    %c0_73 = arith.constant 0 : index
    %c0_74 = arith.constant 0 : index
    %c0_75 = arith.constant 0 : index
    %c1_76 = arith.constant 1 : index
    %c0_77 = arith.constant 0 : index
    %50 = vector.load %arg2[%c0_73, %c0_74, %c0_75, %c1_76, %c0_77] : memref<1x3x1x20x132xf32, #tpu.memory_space<vmem>>, vector<1x1x1x16x128xf32>
    %51 = vector.shape_cast %50 : vector<1x1x1x16x128xf32> to vector<16x128xf32>
    %c0_78 = arith.constant 0 : index
    %c0_79 = arith.constant 0 : index
    %c0_80 = arith.constant 0 : index
    %c1_81 = arith.constant 1 : index
    %c1_82 = arith.constant 1 : index
    %52 = vector.load %arg2[%c0_78, %c0_79, %c0_80, %c1_81, %c1_82] : memref<1x3x1x20x132xf32, #tpu.memory_space<vmem>>, vector<1x1x1x16x128xf32>
    %53 = vector.shape_cast %52 : vector<1x1x1x16x128xf32> to vector<16x128xf32>
    %c0_83 = arith.constant 0 : index
    %c0_84 = arith.constant 0 : index
    %c0_85 = arith.constant 0 : index
    %c1_86 = arith.constant 1 : index
    %c2_87 = arith.constant 2 : index
    %54 = vector.load %arg2[%c0_83, %c0_84, %c0_85, %c1_86, %c2_87] : memref<1x3x1x20x132xf32, #tpu.memory_space<vmem>>, vector<1x1x1x16x128xf32>
    %55 = vector.shape_cast %54 : vector<1x1x1x16x128xf32> to vector<16x128xf32>
    %c0_88 = arith.constant 0 : index
    %c0_89 = arith.constant 0 : index
    %c0_90 = arith.constant 0 : index
    %c1_91 = arith.constant 1 : index
    %c3_92 = arith.constant 3 : index
    %56 = vector.load %arg2[%c0_88, %c0_89, %c0_90, %c1_91, %c3_92] : memref<1x3x1x20x132xf32, #tpu.memory_space<vmem>>, vector<1x1x1x16x128xf32>
    %57 = vector.shape_cast %56 : vector<1x1x1x16x128xf32> to vector<16x128xf32>
    %c0_93 = arith.constant 0 : index
    %c0_94 = arith.constant 0 : index
    %c0_95 = arith.constant 0 : index
    %c1_96 = arith.constant 1 : index
    %c4_97 = arith.constant 4 : index
    %58 = vector.load %arg2[%c0_93, %c0_94, %c0_95, %c1_96, %c4_97] : memref<1x3x1x20x132xf32, #tpu.memory_space<vmem>>, vector<1x1x1x16x128xf32>
    %59 = vector.shape_cast %58 : vector<1x1x1x16x128xf32> to vector<16x128xf32>
    %c0_98 = arith.constant 0 : index
    %c1_99 = arith.constant 1 : index
    %c0_100 = arith.constant 0 : index
    %c1_101 = arith.constant 1 : index
    %c0_102 = arith.constant 0 : index
    %60 = vector.load %arg2[%c0_98, %c1_99, %c0_100, %c1_101, %c0_102] : memref<1x3x1x20x132xf32, #tpu.memory_space<vmem>>, vector<1x1x1x16x128xf32>
    %61 = vector.shape_cast %60 : vector<1x1x1x16x128xf32> to vector<16x128xf32>
    %c0_103 = arith.constant 0 : index
    %c1_104 = arith.constant 1 : index
    %c0_105 = arith.constant 0 : index
    %c1_106 = arith.constant 1 : index
    %c1_107 = arith.constant 1 : index
    %62 = vector.load %arg2[%c0_103, %c1_104, %c0_105, %c1_106, %c1_107] : memref<1x3x1x20x132xf32, #tpu.memory_space<vmem>>, vector<1x1x1x16x128xf32>
    %63 = vector.shape_cast %62 : vector<1x1x1x16x128xf32> to vector<16x128xf32>
    %c0_108 = arith.constant 0 : index
    %c1_109 = arith.constant 1 : index
    %c0_110 = arith.constant 0 : index
    %c1_111 = arith.constant 1 : index
    %c2_112 = arith.constant 2 : index
    %64 = vector.load %arg2[%c0_108, %c1_109, %c0_110, %c1_111, %c2_112] : memref<1x3x1x20x132xf32, #tpu.memory_space<vmem>>, vector<1x1x1x16x128xf32>
    %65 = vector.shape_cast %64 : vector<1x1x1x16x128xf32> to vector<16x128xf32>
    %c0_113 = arith.constant 0 : index
    %c1_114 = arith.constant 1 : index
    %c0_115 = arith.constant 0 : index
    %c1_116 = arith.constant 1 : index
    %c3_117 = arith.constant 3 : index
    %66 = vector.load %arg2[%c0_113, %c1_114, %c0_115, %c1_116, %c3_117] : memref<1x3x1x20x132xf32, #tpu.memory_space<vmem>>, vector<1x1x1x16x128xf32>
    %67 = vector.shape_cast %66 : vector<1x1x1x16x128xf32> to vector<16x128xf32>
    %c0_118 = arith.constant 0 : index
    %c1_119 = arith.constant 1 : index
    %c0_120 = arith.constant 0 : index
    %c1_121 = arith.constant 1 : index
    %c4_122 = arith.constant 4 : index
    %68 = vector.load %arg2[%c0_118, %c1_119, %c0_120, %c1_121, %c4_122] : memref<1x3x1x20x132xf32, #tpu.memory_space<vmem>>, vector<1x1x1x16x128xf32>
    %69 = vector.shape_cast %68 : vector<1x1x1x16x128xf32> to vector<16x128xf32>
    %c0_123 = arith.constant 0 : index
    %c2_124 = arith.constant 2 : index
    %c0_125 = arith.constant 0 : index
    %c1_126 = arith.constant 1 : index
    %c0_127 = arith.constant 0 : index
    %70 = vector.load %arg2[%c0_123, %c2_124, %c0_125, %c1_126, %c0_127] : memref<1x3x1x20x132xf32, #tpu.memory_space<vmem>>, vector<1x1x1x16x128xf32>
    %71 = vector.shape_cast %70 : vector<1x1x1x16x128xf32> to vector<16x128xf32>
    %c0_128 = arith.constant 0 : index
    %c2_129 = arith.constant 2 : index
    %c0_130 = arith.constant 0 : index
    %c1_131 = arith.constant 1 : index
    %c1_132 = arith.constant 1 : index
    %72 = vector.load %arg2[%c0_128, %c2_129, %c0_130, %c1_131, %c1_132] : memref<1x3x1x20x132xf32, #tpu.memory_space<vmem>>, vector<1x1x1x16x128xf32>
    %73 = vector.shape_cast %72 : vector<1x1x1x16x128xf32> to vector<16x128xf32>
    %c0_133 = arith.constant 0 : index
    %c2_134 = arith.constant 2 : index
    %c0_135 = arith.constant 0 : index
    %c1_136 = arith.constant 1 : index
    %c2_137 = arith.constant 2 : index
    %74 = vector.load %arg2[%c0_133, %c2_134, %c0_135, %c1_136, %c2_137] : memref<1x3x1x20x132xf32, #tpu.memory_space<vmem>>, vector<1x1x1x16x128xf32>
    %75 = vector.shape_cast %74 : vector<1x1x1x16x128xf32> to vector<16x128xf32>
    %c0_138 = arith.constant 0 : index
    %c2_139 = arith.constant 2 : index
    %c0_140 = arith.constant 0 : index
    %c1_141 = arith.constant 1 : index
    %c3_142 = arith.constant 3 : index
    %76 = vector.load %arg2[%c0_138, %c2_139, %c0_140, %c1_141, %c3_142] : memref<1x3x1x20x132xf32, #tpu.memory_space<vmem>>, vector<1x1x1x16x128xf32>
    %77 = vector.shape_cast %76 : vector<1x1x1x16x128xf32> to vector<16x128xf32>
    %c0_143 = arith.constant 0 : index
    %c2_144 = arith.constant 2 : index
    %c0_145 = arith.constant 0 : index
    %c1_146 = arith.constant 1 : index
    %c4_147 = arith.constant 4 : index
    %78 = vector.load %arg2[%c0_143, %c2_144, %c0_145, %c1_146, %c4_147] : memref<1x3x1x20x132xf32, #tpu.memory_space<vmem>>, vector<1x1x1x16x128xf32>
    %79 = vector.shape_cast %78 : vector<1x1x1x16x128xf32> to vector<16x128xf32>
    %80 = vector.shape_cast %51 : vector<16x128xf32> to vector<1x16x128xf32>
    %81 = vector.shape_cast %53 : vector<16x128xf32> to vector<1x16x128xf32>
    %82 = vector.shape_cast %55 : vector<16x128xf32> to vector<1x16x128xf32>
    %83 = vector.shape_cast %57 : vector<16x128xf32> to vector<1x16x128xf32>
    %84 = vector.shape_cast %59 : vector<16x128xf32> to vector<1x16x128xf32>
    %85 = vector.shape_cast %61 : vector<16x128xf32> to vector<1x16x128xf32>
    %86 = vector.shape_cast %63 : vector<16x128xf32> to vector<1x16x128xf32>
    %87 = vector.shape_cast %65 : vector<16x128xf32> to vector<1x16x128xf32>
    %88 = vector.shape_cast %67 : vector<16x128xf32> to vector<1x16x128xf32>
    %89 = vector.shape_cast %69 : vector<16x128xf32> to vector<1x16x128xf32>
    %90 = vector.shape_cast %71 : vector<16x128xf32> to vector<1x16x128xf32>
    %91 = vector.shape_cast %73 : vector<16x128xf32> to vector<1x16x128xf32>
    %92 = vector.shape_cast %75 : vector<16x128xf32> to vector<1x16x128xf32>
    %93 = vector.shape_cast %77 : vector<16x128xf32> to vector<1x16x128xf32>
    %94 = vector.shape_cast %79 : vector<16x128xf32> to vector<1x16x128xf32>
    %95 = tpu.concatenate %80, %81, %82, %83, %84, %85, %86, %87, %88, %89, %90, %91, %92, %93, %94 in 0 : vector<1x16x128xf32>, vector<1x16x128xf32>, vector<1x16x128xf32>, vector<1x16x128xf32>, vector<1x16x128xf32>, vector<1x16x128xf32>, vector<1x16x128xf32>, vector<1x16x128xf32>, vector<1x16x128xf32>, vector<1x16x128xf32>, vector<1x16x128xf32>, vector<1x16x128xf32>, vector<1x16x128xf32>, vector<1x16x128xf32>, vector<1x16x128xf32> -> vector<15x16x128xf32>
    %96 = vector.shape_cast %95 : vector<15x16x128xf32> to vector<15x2048xf32>
    %c1_148 = arith.constant 1 : index
    %c0_149 = arith.constant 0 : index
    %c0_150 = arith.constant 0 : index
    %97 = vector.load %arg3[%c1_148, %c0_149, %c0_150] : memref<5x16x15xf32, #tpu.memory_space<vmem>>, vector<1x16x15xf32>
    %98 = vector.shape_cast %97 : vector<1x16x15xf32> to vector<16x15xf32>
    %cst_151 = arith.constant dense<0.000000e+00> : vector<16x2048xf32>
    %99 = tpu.matmul %98, %96, %cst_151 {dimension_numbers = #tpu.dot_dimension_numbers<[1], [0], [0], [1], [0, 0, 1, 1], [], []>} : vector<16x15xf32>, vector<15x2048xf32>, vector<16x2048xf32> -> vector<16x2048xf32>
    %100 = arith.addf %49, %99 : vector<16x2048xf32>
    %c0_152 = arith.constant 0 : index
    %c0_153 = arith.constant 0 : index
    %c0_154 = arith.constant 0 : index
    %c2_155 = arith.constant 2 : index
    %c0_156 = arith.constant 0 : index
    %101 = vector.load %arg2[%c0_152, %c0_153, %c0_154, %c2_155, %c0_156] : memref<1x3x1x20x132xf32, #tpu.memory_space<vmem>>, vector<1x1x1x16x128xf32>
    %102 = vector.shape_cast %101 : vector<1x1x1x16x128xf32> to vector<16x128xf32>
    %c0_157 = arith.constant 0 : index
    %c0_158 = arith.constant 0 : index
    %c0_159 = arith.constant 0 : index
    %c2_160 = arith.constant 2 : index
    %c1_161 = arith.constant 1 : index
    %103 = vector.load %arg2[%c0_157, %c0_158, %c0_159, %c2_160, %c1_161] : memref<1x3x1x20x132xf32, #tpu.memory_space<vmem>>, vector<1x1x1x16x128xf32>
    %104 = vector.shape_cast %103 : vector<1x1x1x16x128xf32> to vector<16x128xf32>
    %c0_162 = arith.constant 0 : index
    %c0_163 = arith.constant 0 : index
    %c0_164 = arith.constant 0 : index
    %c2_165 = arith.constant 2 : index
    %c2_166 = arith.constant 2 : index
    %105 = vector.load %arg2[%c0_162, %c0_163, %c0_164, %c2_165, %c2_166] : memref<1x3x1x20x132xf32, #tpu.memory_space<vmem>>, vector<1x1x1x16x128xf32>
    %106 = vector.shape_cast %105 : vector<1x1x1x16x128xf32> to vector<16x128xf32>
    %c0_167 = arith.constant 0 : index
    %c0_168 = arith.constant 0 : index
    %c0_169 = arith.constant 0 : index
    %c2_170 = arith.constant 2 : index
    %c3_171 = arith.constant 3 : index
    %107 = vector.load %arg2[%c0_167, %c0_168, %c0_169, %c2_170, %c3_171] : memref<1x3x1x20x132xf32, #tpu.memory_space<vmem>>, vector<1x1x1x16x128xf32>
    %108 = vector.shape_cast %107 : vector<1x1x1x16x128xf32> to vector<16x128xf32>
    %c0_172 = arith.constant 0 : index
    %c0_173 = arith.constant 0 : index
    %c0_174 = arith.constant 0 : index
    %c2_175 = arith.constant 2 : index
    %c4_176 = arith.constant 4 : index
    %109 = vector.load %arg2[%c0_172, %c0_173, %c0_174, %c2_175, %c4_176] : memref<1x3x1x20x132xf32, #tpu.memory_space<vmem>>, vector<1x1x1x16x128xf32>
    %110 = vector.shape_cast %109 : vector<1x1x1x16x128xf32> to vector<16x128xf32>
    %c0_177 = arith.constant 0 : index
    %c1_178 = arith.constant 1 : index
    %c0_179 = arith.constant 0 : index
    %c2_180 = arith.constant 2 : index
    %c0_181 = arith.constant 0 : index
    %111 = vector.load %arg2[%c0_177, %c1_178, %c0_179, %c2_180, %c0_181] : memref<1x3x1x20x132xf32, #tpu.memory_space<vmem>>, vector<1x1x1x16x128xf32>
    %112 = vector.shape_cast %111 : vector<1x1x1x16x128xf32> to vector<16x128xf32>
    %c0_182 = arith.constant 0 : index
    %c1_183 = arith.constant 1 : index
    %c0_184 = arith.constant 0 : index
    %c2_185 = arith.constant 2 : index
    %c1_186 = arith.constant 1 : index
    %113 = vector.load %arg2[%c0_182, %c1_183, %c0_184, %c2_185, %c1_186] : memref<1x3x1x20x132xf32, #tpu.memory_space<vmem>>, vector<1x1x1x16x128xf32>
    %114 = vector.shape_cast %113 : vector<1x1x1x16x128xf32> to vector<16x128xf32>
    %c0_187 = arith.constant 0 : index
    %c1_188 = arith.constant 1 : index
    %c0_189 = arith.constant 0 : index
    %c2_190 = arith.constant 2 : index
    %c2_191 = arith.constant 2 : index
    %115 = vector.load %arg2[%c0_187, %c1_188, %c0_189, %c2_190, %c2_191] : memref<1x3x1x20x132xf32, #tpu.memory_space<vmem>>, vector<1x1x1x16x128xf32>
    %116 = vector.shape_cast %115 : vector<1x1x1x16x128xf32> to vector<16x128xf32>
    %c0_192 = arith.constant 0 : index
    %c1_193 = arith.constant 1 : index
    %c0_194 = arith.constant 0 : index
    %c2_195 = arith.constant 2 : index
    %c3_196 = arith.constant 3 : index
    %117 = vector.load %arg2[%c0_192, %c1_193, %c0_194, %c2_195, %c3_196] : memref<1x3x1x20x132xf32, #tpu.memory_space<vmem>>, vector<1x1x1x16x128xf32>
    %118 = vector.shape_cast %117 : vector<1x1x1x16x128xf32> to vector<16x128xf32>
    %c0_197 = arith.constant 0 : index
    %c1_198 = arith.constant 1 : index
    %c0_199 = arith.constant 0 : index
    %c2_200 = arith.constant 2 : index
    %c4_201 = arith.constant 4 : index
    %119 = vector.load %arg2[%c0_197, %c1_198, %c0_199, %c2_200, %c4_201] : memref<1x3x1x20x132xf32, #tpu.memory_space<vmem>>, vector<1x1x1x16x128xf32>
    %120 = vector.shape_cast %119 : vector<1x1x1x16x128xf32> to vector<16x128xf32>
    %c0_202 = arith.constant 0 : index
    %c2_203 = arith.constant 2 : index
    %c0_204 = arith.constant 0 : index
    %c2_205 = arith.constant 2 : index
    %c0_206 = arith.constant 0 : index
    %121 = vector.load %arg2[%c0_202, %c2_203, %c0_204, %c2_205, %c0_206] : memref<1x3x1x20x132xf32, #tpu.memory_space<vmem>>, vector<1x1x1x16x128xf32>
    %122 = vector.shape_cast %121 : vector<1x1x1x16x128xf32> to vector<16x128xf32>
    %c0_207 = arith.constant 0 : index
    %c2_208 = arith.constant 2 : index
    %c0_209 = arith.constant 0 : index
    %c2_210 = arith.constant 2 : index
    %c1_211 = arith.constant 1 : index
    %123 = vector.load %arg2[%c0_207, %c2_208, %c0_209, %c2_210, %c1_211] : memref<1x3x1x20x132xf32, #tpu.memory_space<vmem>>, vector<1x1x1x16x128xf32>
    %124 = vector.shape_cast %123 : vector<1x1x1x16x128xf32> to vector<16x128xf32>
    %c0_212 = arith.constant 0 : index
    %c2_213 = arith.constant 2 : index
    %c0_214 = arith.constant 0 : index
    %c2_215 = arith.constant 2 : index
    %c2_216 = arith.constant 2 : index
    %125 = vector.load %arg2[%c0_212, %c2_213, %c0_214, %c2_215, %c2_216] : memref<1x3x1x20x132xf32, #tpu.memory_space<vmem>>, vector<1x1x1x16x128xf32>
    %126 = vector.shape_cast %125 : vector<1x1x1x16x128xf32> to vector<16x128xf32>
    %c0_217 = arith.constant 0 : index
    %c2_218 = arith.constant 2 : index
    %c0_219 = arith.constant 0 : index
    %c2_220 = arith.constant 2 : index
    %c3_221 = arith.constant 3 : index
    %127 = vector.load %arg2[%c0_217, %c2_218, %c0_219, %c2_220, %c3_221] : memref<1x3x1x20x132xf32, #tpu.memory_space<vmem>>, vector<1x1x1x16x128xf32>
    %128 = vector.shape_cast %127 : vector<1x1x1x16x128xf32> to vector<16x128xf32>
    %c0_222 = arith.constant 0 : index
    %c2_223 = arith.constant 2 : index
    %c0_224 = arith.constant 0 : index
    %c2_225 = arith.constant 2 : index
    %c4_226 = arith.constant 4 : index
    %129 = vector.load %arg2[%c0_222, %c2_223, %c0_224, %c2_225, %c4_226] : memref<1x3x1x20x132xf32, #tpu.memory_space<vmem>>, vector<1x1x1x16x128xf32>
    %130 = vector.shape_cast %129 : vector<1x1x1x16x128xf32> to vector<16x128xf32>
    %131 = vector.shape_cast %102 : vector<16x128xf32> to vector<1x16x128xf32>
    %132 = vector.shape_cast %104 : vector<16x128xf32> to vector<1x16x128xf32>
    %133 = vector.shape_cast %106 : vector<16x128xf32> to vector<1x16x128xf32>
    %134 = vector.shape_cast %108 : vector<16x128xf32> to vector<1x16x128xf32>
    %135 = vector.shape_cast %110 : vector<16x128xf32> to vector<1x16x128xf32>
    %136 = vector.shape_cast %112 : vector<16x128xf32> to vector<1x16x128xf32>
    %137 = vector.shape_cast %114 : vector<16x128xf32> to vector<1x16x128xf32>
    %138 = vector.shape_cast %116 : vector<16x128xf32> to vector<1x16x128xf32>
    %139 = vector.shape_cast %118 : vector<16x128xf32> to vector<1x16x128xf32>
    %140 = vector.shape_cast %120 : vector<16x128xf32> to vector<1x16x128xf32>
    %141 = vector.shape_cast %122 : vector<16x128xf32> to vector<1x16x128xf32>
    %142 = vector.shape_cast %124 : vector<16x128xf32> to vector<1x16x128xf32>
    %143 = vector.shape_cast %126 : vector<16x128xf32> to vector<1x16x128xf32>
    %144 = vector.shape_cast %128 : vector<16x128xf32> to vector<1x16x128xf32>
    %145 = vector.shape_cast %130 : vector<16x128xf32> to vector<1x16x128xf32>
    %146 = tpu.concatenate %131, %132, %133, %134, %135, %136, %137, %138, %139, %140, %141, %142, %143, %144, %145 in 0 : vector<1x16x128xf32>, vector<1x16x128xf32>, vector<1x16x128xf32>, vector<1x16x128xf32>, vector<1x16x128xf32>, vector<1x16x128xf32>, vector<1x16x128xf32>, vector<1x16x128xf32>, vector<1x16x128xf32>, vector<1x16x128xf32>, vector<1x16x128xf32>, vector<1x16x128xf32>, vector<1x16x128xf32>, vector<1x16x128xf32>, vector<1x16x128xf32> -> vector<15x16x128xf32>
    %147 = vector.shape_cast %146 : vector<15x16x128xf32> to vector<15x2048xf32>
    %c2_227 = arith.constant 2 : index
    %c0_228 = arith.constant 0 : index
    %c0_229 = arith.constant 0 : index
    %148 = vector.load %arg3[%c2_227, %c0_228, %c0_229] : memref<5x16x15xf32, #tpu.memory_space<vmem>>, vector<1x16x15xf32>
    %149 = vector.shape_cast %148 : vector<1x16x15xf32> to vector<16x15xf32>
    %cst_230 = arith.constant dense<0.000000e+00> : vector<16x2048xf32>
    %150 = tpu.matmul %149, %147, %cst_230 {dimension_numbers = #tpu.dot_dimension_numbers<[1], [0], [0], [1], [0, 0, 1, 1], [], []>} : vector<16x15xf32>, vector<15x2048xf32>, vector<16x2048xf32> -> vector<16x2048xf32>
    %151 = arith.addf %100, %150 : vector<16x2048xf32>
    %c0_231 = arith.constant 0 : index
    %c0_232 = arith.constant 0 : index
    %c0_233 = arith.constant 0 : index
    %c3_234 = arith.constant 3 : index
    %c0_235 = arith.constant 0 : index
    %152 = vector.load %arg2[%c0_231, %c0_232, %c0_233, %c3_234, %c0_235] : memref<1x3x1x20x132xf32, #tpu.memory_space<vmem>>, vector<1x1x1x16x128xf32>
    %153 = vector.shape_cast %152 : vector<1x1x1x16x128xf32> to vector<16x128xf32>
    %c0_236 = arith.constant 0 : index
    %c0_237 = arith.constant 0 : index
    %c0_238 = arith.constant 0 : index
    %c3_239 = arith.constant 3 : index
    %c1_240 = arith.constant 1 : index
    %154 = vector.load %arg2[%c0_236, %c0_237, %c0_238, %c3_239, %c1_240] : memref<1x3x1x20x132xf32, #tpu.memory_space<vmem>>, vector<1x1x1x16x128xf32>
    %155 = vector.shape_cast %154 : vector<1x1x1x16x128xf32> to vector<16x128xf32>
    %c0_241 = arith.constant 0 : index
    %c0_242 = arith.constant 0 : index
    %c0_243 = arith.constant 0 : index
    %c3_244 = arith.constant 3 : index
    %c2_245 = arith.constant 2 : index
    %156 = vector.load %arg2[%c0_241, %c0_242, %c0_243, %c3_244, %c2_245] : memref<1x3x1x20x132xf32, #tpu.memory_space<vmem>>, vector<1x1x1x16x128xf32>
    %157 = vector.shape_cast %156 : vector<1x1x1x16x128xf32> to vector<16x128xf32>
    %c0_246 = arith.constant 0 : index
    %c0_247 = arith.constant 0 : index
    %c0_248 = arith.constant 0 : index
    %c3_249 = arith.constant 3 : index
    %c3_250 = arith.constant 3 : index
    %158 = vector.load %arg2[%c0_246, %c0_247, %c0_248, %c3_249, %c3_250] : memref<1x3x1x20x132xf32, #tpu.memory_space<vmem>>, vector<1x1x1x16x128xf32>
    %159 = vector.shape_cast %158 : vector<1x1x1x16x128xf32> to vector<16x128xf32>
    %c0_251 = arith.constant 0 : index
    %c0_252 = arith.constant 0 : index
    %c0_253 = arith.constant 0 : index
    %c3_254 = arith.constant 3 : index
    %c4_255 = arith.constant 4 : index
    %160 = vector.load %arg2[%c0_251, %c0_252, %c0_253, %c3_254, %c4_255] : memref<1x3x1x20x132xf32, #tpu.memory_space<vmem>>, vector<1x1x1x16x128xf32>
    %161 = vector.shape_cast %160 : vector<1x1x1x16x128xf32> to vector<16x128xf32>
    %c0_256 = arith.constant 0 : index
    %c1_257 = arith.constant 1 : index
    %c0_258 = arith.constant 0 : index
    %c3_259 = arith.constant 3 : index
    %c0_260 = arith.constant 0 : index
    %162 = vector.load %arg2[%c0_256, %c1_257, %c0_258, %c3_259, %c0_260] : memref<1x3x1x20x132xf32, #tpu.memory_space<vmem>>, vector<1x1x1x16x128xf32>
    %163 = vector.shape_cast %162 : vector<1x1x1x16x128xf32> to vector<16x128xf32>
    %c0_261 = arith.constant 0 : index
    %c1_262 = arith.constant 1 : index
    %c0_263 = arith.constant 0 : index
    %c3_264 = arith.constant 3 : index
    %c1_265 = arith.constant 1 : index
    %164 = vector.load %arg2[%c0_261, %c1_262, %c0_263, %c3_264, %c1_265] : memref<1x3x1x20x132xf32, #tpu.memory_space<vmem>>, vector<1x1x1x16x128xf32>
    %165 = vector.shape_cast %164 : vector<1x1x1x16x128xf32> to vector<16x128xf32>
    %c0_266 = arith.constant 0 : index
    %c1_267 = arith.constant 1 : index
    %c0_268 = arith.constant 0 : index
    %c3_269 = arith.constant 3 : index
    %c2_270 = arith.constant 2 : index
    %166 = vector.load %arg2[%c0_266, %c1_267, %c0_268, %c3_269, %c2_270] : memref<1x3x1x20x132xf32, #tpu.memory_space<vmem>>, vector<1x1x1x16x128xf32>
    %167 = vector.shape_cast %166 : vector<1x1x1x16x128xf32> to vector<16x128xf32>
    %c0_271 = arith.constant 0 : index
    %c1_272 = arith.constant 1 : index
    %c0_273 = arith.constant 0 : index
    %c3_274 = arith.constant 3 : index
    %c3_275 = arith.constant 3 : index
    %168 = vector.load %arg2[%c0_271, %c1_272, %c0_273, %c3_274, %c3_275] : memref<1x3x1x20x132xf32, #tpu.memory_space<vmem>>, vector<1x1x1x16x128xf32>
    %169 = vector.shape_cast %168 : vector<1x1x1x16x128xf32> to vector<16x128xf32>
    %c0_276 = arith.constant 0 : index
    %c1_277 = arith.constant 1 : index
    %c0_278 = arith.constant 0 : index
    %c3_279 = arith.constant 3 : index
    %c4_280 = arith.constant 4 : index
    %170 = vector.load %arg2[%c0_276, %c1_277, %c0_278, %c3_279, %c4_280] : memref<1x3x1x20x132xf32, #tpu.memory_space<vmem>>, vector<1x1x1x16x128xf32>
    %171 = vector.shape_cast %170 : vector<1x1x1x16x128xf32> to vector<16x128xf32>
    %c0_281 = arith.constant 0 : index
    %c2_282 = arith.constant 2 : index
    %c0_283 = arith.constant 0 : index
    %c3_284 = arith.constant 3 : index
    %c0_285 = arith.constant 0 : index
    %172 = vector.load %arg2[%c0_281, %c2_282, %c0_283, %c3_284, %c0_285] : memref<1x3x1x20x132xf32, #tpu.memory_space<vmem>>, vector<1x1x1x16x128xf32>
    %173 = vector.shape_cast %172 : vector<1x1x1x16x128xf32> to vector<16x128xf32>
    %c0_286 = arith.constant 0 : index
    %c2_287 = arith.constant 2 : index
    %c0_288 = arith.constant 0 : index
    %c3_289 = arith.constant 3 : index
    %c1_290 = arith.constant 1 : index
    %174 = vector.load %arg2[%c0_286, %c2_287, %c0_288, %c3_289, %c1_290] : memref<1x3x1x20x132xf32, #tpu.memory_space<vmem>>, vector<1x1x1x16x128xf32>
    %175 = vector.shape_cast %174 : vector<1x1x1x16x128xf32> to vector<16x128xf32>
    %c0_291 = arith.constant 0 : index
    %c2_292 = arith.constant 2 : index
    %c0_293 = arith.constant 0 : index
    %c3_294 = arith.constant 3 : index
    %c2_295 = arith.constant 2 : index
    %176 = vector.load %arg2[%c0_291, %c2_292, %c0_293, %c3_294, %c2_295] : memref<1x3x1x20x132xf32, #tpu.memory_space<vmem>>, vector<1x1x1x16x128xf32>
    %177 = vector.shape_cast %176 : vector<1x1x1x16x128xf32> to vector<16x128xf32>
    %c0_296 = arith.constant 0 : index
    %c2_297 = arith.constant 2 : index
    %c0_298 = arith.constant 0 : index
    %c3_299 = arith.constant 3 : index
    %c3_300 = arith.constant 3 : index
    %178 = vector.load %arg2[%c0_296, %c2_297, %c0_298, %c3_299, %c3_300] : memref<1x3x1x20x132xf32, #tpu.memory_space<vmem>>, vector<1x1x1x16x128xf32>
    %179 = vector.shape_cast %178 : vector<1x1x1x16x128xf32> to vector<16x128xf32>
    %c0_301 = arith.constant 0 : index
    %c2_302 = arith.constant 2 : index
    %c0_303 = arith.constant 0 : index
    %c3_304 = arith.constant 3 : index
    %c4_305 = arith.constant 4 : index
    %180 = vector.load %arg2[%c0_301, %c2_302, %c0_303, %c3_304, %c4_305] : memref<1x3x1x20x132xf32, #tpu.memory_space<vmem>>, vector<1x1x1x16x128xf32>
    %181 = vector.shape_cast %180 : vector<1x1x1x16x128xf32> to vector<16x128xf32>
    %182 = vector.shape_cast %153 : vector<16x128xf32> to vector<1x16x128xf32>
    %183 = vector.shape_cast %155 : vector<16x128xf32> to vector<1x16x128xf32>
    %184 = vector.shape_cast %157 : vector<16x128xf32> to vector<1x16x128xf32>
    %185 = vector.shape_cast %159 : vector<16x128xf32> to vector<1x16x128xf32>
    %186 = vector.shape_cast %161 : vector<16x128xf32> to vector<1x16x128xf32>
    %187 = vector.shape_cast %163 : vector<16x128xf32> to vector<1x16x128xf32>
    %188 = vector.shape_cast %165 : vector<16x128xf32> to vector<1x16x128xf32>
    %189 = vector.shape_cast %167 : vector<16x128xf32> to vector<1x16x128xf32>
    %190 = vector.shape_cast %169 : vector<16x128xf32> to vector<1x16x128xf32>
    %191 = vector.shape_cast %171 : vector<16x128xf32> to vector<1x16x128xf32>
    %192 = vector.shape_cast %173 : vector<16x128xf32> to vector<1x16x128xf32>
    %193 = vector.shape_cast %175 : vector<16x128xf32> to vector<1x16x128xf32>
    %194 = vector.shape_cast %177 : vector<16x128xf32> to vector<1x16x128xf32>
    %195 = vector.shape_cast %179 : vector<16x128xf32> to vector<1x16x128xf32>
    %196 = vector.shape_cast %181 : vector<16x128xf32> to vector<1x16x128xf32>
    %197 = tpu.concatenate %182, %183, %184, %185, %186, %187, %188, %189, %190, %191, %192, %193, %194, %195, %196 in 0 : vector<1x16x128xf32>, vector<1x16x128xf32>, vector<1x16x128xf32>, vector<1x16x128xf32>, vector<1x16x128xf32>, vector<1x16x128xf32>, vector<1x16x128xf32>, vector<1x16x128xf32>, vector<1x16x128xf32>, vector<1x16x128xf32>, vector<1x16x128xf32>, vector<1x16x128xf32>, vector<1x16x128xf32>, vector<1x16x128xf32>, vector<1x16x128xf32> -> vector<15x16x128xf32>
    %198 = vector.shape_cast %197 : vector<15x16x128xf32> to vector<15x2048xf32>
    %c3_306 = arith.constant 3 : index
    %c0_307 = arith.constant 0 : index
    %c0_308 = arith.constant 0 : index
    %199 = vector.load %arg3[%c3_306, %c0_307, %c0_308] : memref<5x16x15xf32, #tpu.memory_space<vmem>>, vector<1x16x15xf32>
    %200 = vector.shape_cast %199 : vector<1x16x15xf32> to vector<16x15xf32>
    %cst_309 = arith.constant dense<0.000000e+00> : vector<16x2048xf32>
    %201 = tpu.matmul %200, %198, %cst_309 {dimension_numbers = #tpu.dot_dimension_numbers<[1], [0], [0], [1], [0, 0, 1, 1], [], []>} : vector<16x15xf32>, vector<15x2048xf32>, vector<16x2048xf32> -> vector<16x2048xf32>
    %202 = arith.addf %151, %201 : vector<16x2048xf32>
    %c0_310 = arith.constant 0 : index
    %c0_311 = arith.constant 0 : index
    %c0_312 = arith.constant 0 : index
    %c4_313 = arith.constant 4 : index
    %c0_314 = arith.constant 0 : index
    %203 = vector.load %arg2[%c0_310, %c0_311, %c0_312, %c4_313, %c0_314] : memref<1x3x1x20x132xf32, #tpu.memory_space<vmem>>, vector<1x1x1x16x128xf32>
    %204 = vector.shape_cast %203 : vector<1x1x1x16x128xf32> to vector<16x128xf32>
    %c0_315 = arith.constant 0 : index
    %c0_316 = arith.constant 0 : index
    %c0_317 = arith.constant 0 : index
    %c4_318 = arith.constant 4 : index
    %c1_319 = arith.constant 1 : index
    %205 = vector.load %arg2[%c0_315, %c0_316, %c0_317, %c4_318, %c1_319] : memref<1x3x1x20x132xf32, #tpu.memory_space<vmem>>, vector<1x1x1x16x128xf32>
    %206 = vector.shape_cast %205 : vector<1x1x1x16x128xf32> to vector<16x128xf32>
    %c0_320 = arith.constant 0 : index
    %c0_321 = arith.constant 0 : index
    %c0_322 = arith.constant 0 : index
    %c4_323 = arith.constant 4 : index
    %c2_324 = arith.constant 2 : index
    %207 = vector.load %arg2[%c0_320, %c0_321, %c0_322, %c4_323, %c2_324] : memref<1x3x1x20x132xf32, #tpu.memory_space<vmem>>, vector<1x1x1x16x128xf32>
    %208 = vector.shape_cast %207 : vector<1x1x1x16x128xf32> to vector<16x128xf32>
    %c0_325 = arith.constant 0 : index
    %c0_326 = arith.constant 0 : index
    %c0_327 = arith.constant 0 : index
    %c4_328 = arith.constant 4 : index
    %c3_329 = arith.constant 3 : index
    %209 = vector.load %arg2[%c0_325, %c0_326, %c0_327, %c4_328, %c3_329] : memref<1x3x1x20x132xf32, #tpu.memory_space<vmem>>, vector<1x1x1x16x128xf32>
    %210 = vector.shape_cast %209 : vector<1x1x1x16x128xf32> to vector<16x128xf32>
    %c0_330 = arith.constant 0 : index
    %c0_331 = arith.constant 0 : index
    %c0_332 = arith.constant 0 : index
    %c4_333 = arith.constant 4 : index
    %c4_334 = arith.constant 4 : index
    %211 = vector.load %arg2[%c0_330, %c0_331, %c0_332, %c4_333, %c4_334] : memref<1x3x1x20x132xf32, #tpu.memory_space<vmem>>, vector<1x1x1x16x128xf32>
    %212 = vector.shape_cast %211 : vector<1x1x1x16x128xf32> to vector<16x128xf32>
    %c0_335 = arith.constant 0 : index
    %c1_336 = arith.constant 1 : index
    %c0_337 = arith.constant 0 : index
    %c4_338 = arith.constant 4 : index
    %c0_339 = arith.constant 0 : index
    %213 = vector.load %arg2[%c0_335, %c1_336, %c0_337, %c4_338, %c0_339] : memref<1x3x1x20x132xf32, #tpu.memory_space<vmem>>, vector<1x1x1x16x128xf32>
    %214 = vector.shape_cast %213 : vector<1x1x1x16x128xf32> to vector<16x128xf32>
    %c0_340 = arith.constant 0 : index
    %c1_341 = arith.constant 1 : index
    %c0_342 = arith.constant 0 : index
    %c4_343 = arith.constant 4 : index
    %c1_344 = arith.constant 1 : index
    %215 = vector.load %arg2[%c0_340, %c1_341, %c0_342, %c4_343, %c1_344] : memref<1x3x1x20x132xf32, #tpu.memory_space<vmem>>, vector<1x1x1x16x128xf32>
    %216 = vector.shape_cast %215 : vector<1x1x1x16x128xf32> to vector<16x128xf32>
    %c0_345 = arith.constant 0 : index
    %c1_346 = arith.constant 1 : index
    %c0_347 = arith.constant 0 : index
    %c4_348 = arith.constant 4 : index
    %c2_349 = arith.constant 2 : index
    %217 = vector.load %arg2[%c0_345, %c1_346, %c0_347, %c4_348, %c2_349] : memref<1x3x1x20x132xf32, #tpu.memory_space<vmem>>, vector<1x1x1x16x128xf32>
    %218 = vector.shape_cast %217 : vector<1x1x1x16x128xf32> to vector<16x128xf32>
    %c0_350 = arith.constant 0 : index
    %c1_351 = arith.constant 1 : index
    %c0_352 = arith.constant 0 : index
    %c4_353 = arith.constant 4 : index
    %c3_354 = arith.constant 3 : index
    %219 = vector.load %arg2[%c0_350, %c1_351, %c0_352, %c4_353, %c3_354] : memref<1x3x1x20x132xf32, #tpu.memory_space<vmem>>, vector<1x1x1x16x128xf32>
    %220 = vector.shape_cast %219 : vector<1x1x1x16x128xf32> to vector<16x128xf32>
    %c0_355 = arith.constant 0 : index
    %c1_356 = arith.constant 1 : index
    %c0_357 = arith.constant 0 : index
    %c4_358 = arith.constant 4 : index
    %c4_359 = arith.constant 4 : index
    %221 = vector.load %arg2[%c0_355, %c1_356, %c0_357, %c4_358, %c4_359] : memref<1x3x1x20x132xf32, #tpu.memory_space<vmem>>, vector<1x1x1x16x128xf32>
    %222 = vector.shape_cast %221 : vector<1x1x1x16x128xf32> to vector<16x128xf32>
    %c0_360 = arith.constant 0 : index
    %c2_361 = arith.constant 2 : index
    %c0_362 = arith.constant 0 : index
    %c4_363 = arith.constant 4 : index
    %c0_364 = arith.constant 0 : index
    %223 = vector.load %arg2[%c0_360, %c2_361, %c0_362, %c4_363, %c0_364] : memref<1x3x1x20x132xf32, #tpu.memory_space<vmem>>, vector<1x1x1x16x128xf32>
    %224 = vector.shape_cast %223 : vector<1x1x1x16x128xf32> to vector<16x128xf32>
    %c0_365 = arith.constant 0 : index
    %c2_366 = arith.constant 2 : index
    %c0_367 = arith.constant 0 : index
    %c4_368 = arith.constant 4 : index
    %c1_369 = arith.constant 1 : index
    %225 = vector.load %arg2[%c0_365, %c2_366, %c0_367, %c4_368, %c1_369] : memref<1x3x1x20x132xf32, #tpu.memory_space<vmem>>, vector<1x1x1x16x128xf32>
    %226 = vector.shape_cast %225 : vector<1x1x1x16x128xf32> to vector<16x128xf32>
    %c0_370 = arith.constant 0 : index
    %c2_371 = arith.constant 2 : index
    %c0_372 = arith.constant 0 : index
    %c4_373 = arith.constant 4 : index
    %c2_374 = arith.constant 2 : index
    %227 = vector.load %arg2[%c0_370, %c2_371, %c0_372, %c4_373, %c2_374] : memref<1x3x1x20x132xf32, #tpu.memory_space<vmem>>, vector<1x1x1x16x128xf32>
    %228 = vector.shape_cast %227 : vector<1x1x1x16x128xf32> to vector<16x128xf32>
    %c0_375 = arith.constant 0 : index
    %c2_376 = arith.constant 2 : index
    %c0_377 = arith.constant 0 : index
    %c4_378 = arith.constant 4 : index
    %c3_379 = arith.constant 3 : index
    %229 = vector.load %arg2[%c0_375, %c2_376, %c0_377, %c4_378, %c3_379] : memref<1x3x1x20x132xf32, #tpu.memory_space<vmem>>, vector<1x1x1x16x128xf32>
    %230 = vector.shape_cast %229 : vector<1x1x1x16x128xf32> to vector<16x128xf32>
    %c0_380 = arith.constant 0 : index
    %c2_381 = arith.constant 2 : index
    %c0_382 = arith.constant 0 : index
    %c4_383 = arith.constant 4 : index
    %c4_384 = arith.constant 4 : index
    %231 = vector.load %arg2[%c0_380, %c2_381, %c0_382, %c4_383, %c4_384] : memref<1x3x1x20x132xf32, #tpu.memory_space<vmem>>, vector<1x1x1x16x128xf32>
    %232 = vector.shape_cast %231 : vector<1x1x1x16x128xf32> to vector<16x128xf32>
    %233 = vector.shape_cast %204 : vector<16x128xf32> to vector<1x16x128xf32>
    %234 = vector.shape_cast %206 : vector<16x128xf32> to vector<1x16x128xf32>
    %235 = vector.shape_cast %208 : vector<16x128xf32> to vector<1x16x128xf32>
    %236 = vector.shape_cast %210 : vector<16x128xf32> to vector<1x16x128xf32>
    %237 = vector.shape_cast %212 : vector<16x128xf32> to vector<1x16x128xf32>
    %238 = vector.shape_cast %214 : vector<16x128xf32> to vector<1x16x128xf32>
    %239 = vector.shape_cast %216 : vector<16x128xf32> to vector<1x16x128xf32>
    %240 = vector.shape_cast %218 : vector<16x128xf32> to vector<1x16x128xf32>
    %241 = vector.shape_cast %220 : vector<16x128xf32> to vector<1x16x128xf32>
    %242 = vector.shape_cast %222 : vector<16x128xf32> to vector<1x16x128xf32>
    %243 = vector.shape_cast %224 : vector<16x128xf32> to vector<1x16x128xf32>
    %244 = vector.shape_cast %226 : vector<16x128xf32> to vector<1x16x128xf32>
    %245 = vector.shape_cast %228 : vector<16x128xf32> to vector<1x16x128xf32>
    %246 = vector.shape_cast %230 : vector<16x128xf32> to vector<1x16x128xf32>
    %247 = vector.shape_cast %232 : vector<16x128xf32> to vector<1x16x128xf32>
    %248 = tpu.concatenate %233, %234, %235, %236, %237, %238, %239, %240, %241, %242, %243, %244, %245, %246, %247 in 0 : vector<1x16x128xf32>, vector<1x16x128xf32>, vector<1x16x128xf32>, vector<1x16x128xf32>, vector<1x16x128xf32>, vector<1x16x128xf32>, vector<1x16x128xf32>, vector<1x16x128xf32>, vector<1x16x128xf32>, vector<1x16x128xf32>, vector<1x16x128xf32>, vector<1x16x128xf32>, vector<1x16x128xf32>, vector<1x16x128xf32>, vector<1x16x128xf32> -> vector<15x16x128xf32>
    %249 = vector.shape_cast %248 : vector<15x16x128xf32> to vector<15x2048xf32>
    %c4_385 = arith.constant 4 : index
    %c0_386 = arith.constant 0 : index
    %c0_387 = arith.constant 0 : index
    %250 = vector.load %arg3[%c4_385, %c0_386, %c0_387] : memref<5x16x15xf32, #tpu.memory_space<vmem>>, vector<1x16x15xf32>
    %251 = vector.shape_cast %250 : vector<1x16x15xf32> to vector<16x15xf32>
    %cst_388 = arith.constant dense<0.000000e+00> : vector<16x2048xf32>
    %252 = tpu.matmul %251, %249, %cst_388 {dimension_numbers = #tpu.dot_dimension_numbers<[1], [0], [0], [1], [0, 0, 1, 1], [], []>} : vector<16x15xf32>, vector<15x2048xf32>, vector<16x2048xf32> -> vector<16x2048xf32>
    %253 = arith.addf %202, %252 : vector<16x2048xf32>
    %c0_389 = arith.constant 0 : index
    %c0_390 = arith.constant 0 : index
    %c0_391 = arith.constant 0 : index
    %254 = vector.load %arg4[%c0_389, %c0_390, %c0_391] : memref<1x16x2048xf32, #tpu.memory_space<vmem>>, vector<1x16x2048xf32>
    %255 = vector.shape_cast %254 : vector<1x16x2048xf32> to vector<16x2048xf32>
    %256 = vector.shape_cast %253 : vector<16x2048xf32> to vector<1x16x2048xf32>
    tpu.vector_store %arg4[%c0_389, %c0_390, %c0_391], %256 {strides = array<i32>} : memref<1x16x2048xf32, #tpu.memory_space<vmem>>, vector<1x16x2048xf32>,
    return
  }
  func.func @transform_0(%arg0: i32, %arg1: i32) -> (i32, i32, i32, i32, i32) {
    %c0_i32 = arith.constant 0 : i32
    %c0_i32_0 = arith.constant 0 : i32
    %c0_i32_1 = arith.constant 0 : i32
    %c0_i32_2 = arith.constant 0 : i32
    return %arg0, %c0_i32, %arg1, %c0_i32_0, %c0_i32_1 : i32, i32, i32, i32, i32
  }
  func.func @transform_1(%arg0: i32, %arg1: i32) -> (i32, i32, i32) {
    %c0_i32 = arith.constant 0 : i32
    %c0_i32_0 = arith.constant 0 : i32
    %c0_i32_1 = arith.constant 0 : i32
    %c0_i32_2 = arith.constant 0 : i32
    return %c0_i32, %c0_i32_0, %c0_i32_1 : i32, i32, i32
  }
  func.func @transform_2(%arg0: i32, %arg1: i32) -> (i32, i32, i32) {
    %c0_i32 = arith.constant 0 : i32
    %c0_i32_0 = arith.constant 0 : i32
    return %arg0, %c0_i32, %arg1 : i32, i32, i32
  }
}

</mosaic_0001>

<llo_original>
// kernel: tpu_custom_call.1
$region0: #{tpu_custom_call.1}
  #allocation0 [shape = 'u32[]', space=smem, size = 0x4, offset = 0x4, fixed_abs, tag = 'smem constant byte address 0x4 - core index']
  #allocation1 [shape = 'u32[72,128]{1,0:T(1,128)}', space=vmem, size = 0x9000, scoped, tag = 'internal scratch']
  %s0 = inlined_call_operand.vmem [shape: f32[2,3,1,20,132], index: 0, kind: input, shape index: {}]
  %s1 = inlined_call_operand.vmem [shape: f32[5,16,15], index: 1, kind: input, shape index: {}]
  %s2 = inlined_call_operand.hbm [shape: f32[2,16,2048], index: 2, kind: output, shape index: {}]
  %s3 = sld [smem:[#allocation0]]
  $region41: #{tpu_custom_call.1} parent=0
    _
  %s5 = ssub.s32 1, %s3
  %s6 = scalar_select 0, %s5, %s3
  $region1: #{tpu_custom_call.1} parent=0
    #allocation2 [shape = 'u8[262144]{0}', space=vmem, size = 0x40000, scoped, tag = 'output window, operand 0']
    #allocation3 [shape = 's32[2]{0}', space=sflag, size = 0x8, scoped, tag = 'scoped memory for tpu_custom_call.1']
    %7 = vsyncpa [#allocation3], 0
    %s8 = scalar_lea.sflag [#allocation3], 1
    %9 = vsyncpa %s8, 0
    loop: start=0, step=1, limit=4
    $region2: #{tpu_custom_call.1} parent=1 // loop_pre_header
      _
    $region3: #{tpu_custom_call.1} parent=1 // loop_header
      %s11 = sphi 0, %s15
      %p12 = scmp.ge.s32.totalorder %s11, 4
      %s18 = sphi 0, %s30
      %s19 = sphi 0, %s26
      %s20 = sphi 0, %s18
      %s21 = sphi 0, %s19
      %s22 = sphi 0, %s20
      %s23 = sphi 0, %s21
      %s35 = sphi 0, %s37
      %s38 = sphi 0, %s35
      %s39 = sphi 0, %s38
      %s55 = sphi 0, %s39
      %s59 = sphi 0, %s59
      %s61 = sphi 0, %s59
      %s62 = sphi 0, %s61
      %s76 = sphi 0, %s62
      %s84 = sphi 0, %s86
      %s87 = sphi 0, %s84
      %s88 = sphi 0, %s87
      %s104 = sphi 0, %s88
    $region4: #{tpu_custom_call.1} parent=1 // loop_header_branch
      %14 = sbr.rel (%p12) target = $region8
    $region5: #{tpu_custom_call.1} parent=1 // loop_body
      %s16 = ssub.s32 %s11, 1
      %s17 = ssub.s32 %s11, 2
      %s24 = sadd.s32 1, %s19
      %p25 = scmp.ge.s32.totalorder %s24, 1
      %s26 = scalar_select %p25, 0, %s24
      %s27 = sadd.s32 1, %s18
      %s28 = scalar_select %p25, %s27, %s18
      %p29 = scmp.ge.s32.totalorder %s28, 2
      %s30 = scalar_select %p29, 0, %s28
      %s31 = ssub.s32 %s18, %s30
      %s32 = ssub.s32 %s19, %s26
      %s33 = sor.u32 %s31, %s32
      %p34 = scmp.eq.s32.totalorder %s33, 0
      %s36 = sadd.s32 %s35, 1
      %s37 = scalar_select %p34, %s35, %s36
      %p40 = pneg %p34
      %p41 = scmp.eq.s32.totalorder %s11, 1
      %p42 = por %p40, %p41
      %p43 = scmp.ne.s32.totalorder %s35, %s38
      %p44 = scmp.eq.s32.totalorder %s11, 0
      %p45 = por %p43, %p44
      %p46 = scmp.ne.s32.totalorder %s35, %s38
      %p47 = scmp.eq.s32.totalorder %s16, 1
      %p48 = por %p46, %p47
      %p49 = scmp.ne.s32.totalorder %s38, %s39
      %p50 = scmp.eq.s32.totalorder %s16, 0
      %p51 = por %p49, %p50
      %p52 = scmp.ne.s32.totalorder %s38, %s39
      %p53 = scmp.eq.s32.totalorder %s17, 1
      %p54 = por %p52, %p53
      %p56 = scmp.ne.s32.totalorder %s39, %s55
      %p57 = scmp.eq.s32.totalorder %s17, 0
      %p58 = por %p56, %p57
      %s60 = sadd.s32 %s59, 1
      %p63 = scmp.eq.s32.totalorder %s11, 1
      %p64 = scmp.ne.s32.totalorder %s59, %s61
      %p65 = scmp.eq.s32.totalorder %s11, 0
      %p66 = por %p64, %p65
      %p67 = scmp.ne.s32.totalorder %s59, %s61
      %p68 = scmp.eq.s32.totalorder %s16, 1
      %p69 = por %p67, %p68
      %p70 = scmp.ne.s32.totalorder %s61, %s62
      %p71 = scmp.eq.s32.totalorder %s16, 0
      %p72 = por %p70, %p71
      %p73 = scmp.ne.s32.totalorder %s61, %s62
      %p74 = scmp.eq.s32.totalorder %s17, 1
      %p75 = por %p73, %p74
      %p77 = scmp.ne.s32.totalorder %s62, %s76
      %p78 = scmp.eq.s32.totalorder %s17, 0
      %p79 = por %p77, %p78
      %s80 = ssub.s32 %s18, %s30
      %s81 = ssub.s32 %s19, %s26
      %s82 = sor.u32 %s80, %s81
      %p83 = scmp.eq.s32.totalorder %s82, 0
      %s85 = sadd.s32 %s84, 1
      %s86 = scalar_select %p83, %s84, %s85
      %p89 = pneg %p83
      %p90 = scmp.eq.s32.totalorder %s11, 1
      %p91 = por %p89, %p90
      %p92 = scmp.ne.s32.totalorder %s84, %s87
      %p93 = scmp.eq.s32.totalorder %s11, 0
      %p94 = por %p92, %p93
      %p95 = scmp.ne.s32.totalorder %s84, %s87
      %p96 = scmp.eq.s32.totalorder %s16, 1
      %p97 = por %p95, %p96
      %p98 = scmp.ne.s32.totalorder %s87, %s88
      %p99 = scmp.eq.s32.totalorder %s16, 0
      %p100 = por %p98, %p99
      %p101 = scmp.ne.s32.totalorder %s87, %s88
      %p102 = scmp.eq.s32.totalorder %s17, 1
      %p103 = por %p101, %p102
      %p105 = scmp.ne.s32.totalorder %s88, %s104
      %p106 = scmp.eq.s32.totalorder %s17, 0
      %p107 = por %p105, %p106
      %p108 = scmp.le.s32.totalorder 1, %s11
      %p109 = scmp.lt.s32.totalorder %s11, 3
      %p110 = pnand %p108, %p109
      %p111 = pneg %p110
      // Predicated region
      $region9: #{tpu_custom_call.1} parent=5 // pred_check
        _
      $region10: #{tpu_custom_call.1} parent=5 // pred_check_branch
        %113 = sbr.rel (%p110) target = $region12
      $region11: #{tpu_custom_call.1} parent=5 // pred_region
        %s114 = ssub.s32 %s11, 1
        // Predicated region
        $region13: #{tpu_custom_call.1} parent=11 // pred_check
          %p115 = pneg %p72
        $region14: #{tpu_custom_call.1} parent=11 // pred_check_branch
          %117 = sbr.rel (%p115) target = $region16
        $region15: #{tpu_custom_call.1} parent=11 // pred_region
          _
        $region16: #{tpu_custom_call.1} parent=11 // pred_fallthru
          _
      $region12: #{tpu_custom_call.1} parent=5 // pred_fallthru
        _
      %p118 = scmp.lt.s32.totalorder %s11, 2
      // Predicated region
      $region17: #{tpu_custom_call.1} parent=5 // pred_check
        %p119 = pneg %p118
      $region18: #{tpu_custom_call.1} parent=5 // pred_check_branch
        %121 = sbr.rel (%p119) target = $region20
      $region19: #{tpu_custom_call.1} parent=5 // pred_region
        // Predicated region
        $region21: #{tpu_custom_call.1} parent=19 // pred_check
          %p122 = pneg %p45
        $region22: #{tpu_custom_call.1} parent=19 // pred_check_branch
          %124 = sbr.rel (%p122) target = $region24
        $region23: #{tpu_custom_call.1} parent=19 // pred_region
          %p125 = scmp.lt.s32.totalorder %s18, 1
          %s126 = scalar_select %p125, %s18, 1
          %p127 = scmp.lt.s32.totalorder %s19, 0
          %s128 = scalar_select %p127, %s19, 0
          %s129 = smul.addr %s128, 6
          %s130 = smul.addr %s126, 18
          %s131 = sadd.s32 %s129, %s130
          %s132 = smul.addr %s131, 8
          %s133 = scalar_lea.vmem %s0, %s132
        $region24: #{tpu_custom_call.1} parent=19 // pred_fallthru
          _
      $region20: #{tpu_custom_call.1} parent=5 // pred_fallthru
        _
      %p134 = scmp.le.s32.totalorder 1, %s11
      %p135 = scmp.lt.s32.totalorder %s11, 3
      %p136 = pnand %p134, %p135
      %p137 = pneg %p136
      // Predicated region
      $region25: #{tpu_custom_call.1} parent=5 // pred_check
        _
      $region26: #{tpu_custom_call.1} parent=5 // pred_check_branch
        %139 = sbr.rel (%p136) target = $region28
      $region27: #{tpu_custom_call.1} parent=5 // pred_region
        %s140 = ssub.s32 %s11, 1
        %p141 = scmp.lt.s32.totalorder %s20, 1
        %s142 = scalar_select %p141, %s20, 1
        %p143 = scmp.lt.s32.totalorder %s21, 0
        %s144 = scalar_select %p143, %s21, 0
        %s145 = smul.addr %s144, 6
        %s146 = smul.addr %s142, 18
        %s147 = sadd.s32 %s145, %s146
        %s148 = smul.addr %s147, 8
        %s149 = scalar_lea.vmem %s0, %s148
        %p150 = pneg %p51
        %p151 = pneg %p48
        %p152 = pneg %p72
        %p153 = pneg %p69
        %p154 = pneg %p100
        %p155 = pneg %p97
        %s156 = sand.u32 %s87, 1
        %s157 = scalar_lea.sflag [#allocation3], %s156
        %s158 = sand.u32 %s87, 1
        %s159 = smul.addr %s158, 256
        %s160 = scalar_lea.vmem [#allocation2], %s159
        %p161 = scmp.lt.s32.totalorder %s20, 1
        %s162 = scalar_select %p161, %s20, 1
        %p163 = scmp.lt.s32.totalorder %s21, 0
        %s164 = scalar_select %p163, %s21, 0
        %s165 = smul.addr %s164, 6
        %s166 = smul.addr %s162, 18
        %s167 = sadd.s32 %s165, %s166
        %s168 = smul.addr %s167, 8
        %s169 = scalar_lea.vmem %s0, %s168
        %s170 = smul.u32 16, %s21
        %v171 = vld [vmem:[%s169] sm:$0xff]
        %v172 = vld [vmem:[%s169 + $0x10] sm:$0xff]
        %v173 = vld [vmem:[%s169 + $0x8] sm:$0xff]
        %v174 = vld [vmem:[%s169 + $0x18] sm:$0xff]
        %s175 = scalar_lea.vmem %s169, 48
        %v176 = vld [vmem:[%s175] sm:$0xff]
        %v177 = vld [vmem:[%s175 + $0x10] sm:$0xff]
        %v178 = vld [vmem:[%s175 + $0x8] sm:$0xff]
        %v179 = vld [vmem:[%s175 + $0x18] sm:$0xff]
        %s180 = scalar_lea.vmem %s169, 96
        %v181 = vld [vmem:[%s180] sm:$0xff]
        %v182 = vld [vmem:[%s180 + $0x10] sm:$0xff]
        %v183 = vld [vmem:[%s180 + $0x8] sm:$0xff]
        %v184 = vld [vmem:[%s180 + $0x18] sm:$0xff]
        %189 = vrot.lane.b32.xlu0 %v171, 127
        %v190 = vpop.permute.xlu0 %189
        %191 = vrot.lane.b32.xlu0 %v173, 127
        %v192 = vpop.permute.xlu0 %191
        %193 = vrot.lane.b32.xlu0 %v172, 127
        %v194 = vpop.permute.xlu0 %193
        %195 = vrot.lane.b32.xlu0 %v174, 127
        %v196 = vpop.permute.xlu0 %195
        %vm197 = vcmask 1039360
        %v198 = vsel %vm197, %v190, %v192
        %v199 = vsel %vm197, %v194, %v196
        %202 = vrot.lane.b32.xlu0 %v171, 126
        %v203 = vpop.permute.xlu0 %202
        %204 = vrot.lane.b32.xlu0 %v173, 126
        %v205 = vpop.permute.xlu0 %204
        %206 = vrot.lane.b32.xlu0 %v172, 126
        %v207 = vpop.permute.xlu0 %206
        %208 = vrot.lane.b32.xlu0 %v174, 126
        %v209 = vpop.permute.xlu0 %208
        %vm210 = vcmask 1031168
        %v211 = vsel %vm210, %v203, %v205
        %v212 = vsel %vm210, %v207, %v209
        %215 = vrot.lane.b32.xlu0 %v171, 125
        %v216 = vpop.permute.xlu0 %215
        %217 = vrot.lane.b32.xlu0 %v173, 125
        %v218 = vpop.permute.xlu0 %217
        %219 = vrot.lane.b32.xlu0 %v172, 125
        %v220 = vpop.permute.xlu0 %219
        %221 = vrot.lane.b32.xlu0 %v174, 125
        %v222 = vpop.permute.xlu0 %221
        %vm223 = vcmask 1022976
        %v224 = vsel %vm223, %v216, %v218
        %v225 = vsel %vm223, %v220, %v222
        %228 = vrot.lane.b32.xlu0 %v171, 124
        %v229 = vpop.permute.xlu0 %228
        %230 = vrot.lane.b32.xlu0 %v173, 124
        %v231 = vpop.permute.xlu0 %230
        %232 = vrot.lane.b32.xlu0 %v172, 124
        %v233 = vpop.permute.xlu0 %232
        %234 = vrot.lane.b32.xlu0 %v174, 124
        %v235 = vpop.permute.xlu0 %234
        %vm236 = vcmask 1014784
        %v237 = vsel %vm236, %v229, %v231
        %v238 = vsel %vm236, %v233, %v235
        %245 = vrot.lane.b32.xlu0 %v176, 127
        %v246 = vpop.permute.xlu0 %245
        %247 = vrot.lane.b32.xlu0 %v178, 127
        %v248 = vpop.permute.xlu0 %247
        %249 = vrot.lane.b32.xlu0 %v177, 127
        %v250 = vpop.permute.xlu0 %249
        %251 = vrot.lane.b32.xlu0 %v179, 127
        %v252 = vpop.permute.xlu0 %251
        %v253 = vsel %vm197, %v246, %v248
        %v254 = vsel %vm197, %v250, %v252
        %257 = vrot.lane.b32.xlu0 %v176, 126
        %v258 = vpop.permute.xlu0 %257
        %259 = vrot.lane.b32.xlu0 %v178, 126
        %v260 = vpop.permute.xlu0 %259
        %261 = vrot.lane.b32.xlu0 %v177, 126
        %v262 = vpop.permute.xlu0 %261
        %263 = vrot.lane.b32.xlu0 %v179, 126
        %v264 = vpop.permute.xlu0 %263
        %v265 = vsel %vm210, %v258, %v260
        %v266 = vsel %vm210, %v262, %v264
        %269 = vrot.lane.b32.xlu0 %v176, 125
        %v270 = vpop.permute.xlu0 %269
        %271 = vrot.lane.b32.xlu0 %v178, 125
        %v272 = vpop.permute.xlu0 %271
        %273 = vrot.lane.b32.xlu0 %v177, 125
        %v274 = vpop.permute.xlu0 %273
        %275 = vrot.lane.b32.xlu0 %v179, 125
        %v276 = vpop.permute.xlu0 %275
        %v277 = vsel %vm223, %v270, %v272
        %v278 = vsel %vm223, %v274, %v276
        %281 = vrot.lane.b32.xlu0 %v176, 124
        %v282 = vpop.permute.xlu0 %281
        %283 = vrot.lane.b32.xlu0 %v178, 124
        %v284 = vpop.permute.xlu0 %283
        %285 = vrot.lane.b32.xlu0 %v177, 124
        %v286 = vpop.permute.xlu0 %285
        %287 = vrot.lane.b32.xlu0 %v179, 124
        %v288 = vpop.permute.xlu0 %287
        %v289 = vsel %vm236, %v282, %v284
        %v290 = vsel %vm236, %v286, %v288
        %297 = vrot.lane.b32.xlu0 %v181, 127
        %v298 = vpop.permute.xlu0 %297
        %299 = vrot.lane.b32.xlu0 %v183, 127
        %v300 = vpop.permute.xlu0 %299
        %301 = vrot.lane.b32.xlu0 %v182, 127
        %v302 = vpop.permute.xlu0 %301
        %303 = vrot.lane.b32.xlu0 %v184, 127
        %v304 = vpop.permute.xlu0 %303
        %v305 = vsel %vm197, %v298, %v300
        %v306 = vsel %vm197, %v302, %v304
        %309 = vrot.lane.b32.xlu0 %v181, 126
        %v310 = vpop.permute.xlu0 %309
        %311 = vrot.lane.b32.xlu0 %v183, 126
        %v312 = vpop.permute.xlu0 %311
        %313 = vrot.lane.b32.xlu0 %v182, 126
        %v314 = vpop.permute.xlu0 %313
        %315 = vrot.lane.b32.xlu0 %v184, 126
        %v316 = vpop.permute.xlu0 %315
        %v317 = vsel %vm210, %v310, %v312
        %v318 = vsel %vm210, %v314, %v316
        %321 = vrot.lane.b32.xlu0 %v181, 125
        %v322 = vpop.permute.xlu0 %321
        %323 = vrot.lane.b32.xlu0 %v183, 125
        %v324 = vpop.permute.xlu0 %323
        %325 = vrot.lane.b32.xlu0 %v182, 125
        %v326 = vpop.permute.xlu0 %325
        %327 = vrot.lane.b32.xlu0 %v184, 125
        %v328 = vpop.permute.xlu0 %327
        %v329 = vsel %vm223, %v322, %v324
        %v330 = vsel %vm223, %v326, %v328
        %333 = vrot.lane.b32.xlu0 %v181, 124
        %v334 = vpop.permute.xlu0 %333
        %335 = vrot.lane.b32.xlu0 %v183, 124
        %v336 = vpop.permute.xlu0 %335
        %337 = vrot.lane.b32.xlu0 %v182, 124
        %v338 = vpop.permute.xlu0 %337
        %339 = vrot.lane.b32.xlu0 %v184, 124
        %v340 = vpop.permute.xlu0 %339
        %v341 = vsel %vm236, %v334, %v336
        %v342 = vsel %vm236, %v338, %v340
        %v345 = vrot.slane %v211, 4
        %vm346 = vcmask 1047556
        %v347 = vsel %vm346, %v345, %v171
        %v348 = vrot.slane %v171, 4
        %v349 = vsel %vm346, %v211, %v348
        %v351 = vunpack.c.l.s4 1983009808
        %v352 = vunpack.c.0.s8 %v351
        %v353 = vperm.slane %v347, %v352
        %v355 = vunpack.c.l.s4 1983009808
        %v356 = vunpack.c.0.s8 %v355
        %v357 = vperm.slane %v349, %v356
        %v358 = vrot.slane %v224, 4
        %v359 = vsel %vm346, %v358, %v198
        %v360 = vrot.slane %v198, 4
        %v361 = vsel %vm346, %v224, %v360
        %v363 = vunpack.c.l.s4 1983009808
        %v364 = vunpack.c.0.s8 %v363
        %v365 = vperm.slane %v359, %v364
        %v367 = vunpack.c.l.s4 1983009808
        %v368 = vunpack.c.0.s8 %v367
        %v369 = vperm.slane %v361, %v368
        %v370 = vrot.slane %v253, 4
        %v371 = vsel %vm346, %v370, %v237
        %v372 = vrot.slane %v237, 4
        %v373 = vsel %vm346, %v253, %v372
        %v375 = vunpack.c.l.s4 1983009808
        %v376 = vunpack.c.0.s8 %v375
        %v377 = vperm.slane %v371, %v376
        %v379 = vunpack.c.l.s4 1983009808
        %v380 = vunpack.c.0.s8 %v379
        %v381 = vperm.slane %v373, %v380
        %v382 = vrot.slane %v265, 4
        %v383 = vsel %vm346, %v382, %v176
        %v384 = vrot.slane %v176, 4
        %v385 = vsel %vm346, %v265, %v384
        %v387 = vunpack.c.l.s4 1983009808
        %v388 = vunpack.c.0.s8 %v387
        %v389 = vperm.slane %v383, %v388
        %v391 = vunpack.c.l.s4 1983009808
        %v392 = vunpack.c.0.s8 %v391
        %v393 = vperm.slane %v385, %v392
        %v394 = vrot.slane %v365, 4
        %v395 = vsel %vm346, %v394, %v353
        %v396 = vrot.slane %v353, 4
        %v397 = vsel %vm346, %v365, %v396
        %v399 = vunpack.c.l.s4 1934713408
        %v400 = vunpack.c.0.s8 %v399
        %v401 = vperm.slane %v395, %v400
        %v403 = vunpack.c.l.s4 1934713408
        %v404 = vunpack.c.0.s8 %v403
        %v405 = vperm.slane %v397, %v404
        %v406 = vrot.slane %v369, 4
        %v407 = vsel %vm346, %v406, %v357
        %v408 = vrot.slane %v357, 4
        %v409 = vsel %vm346, %v369, %v408
        %v411 = vunpack.c.l.s4 1934713408
        %v412 = vunpack.c.0.s8 %v411
        %v413 = vperm.slane %v407, %v412
        %v415 = vunpack.c.l.s4 1934713408
        %v416 = vunpack.c.0.s8 %v415
        %v417 = vperm.slane %v409, %v416
        %v418 = vrot.slane %v389, 4
        %v419 = vsel %vm346, %v418, %v377
        %v420 = vrot.slane %v377, 4
        %v421 = vsel %vm346, %v389, %v420
        %v423 = vunpack.c.l.s4 1934713408
        %v424 = vunpack.c.0.s8 %v423
        %v425 = vperm.slane %v419, %v424
        %v427 = vunpack.c.l.s4 1934713408
        %v428 = vunpack.c.0.s8 %v427
        %v429 = vperm.slane %v421, %v428
        %v430 = vrot.slane %v393, 4
        %v431 = vsel %vm346, %v430, %v381
        %v432 = vrot.slane %v381, 4
        %v433 = vsel %vm346, %v393, %v432
        %v435 = vunpack.c.l.s4 1934713408
        %v436 = vunpack.c.0.s8 %v435
        %v437 = vperm.slane %v431, %v436
        %v439 = vunpack.c.l.s4 1934713408
        %v440 = vunpack.c.0.s8 %v439
        %v441 = vperm.slane %v433, %v440
        %v442 = vrot.slane %v425, 4
        %v443 = vsel %vm346, %v442, %v401
        %v444 = vrot.slane %v401, 4
        %v445 = vsel %vm346, %v425, %v444
        %v446 = vrot.slane %v429, 4
        %v447 = vsel %vm346, %v446, %v405
        %v448 = vrot.slane %v405, 4
        %v449 = vsel %vm346, %v429, %v448
        %v450 = vrot.slane %v437, 4
        %v451 = vsel %vm346, %v450, %v413
        %v452 = vrot.slane %v413, 4
        %v453 = vsel %vm346, %v437, %v452
        %v454 = vrot.slane %v441, 4
        %v455 = vsel %vm346, %v454, %v417
        %v456 = vrot.slane %v417, 4
        %v457 = vsel %vm346, %v441, %v456
        %v458 = vrot.slane %v181, 4
        %v459 = vsel %vm346, %v458, %v277
        %v460 = vrot.slane %v277, 4
        %v461 = vsel %vm346, %v181, %v460
        %v463 = vunpack.c.l.s4 1983009808
        %v464 = vunpack.c.0.s8 %v463
        %v465 = vperm.slane %v459, %v464
        %v467 = vunpack.c.l.s4 1983009808
        %v468 = vunpack.c.0.s8 %v467
        %v469 = vperm.slane %v461, %v468
        %v470 = vrot.slane %v305, 4
        %v471 = vsel %vm346, %v470, %v289
        %v472 = vrot.slane %v289, 4
        %v473 = vsel %vm346, %v305, %v472
        %v475 = vunpack.c.l.s4 1983009808
        %v476 = vunpack.c.0.s8 %v475
        %v477 = vperm.slane %v471, %v476
        %v479 = vunpack.c.l.s4 1983009808
        %v480 = vunpack.c.0.s8 %v479
        %v481 = vperm.slane %v473, %v480
        %v482 = vrot.slane %v341, 4
        %v483 = vsel %vm346, %v482, %v317
        %v484 = vrot.slane %v317, 4
        %v485 = vsel %vm346, %v341, %v484
        %v487 = vunpack.c.l.s4 1983009808
        %v488 = vunpack.c.0.s8 %v487
        %v489 = vperm.slane %v483, %v488
        %v491 = vunpack.c.l.s4 1983009808
        %v492 = vunpack.c.0.s8 %v491
        %v493 = vperm.slane %v485, %v492
        %v494 = vrot.slane %v329, 4
        %v495 = vsel %vm346, 0.0, %v494
        %v497 = vunpack.c.l.s4 1983009808
        %v498 = vunpack.c.0.s8 %v497
        %v499 = vperm.slane %v329, %v498
        %v501 = vunpack.c.l.s4 1983009808
        %v502 = vunpack.c.0.s8 %v501
        %v503 = vperm.slane %v495, %v502
        %v504 = vrot.slane %v477, 4
        %v505 = vsel %vm346, %v504, %v465
        %v506 = vrot.slane %v465, 4
        %v507 = vsel %vm346, %v477, %v506
        %v509 = vunpack.c.l.s4 1934713408
        %v510 = vunpack.c.0.s8 %v509
        %v511 = vperm.slane %v505, %v510
        %v513 = vunpack.c.l.s4 1934713408
        %v514 = vunpack.c.0.s8 %v513
        %v515 = vperm.slane %v507, %v514
        %v516 = vrot.slane %v481, 4
        %v517 = vsel %vm346, %v516, %v469
        %v518 = vrot.slane %v469, 4
        %v519 = vsel %vm346, %v481, %v518
        %v521 = vunpack.c.l.s4 1934713408
        %v522 = vunpack.c.0.s8 %v521
        %v523 = vperm.slane %v517, %v522
        %v525 = vunpack.c.l.s4 1934713408
        %v526 = vunpack.c.0.s8 %v525
        %v527 = vperm.slane %v519, %v526
        %v528 = vrot.slane %v499, 4
        %v529 = vsel %vm346, %v528, %v489
        %v530 = vrot.slane %v489, 4
        %v531 = vsel %vm346, %v499, %v530
        %v533 = vunpack.c.l.s4 1934713408
        %v534 = vunpack.c.0.s8 %v533
        %v535 = vperm.slane %v529, %v534
        %v537 = vunpack.c.l.s4 1934713408
        %v538 = vunpack.c.0.s8 %v537
        %v539 = vperm.slane %v531, %v538
        %v540 = vrot.slane %v503, 4
        %v541 = vsel %vm346, %v540, %v493
        %v542 = vrot.slane %v493, 4
        %v543 = vsel %vm346, %v503, %v542
        %v545 = vunpack.c.l.s4 1934713408
        %v546 = vunpack.c.0.s8 %v545
        %v547 = vperm.slane %v541, %v546
        %v549 = vunpack.c.l.s4 1934713408
        %v550 = vunpack.c.0.s8 %v549
        %v551 = vperm.slane %v543, %v550
        %v552 = vrot.slane %v535, 4
        %v553 = vsel %vm346, %v552, %v511
        %v554 = vrot.slane %v511, 4
        %v555 = vsel %vm346, %v535, %v554
        %v556 = vrot.slane %v539, 4
        %v557 = vsel %vm346, %v556, %v515
        %v558 = vrot.slane %v515, 4
        %v559 = vsel %vm346, %v539, %v558
        %v560 = vrot.slane %v547, 4
        %v561 = vsel %vm346, %v560, %v523
        %v562 = vrot.slane %v523, 4
        %v563 = vsel %vm346, %v547, %v562
        %v564 = vrot.slane %v551, 4
        %v565 = vsel %vm346, %v564, %v527
        %v566 = vrot.slane %v527, 4
        %v567 = vsel %vm346, %v551, %v566
        %v568 = vrot.slane %v212, 4
        %v569 = vsel %vm346, %v568, %v172
        %v570 = vrot.slane %v172, 4
        %v571 = vsel %vm346, %v212, %v570
        %v573 = vunpack.c.l.s4 1983009808
        %v574 = vunpack.c.0.s8 %v573
        %v575 = vperm.slane %v569, %v574
        %v577 = vunpack.c.l.s4 1983009808
        %v578 = vunpack.c.0.s8 %v577
        %v579 = vperm.slane %v571, %v578
        %v580 = vrot.slane %v225, 4
        %v581 = vsel %vm346, %v580, %v199
        %v582 = vrot.slane %v199, 4
        %v583 = vsel %vm346, %v225, %v582
        %v585 = vunpack.c.l.s4 1983009808
        %v586 = vunpack.c.0.s8 %v585
        %v587 = vperm.slane %v581, %v586
        %v589 = vunpack.c.l.s4 1983009808
        %v590 = vunpack.c.0.s8 %v589
        %v591 = vperm.slane %v583, %v590
        %v592 = vrot.slane %v254, 4
        %v593 = vsel %vm346, %v592, %v238
        %v594 = vrot.slane %v238, 4
        %v595 = vsel %vm346, %v254, %v594
        %v597 = vunpack.c.l.s4 1983009808
        %v598 = vunpack.c.0.s8 %v597
        %v599 = vperm.slane %v593, %v598
        %v601 = vunpack.c.l.s4 1983009808
        %v602 = vunpack.c.0.s8 %v601
        %v603 = vperm.slane %v595, %v602
        %v604 = vrot.slane %v266, 4
        %v605 = vsel %vm346, %v604, %v177
        %v606 = vrot.slane %v177, 4
        %v607 = vsel %vm346, %v266, %v606
        %v609 = vunpack.c.l.s4 1983009808
        %v610 = vunpack.c.0.s8 %v609
        %v611 = vperm.slane %v605, %v610
        %v613 = vunpack.c.l.s4 1983009808
        %v614 = vunpack.c.0.s8 %v613
        %v615 = vperm.slane %v607, %v614
        %v616 = vrot.slane %v587, 4
        %v617 = vsel %vm346, %v616, %v575
        %v618 = vrot.slane %v575, 4
        %v619 = vsel %vm346, %v587, %v618
        %v621 = vunpack.c.l.s4 1934713408
        %v622 = vunpack.c.0.s8 %v621
        %v623 = vperm.slane %v617, %v622
        %v625 = vunpack.c.l.s4 1934713408
        %v626 = vunpack.c.0.s8 %v625
        %v627 = vperm.slane %v619, %v626
        %v628 = vrot.slane %v591, 4
        %v629 = vsel %vm346, %v628, %v579
        %v630 = vrot.slane %v579, 4
        %v631 = vsel %vm346, %v591, %v630
        %v633 = vunpack.c.l.s4 1934713408
        %v634 = vunpack.c.0.s8 %v633
        %v635 = vperm.slane %v629, %v634
        %v637 = vunpack.c.l.s4 1934713408
        %v638 = vunpack.c.0.s8 %v637
        %v639 = vperm.slane %v631, %v638
        %v640 = vrot.slane %v611, 4
        %v641 = vsel %vm346, %v640, %v599
        %v642 = vrot.slane %v599, 4
        %v643 = vsel %vm346, %v611, %v642
        %v645 = vunpack.c.l.s4 1934713408
        %v646 = vunpack.c.0.s8 %v645
        %v647 = vperm.slane %v641, %v646
        %v649 = vunpack.c.l.s4 1934713408
        %v650 = vunpack.c.0.s8 %v649
        %v651 = vperm.slane %v643, %v650
        %v652 = vrot.slane %v615, 4
        %v653 = vsel %vm346, %v652, %v603
        %v654 = vrot.slane %v603, 4
        %v655 = vsel %vm346, %v615, %v654
        %v657 = vunpack.c.l.s4 1934713408
        %v658 = vunpack.c.0.s8 %v657
        %v659 = vperm.slane %v653, %v658
        %v661 = vunpack.c.l.s4 1934713408
        %v662 = vunpack.c.0.s8 %v661
        %v663 = vperm.slane %v655, %v662
        %v664 = vrot.slane %v647, 4
        %v665 = vsel %vm346, %v664, %v623
        %v666 = vrot.slane %v623, 4
        %v667 = vsel %vm346, %v647, %v666
        %v668 = vrot.slane %v651, 4
        %v669 = vsel %vm346, %v668, %v627
        %v670 = vrot.slane %v627, 4
        %v671 = vsel %vm346, %v651, %v670
        %v672 = vrot.slane %v659, 4
        %v673 = vsel %vm346, %v672, %v635
        %v674 = vrot.slane %v635, 4
        %v675 = vsel %vm346, %v659, %v674
        %v676 = vrot.slane %v663, 4
        %v677 = vsel %vm346, %v676, %v639
        %v678 = vrot.slane %v639, 4
        %v679 = vsel %vm346, %v663, %v678
        %v680 = vrot.slane %v182, 4
        %v681 = vsel %vm346, %v680, %v278
        %v682 = vrot.slane %v278, 4
        %v683 = vsel %vm346, %v182, %v682
        %v685 = vunpack.c.l.s4 1983009808
        %v686 = vunpack.c.0.s8 %v685
        %v687 = vperm.slane %v681, %v686
        %v689 = vunpack.c.l.s4 1983009808
        %v690 = vunpack.c.0.s8 %v689
        %v691 = vperm.slane %v683, %v690
        %v692 = vrot.slane %v306, 4
        %v693 = vsel %vm346, %v692, %v290
        %v694 = vrot.slane %v290, 4
        %v695 = vsel %vm346, %v306, %v694
        %v697 = vunpack.c.l.s4 1983009808
        %v698 = vunpack.c.0.s8 %v697
        %v699 = vperm.slane %v693, %v698
        %v701 = vunpack.c.l.s4 1983009808
        %v702 = vunpack.c.0.s8 %v701
        %v703 = vperm.slane %v695, %v702
        %v704 = vrot.slane %v342, 4
        %v705 = vsel %vm346, %v704, %v318
        %v706 = vrot.slane %v318, 4
        %v707 = vsel %vm346, %v342, %v706
        %v709 = vunpack.c.l.s4 1983009808
        %v710 = vunpack.c.0.s8 %v709
        %v711 = vperm.slane %v705, %v710
        %v713 = vunpack.c.l.s4 1983009808
        %v714 = vunpack.c.0.s8 %v713
        %v715 = vperm.slane %v707, %v714
        %v716 = vrot.slane %v330, 4
        %v717 = vsel %vm346, 0.0, %v716
        %v719 = vunpack.c.l.s4 1983009808
        %v720 = vunpack.c.0.s8 %v719
        %v721 = vperm.slane %v330, %v720
        %v723 = vunpack.c.l.s4 1983009808
        %v724 = vunpack.c.0.s8 %v723
        %v725 = vperm.slane %v717, %v724
        %v726 = vrot.slane %v699, 4
        %v727 = vsel %vm346, %v726, %v687
        %v728 = vrot.slane %v687, 4
        %v729 = vsel %vm346, %v699, %v728
        %v731 = vunpack.c.l.s4 1934713408
        %v732 = vunpack.c.0.s8 %v731
        %v733 = vperm.slane %v727, %v732
        %v735 = vunpack.c.l.s4 1934713408
        %v736 = vunpack.c.0.s8 %v735
        %v737 = vperm.slane %v729, %v736
        %v738 = vrot.slane %v703, 4
        %v739 = vsel %vm346, %v738, %v691
        %v740 = vrot.slane %v691, 4
        %v741 = vsel %vm346, %v703, %v740
        %v743 = vunpack.c.l.s4 1934713408
        %v744 = vunpack.c.0.s8 %v743
        %v745 = vperm.slane %v739, %v744
        %v747 = vunpack.c.l.s4 1934713408
        %v748 = vunpack.c.0.s8 %v747
        %v749 = vperm.slane %v741, %v748
        %v750 = vrot.slane %v721, 4
        %v751 = vsel %vm346, %v750, %v711
        %v752 = vrot.slane %v711, 4
        %v753 = vsel %vm346, %v721, %v752
        %v755 = vunpack.c.l.s4 1934713408
        %v756 = vunpack.c.0.s8 %v755
        %v757 = vperm.slane %v751, %v756
        %v759 = vunpack.c.l.s4 1934713408
        %v760 = vunpack.c.0.s8 %v759
        %v761 = vperm.slane %v753, %v760
        %v762 = vrot.slane %v725, 4
        %v763 = vsel %vm346, %v762, %v715
        %v764 = vrot.slane %v715, 4
        %v765 = vsel %vm346, %v725, %v764
        %v767 = vunpack.c.l.s4 1934713408
        %v768 = vunpack.c.0.s8 %v767
        %v769 = vperm.slane %v763, %v768
        %v771 = vunpack.c.l.s4 1934713408
        %v772 = vunpack.c.0.s8 %v771
        %v773 = vperm.slane %v765, %v772
        %v774 = vrot.slane %v757, 4
        %v775 = vsel %vm346, %v774, %v733
        %v776 = vrot.slane %v733, 4
        %v777 = vsel %vm346, %v757, %v776
        %v778 = vrot.slane %v761, 4
        %v779 = vsel %vm346, %v778, %v737
        %v780 = vrot.slane %v737, 4
        %v781 = vsel %vm346, %v761, %v780
        %v782 = vrot.slane %v769, 4
        %v783 = vsel %vm346, %v782, %v745
        %v784 = vrot.slane %v745, 4
        %v785 = vsel %vm346, %v769, %v784
        %v786 = vrot.slane %v773, 4
        %v787 = vsel %vm346, %v786, %v749
        %v788 = vrot.slane %v749, 4
        %v789 = vsel %vm346, %v773, %v788
        %v790 = vld [vmem:[%s1] sm:$0xff]
        %v791 = vld [vmem:[%s1 + $0x8] sm:$0xff]
        %v792 = vld [vmem:[%s169] sm:$0xfe]
        %v793 = vld [vmem:[%s169 + $0x20] sm:$0x1]
        %v794 = vld [vmem:[%s169 + $0x8] sm:$0xfe]
        %v795 = vld [vmem:[%s169 + $0x28] sm:$0x1]
        %v796 = vld [vmem:[%s175] sm:$0xfe]
        %v797 = vld [vmem:[%s175 + $0x20] sm:$0x1]
        %v798 = vld [vmem:[%s175 + $0x8] sm:$0xfe]
        %v799 = vld [vmem:[%s175 + $0x28] sm:$0x1]
        %v800 = vld [vmem:[%s180] sm:$0xfe]
        %v801 = vld [vmem:[%s180 + $0x20] sm:$0x1]
        %v802 = vld [vmem:[%s180 + $0x8] sm:$0xfe]
        %v803 = vld [vmem:[%s180 + $0x28] sm:$0x1]
        %808 = vrot.lane.b32.xlu0 %v792, 127
        %v809 = vpop.permute.xlu0 %808
        %810 = vrot.lane.b32.xlu0 %v794, 127
        %v811 = vpop.permute.xlu0 %810
        %812 = vrot.lane.b32.xlu0 %v793, 127
        %v813 = vpop.permute.xlu0 %812
        %814 = vrot.lane.b32.xlu0 %v795, 127
        %v815 = vpop.permute.xlu0 %814
        %v816 = vsel %vm197, %v809, %v811
        %v817 = vsel %vm197, %v813, %v815
        %818 = vrot.lane.b32.xlu0 %v792, 126
        %v819 = vpop.permute.xlu0 %818
        %820 = vrot.lane.b32.xlu0 %v794, 126
        %v821 = vpop.permute.xlu0 %820
        %822 = vrot.lane.b32.xlu0 %v793, 126
        %v823 = vpop.permute.xlu0 %822
        %824 = vrot.lane.b32.xlu0 %v795, 126
        %v825 = vpop.permute.xlu0 %824
        %v826 = vsel %vm210, %v819, %v821
        %v827 = vsel %vm210, %v823, %v825
        %828 = vrot.lane.b32.xlu0 %v792, 125
        %v829 = vpop.permute.xlu0 %828
        %830 = vrot.lane.b32.xlu0 %v794, 125
        %v831 = vpop.permute.xlu0 %830
        %832 = vrot.lane.b32.xlu0 %v793, 125
        %v833 = vpop.permute.xlu0 %832
        %834 = vrot.lane.b32.xlu0 %v795, 125
        %v835 = vpop.permute.xlu0 %834
        %v836 = vsel %vm223, %v829, %v831
        %v837 = vsel %vm223, %v833, %v835
        %838 = vrot.lane.b32.xlu0 %v792, 124
        %v839 = vpop.permute.xlu0 %838
        %840 = vrot.lane.b32.xlu0 %v794, 124
        %v841 = vpop.permute.xlu0 %840
        %842 = vrot.lane.b32.xlu0 %v793, 124
        %v843 = vpop.permute.xlu0 %842
        %844 = vrot.lane.b32.xlu0 %v795, 124
        %v845 = vpop.permute.xlu0 %844
        %v846 = vsel %vm236, %v839, %v841
        %v847 = vsel %vm236, %v843, %v845
        %852 = vrot.lane.b32.xlu0 %v796, 127
        %v853 = vpop.permute.xlu0 %852
        %854 = vrot.lane.b32.xlu0 %v798, 127
        %v855 = vpop.permute.xlu0 %854
        %856 = vrot.lane.b32.xlu0 %v797, 127
        %v857 = vpop.permute.xlu0 %856
        %858 = vrot.lane.b32.xlu0 %v799, 127
        %v859 = vpop.permute.xlu0 %858
        %v860 = vsel %vm197, %v853, %v855
        %v861 = vsel %vm197, %v857, %v859
        %862 = vrot.lane.b32.xlu0 %v796, 126
        %v863 = vpop.permute.xlu0 %862
        %864 = vrot.lane.b32.xlu0 %v798, 126
        %v865 = vpop.permute.xlu0 %864
        %866 = vrot.lane.b32.xlu0 %v797, 126
        %v867 = vpop.permute.xlu0 %866
        %868 = vrot.lane.b32.xlu0 %v799, 126
        %v869 = vpop.permute.xlu0 %868
        %v870 = vsel %vm210, %v863, %v865
        %v871 = vsel %vm210, %v867, %v869
        %872 = vrot.lane.b32.xlu0 %v796, 125
        %v873 = vpop.permute.xlu0 %872
        %874 = vrot.lane.b32.xlu0 %v798, 125
        %v875 = vpop.permute.xlu0 %874
        %876 = vrot.lane.b32.xlu0 %v797, 125
        %v877 = vpop.permute.xlu0 %876
        %878 = vrot.lane.b32.xlu0 %v799, 125
        %v879 = vpop.permute.xlu0 %878
        %v880 = vsel %vm223, %v873, %v875
        %v881 = vsel %vm223, %v877, %v879
        %882 = vrot.lane.b32.xlu0 %v796, 124
        %v883 = vpop.permute.xlu0 %882
        %884 = vrot.lane.b32.xlu0 %v798, 124
        %v885 = vpop.permute.xlu0 %884
        %886 = vrot.lane.b32.xlu0 %v797, 124
        %v887 = vpop.permute.xlu0 %886
        %888 = vrot.lane.b32.xlu0 %v799, 124
        %v889 = vpop.permute.xlu0 %888
        %v890 = vsel %vm236, %v883, %v885
        %v891 = vsel %vm236, %v887, %v889
        %896 = vrot.lane.b32.xlu0 %v800, 127
        %v897 = vpop.permute.xlu0 %896
        %898 = vrot.lane.b32.xlu0 %v802, 127
        %v899 = vpop.permute.xlu0 %898
        %900 = vrot.lane.b32.xlu0 %v801, 127
        %v901 = vpop.permute.xlu0 %900
        %902 = vrot.lane.b32.xlu0 %v803, 127
        %v903 = vpop.permute.xlu0 %902
        %v904 = vsel %vm197, %v897, %v899
        %v905 = vsel %vm197, %v901, %v903
        %906 = vrot.lane.b32.xlu0 %v800, 126
        %v907 = vpop.permute.xlu0 %906
        %908 = vrot.lane.b32.xlu0 %v802, 126
        %v909 = vpop.permute.xlu0 %908
        %910 = vrot.lane.b32.xlu0 %v801, 126
        %v911 = vpop.permute.xlu0 %910
        %912 = vrot.lane.b32.xlu0 %v803, 126
        %v913 = vpop.permute.xlu0 %912
        %v914 = vsel %vm210, %v907, %v909
        %v915 = vsel %vm210, %v911, %v913
        %916 = vrot.lane.b32.xlu0 %v800, 125
        %v917 = vpop.permute.xlu0 %916
        %918 = vrot.lane.b32.xlu0 %v802, 125
        %v919 = vpop.permute.xlu0 %918
        %920 = vrot.lane.b32.xlu0 %v801, 125
        %v921 = vpop.permute.xlu0 %920
        %922 = vrot.lane.b32.xlu0 %v803, 125
        %v923 = vpop.permute.xlu0 %922
        %v924 = vsel %vm223, %v917, %v919
        %v925 = vsel %vm223, %v921, %v923
        %926 = vrot.lane.b32.xlu0 %v800, 124
        %v927 = vpop.permute.xlu0 %926
        %928 = vrot.lane.b32.xlu0 %v802, 124
        %v929 = vpop.permute.xlu0 %928
        %930 = vrot.lane.b32.xlu0 %v801, 124
        %v931 = vpop.permute.xlu0 %930
        %932 = vrot.lane.b32.xlu0 %v803, 124
        %v933 = vpop.permute.xlu0 %932
        %v934 = vsel %vm236, %v927, %v929
        %v935 = vsel %vm236, %v931, %v933
        %vm936 = vcmask 1046528
        %v937 = vrot.slane %v792, 1
        %v938 = vrot.slane %v172, 1
        %v939 = vsel %vm936, %v937, %v938
        %v940 = vrot.slane %v793, 1
        %v941 = vsel %vm936, %v938, %v940
        %v942 = vrot.slane %v816, 1
        %v943 = vrot.slane %v199, 1
        %v944 = vsel %vm936, %v942, %v943
        %v945 = vrot.slane %v817, 1
        %v946 = vsel %vm936, %v943, %v945
        %v947 = vrot.slane %v826, 1
        %v948 = vrot.slane %v212, 1
        %v949 = vsel %vm936, %v947, %v948
        %v950 = vrot.slane %v827, 1
        %v951 = vsel %vm936, %v948, %v950
        %v952 = vrot.slane %v836, 1
        %v953 = vrot.slane %v225, 1
        %v954 = vsel %vm936, %v952, %v953
        %v955 = vrot.slane %v837, 1
        %v956 = vsel %vm936, %v953, %v955
        %v957 = vrot.slane %v846, 1
        %v958 = vrot.slane %v238, 1
        %v959 = vsel %vm936, %v957, %v958
        %v960 = vrot.slane %v847, 1
        %v961 = vsel %vm936, %v958, %v960
        %v962 = vrot.slane %v796, 1
        %v963 = vrot.slane %v177, 1
        %v964 = vsel %vm936, %v962, %v963
        %v965 = vrot.slane %v797, 1
        %v966 = vsel %vm936, %v963, %v965
        %v967 = vrot.slane %v860, 1
        %v968 = vrot.slane %v254, 1
        %v969 = vsel %vm936, %v967, %v968
        %v970 = vrot.slane %v861, 1
        %v971 = vsel %vm936, %v968, %v970
        %v972 = vrot.slane %v870, 1
        %v973 = vrot.slane %v266, 1
        %v974 = vsel %vm936, %v972, %v973
        %v975 = vrot.slane %v871, 1
        %v976 = vsel %vm936, %v973, %v975
        %v977 = vrot.slane %v880, 1
        %v978 = vrot.slane %v278, 1
        %v979 = vsel %vm936, %v977, %v978
        %v980 = vrot.slane %v881, 1
        %v981 = vsel %vm936, %v978, %v980
        %v982 = vrot.slane %v890, 1
        %v983 = vrot.slane %v290, 1
        %v984 = vsel %vm936, %v982, %v983
        %v985 = vrot.slane %v891, 1
        %v986 = vsel %vm936, %v983, %v985
        %v987 = vrot.slane %v800, 1
        %v988 = vrot.slane %v182, 1
        %v989 = vsel %vm936, %v987, %v988
        %v990 = vrot.slane %v801, 1
        %v991 = vsel %vm936, %v988, %v990
        %v992 = vrot.slane %v904, 1
        %v993 = vrot.slane %v306, 1
        %v994 = vsel %vm936, %v992, %v993
        %v995 = vrot.slane %v905, 1
        %v996 = vsel %vm936, %v993, %v995
        %v997 = vrot.slane %v914, 1
        %v998 = vrot.slane %v318, 1
        %v999 = vsel %vm936, %v997, %v998
        %v1000 = vrot.slane %v915, 1
        %v1001 = vsel %vm936, %v998, %v1000
        %v1002 = vrot.slane %v924, 1
        %v1003 = vrot.slane %v330, 1
        %v1004 = vsel %vm936, %v1002, %v1003
        %v1005 = vrot.slane %v925, 1
        %v1006 = vsel %vm936, %v1003, %v1005
        %v1007 = vrot.slane %v934, 1
        %v1008 = vrot.slane %v342, 1
        %v1009 = vsel %vm936, %v1007, %v1008
        %v1010 = vrot.slane %v935, 1
        %v1011 = vsel %vm936, %v1008, %v1010
        %v1042 = vrot.slane %v949, 4
        %v1043 = vsel %vm346, %v1042, %v939
        %v1044 = vrot.slane %v939, 4
        %v1045 = vsel %vm346, %v949, %v1044
        %v1047 = vunpack.c.l.s4 1983009808
        %v1048 = vunpack.c.0.s8 %v1047
        %v1049 = vperm.slane %v1043, %v1048
        %v1051 = vunpack.c.l.s4 1983009808
        %v1052 = vunpack.c.0.s8 %v1051
        %v1053 = vperm.slane %v1045, %v1052
        %v1054 = vrot.slane %v954, 4
        %v1055 = vsel %vm346, %v1054, %v944
        %v1056 = vrot.slane %v944, 4
        %v1057 = vsel %vm346, %v954, %v1056
        %v1059 = vunpack.c.l.s4 1983009808
        %v1060 = vunpack.c.0.s8 %v1059
        %v1061 = vperm.slane %v1055, %v1060
        %v1063 = vunpack.c.l.s4 1983009808
        %v1064 = vunpack.c.0.s8 %v1063
        %v1065 = vperm.slane %v1057, %v1064
        %v1066 = vrot.slane %v969, 4
        %v1067 = vsel %vm346, %v1066, %v959
        %v1068 = vrot.slane %v959, 4
        %v1069 = vsel %vm346, %v969, %v1068
        %v1071 = vunpack.c.l.s4 1983009808
        %v1072 = vunpack.c.0.s8 %v1071
        %v1073 = vperm.slane %v1067, %v1072
        %v1075 = vunpack.c.l.s4 1983009808
        %v1076 = vunpack.c.0.s8 %v1075
        %v1077 = vperm.slane %v1069, %v1076
        %v1078 = vrot.slane %v974, 4
        %v1079 = vsel %vm346, %v1078, %v964
        %v1080 = vrot.slane %v964, 4
        %v1081 = vsel %vm346, %v974, %v1080
        %v1083 = vunpack.c.l.s4 1983009808
        %v1084 = vunpack.c.0.s8 %v1083
        %v1085 = vperm.slane %v1079, %v1084
        %v1087 = vunpack.c.l.s4 1983009808
        %v1088 = vunpack.c.0.s8 %v1087
        %v1089 = vperm.slane %v1081, %v1088
        %v1090 = vrot.slane %v1061, 4
        %v1091 = vsel %vm346, %v1090, %v1049
        %v1092 = vrot.slane %v1049, 4
        %v1093 = vsel %vm346, %v1061, %v1092
        %v1095 = vunpack.c.l.s4 1934713408
        %v1096 = vunpack.c.0.s8 %v1095
        %v1097 = vperm.slane %v1091, %v1096
        %v1099 = vunpack.c.l.s4 1934713408
        %v1100 = vunpack.c.0.s8 %v1099
        %v1101 = vperm.slane %v1093, %v1100
        %v1102 = vrot.slane %v1065, 4
        %v1103 = vsel %vm346, %v1102, %v1053
        %v1104 = vrot.slane %v1053, 4
        %v1105 = vsel %vm346, %v1065, %v1104
        %v1107 = vunpack.c.l.s4 1934713408
        %v1108 = vunpack.c.0.s8 %v1107
        %v1109 = vperm.slane %v1103, %v1108
        %v1111 = vunpack.c.l.s4 1934713408
        %v1112 = vunpack.c.0.s8 %v1111
        %v1113 = vperm.slane %v1105, %v1112
        %v1114 = vrot.slane %v1085, 4
        %v1115 = vsel %vm346, %v1114, %v1073
        %v1116 = vrot.slane %v1073, 4
        %v1117 = vsel %vm346, %v1085, %v1116
        %v1119 = vunpack.c.l.s4 1934713408
        %v1120 = vunpack.c.0.s8 %v1119
        %v1121 = vperm.slane %v1115, %v1120
        %v1123 = vunpack.c.l.s4 1934713408
        %v1124 = vunpack.c.0.s8 %v1123
        %v1125 = vperm.slane %v1117, %v1124
        %v1126 = vrot.slane %v1089, 4
        %v1127 = vsel %vm346, %v1126, %v1077
        %v1128 = vrot.slane %v1077, 4
        %v1129 = vsel %vm346, %v1089, %v1128
        %v1131 = vunpack.c.l.s4 1934713408
        %v1132 = vunpack.c.0.s8 %v1131
        %v1133 = vperm.slane %v1127, %v1132
        %v1135 = vunpack.c.l.s4 1934713408
        %v1136 = vunpack.c.0.s8 %v1135
        %v1137 = vperm.slane %v1129, %v1136
        %v1138 = vrot.slane %v1121, 4
        %v1139 = vsel %vm346, %v1138, %v1097
        %v1140 = vrot.slane %v1097, 4
        %v1141 = vsel %vm346, %v1121, %v1140
        %v1142 = vrot.slane %v1125, 4
        %v1143 = vsel %vm346, %v1142, %v1101
        %v1144 = vrot.slane %v1101, 4
        %v1145 = vsel %vm346, %v1125, %v1144
        %v1146 = vrot.slane %v1133, 4
        %v1147 = vsel %vm346, %v1146, %v1109
        %v1148 = vrot.slane %v1109, 4
        %v1149 = vsel %vm346, %v1133, %v1148
        %v1150 = vrot.slane %v1137, 4
        %v1151 = vsel %vm346, %v1150, %v1113
        %v1152 = vrot.slane %v1113, 4
        %v1153 = vsel %vm346, %v1137, %v1152
        %v1154 = vrot.slane %v989, 4
        %v1155 = vsel %vm346, %v1154, %v979
        %v1156 = vrot.slane %v979, 4
        %v1157 = vsel %vm346, %v989, %v1156
        %v1159 = vunpack.c.l.s4 1983009808
        %v1160 = vunpack.c.0.s8 %v1159
        %v1161 = vperm.slane %v1155, %v1160
        %v1163 = vunpack.c.l.s4 1983009808
        %v1164 = vunpack.c.0.s8 %v1163
        %v1165 = vperm.slane %v1157, %v1164
        %v1166 = vrot.slane %v994, 4
        %v1167 = vsel %vm346, %v1166, %v984
        %v1168 = vrot.slane %v984, 4
        %v1169 = vsel %vm346, %v994, %v1168
        %v1171 = vunpack.c.l.s4 1983009808
        %v1172 = vunpack.c.0.s8 %v1171
        %v1173 = vperm.slane %v1167, %v1172
        %v1175 = vunpack.c.l.s4 1983009808
        %v1176 = vunpack.c.0.s8 %v1175
        %v1177 = vperm.slane %v1169, %v1176
        %v1178 = vrot.slane %v1009, 4
        %v1179 = vsel %vm346, %v1178, %v999
        %v1180 = vrot.slane %v999, 4
        %v1181 = vsel %vm346, %v1009, %v1180
        %v1183 = vunpack.c.l.s4 1983009808
        %v1184 = vunpack.c.0.s8 %v1183
        %v1185 = vperm.slane %v1179, %v1184
        %v1187 = vunpack.c.l.s4 1983009808
        %v1188 = vunpack.c.0.s8 %v1187
        %v1189 = vperm.slane %v1181, %v1188
        %v1190 = vrot.slane %v1004, 4
        %v1191 = vsel %vm346, 0.0, %v1190
        %v1193 = vunpack.c.l.s4 1983009808
        %v1194 = vunpack.c.0.s8 %v1193
        %v1195 = vperm.slane %v1004, %v1194
        %v1197 = vunpack.c.l.s4 1983009808
        %v1198 = vunpack.c.0.s8 %v1197
        %v1199 = vperm.slane %v1191, %v1198
        %v1200 = vrot.slane %v1173, 4
        %v1201 = vsel %vm346, %v1200, %v1161
        %v1202 = vrot.slane %v1161, 4
        %v1203 = vsel %vm346, %v1173, %v1202
        %v1205 = vunpack.c.l.s4 1934713408
        %v1206 = vunpack.c.0.s8 %v1205
        %v1207 = vperm.slane %v1201, %v1206
        %v1209 = vunpack.c.l.s4 1934713408
        %v1210 = vunpack.c.0.s8 %v1209
        %v1211 = vperm.slane %v1203, %v1210
        %v1212 = vrot.slane %v1177, 4
        %v1213 = vsel %vm346, %v1212, %v1165
        %v1214 = vrot.slane %v1165, 4
        %v1215 = vsel %vm346, %v1177, %v1214
        %v1217 = vunpack.c.l.s4 1934713408
        %v1218 = vunpack.c.0.s8 %v1217
        %v1219 = vperm.slane %v1213, %v1218
        %v1221 = vunpack.c.l.s4 1934713408
        %v1222 = vunpack.c.0.s8 %v1221
        %v1223 = vperm.slane %v1215, %v1222
        %v1224 = vrot.slane %v1195, 4
        %v1225 = vsel %vm346, %v1224, %v1185
        %v1226 = vrot.slane %v1185, 4
        %v1227 = vsel %vm346, %v1195, %v1226
        %v1229 = vunpack.c.l.s4 1934713408
        %v1230 = vunpack.c.0.s8 %v1229
        %v1231 = vperm.slane %v1225, %v1230
        %v1233 = vunpack.c.l.s4 1934713408
        %v1234 = vunpack.c.0.s8 %v1233
        %v1235 = vperm.slane %v1227, %v1234
        %v1236 = vrot.slane %v1199, 4
        %v1237 = vsel %vm346, %v1236, %v1189
        %v1238 = vrot.slane %v1189, 4
        %v1239 = vsel %vm346, %v1199, %v1238
        %v1241 = vunpack.c.l.s4 1934713408
        %v1242 = vunpack.c.0.s8 %v1241
        %v1243 = vperm.slane %v1237, %v1242
        %v1245 = vunpack.c.l.s4 1934713408
        %v1246 = vunpack.c.0.s8 %v1245
        %v1247 = vperm.slane %v1239, %v1246
        %v1248 = vrot.slane %v1231, 4
        %v1249 = vsel %vm346, %v1248, %v1207
        %v1250 = vrot.slane %v1207, 4
        %v1251 = vsel %vm346, %v1231, %v1250
        %v1252 = vrot.slane %v1235, 4
        %v1253 = vsel %vm346, %v1252, %v1211
        %v1254 = vrot.slane %v1211, 4
        %v1255 = vsel %vm346, %v1235, %v1254
        %v1256 = vrot.slane %v1243, 4
        %v1257 = vsel %vm346, %v1256, %v1219
        %v1258 = vrot.slane %v1219, 4
        %v1259 = vsel %vm346, %v1243, %v1258
        %v1260 = vrot.slane %v1247, 4
        %v1261 = vsel %vm346, %v1260, %v1223
        %v1262 = vrot.slane %v1223, 4
        %v1263 = vsel %vm346, %v1247, %v1262
        %v1264 = vrot.slane %v951, 4
        %v1265 = vsel %vm346, %v1264, %v941
        %v1266 = vrot.slane %v941, 4
        %v1267 = vsel %vm346, %v951, %v1266
        %v1269 = vunpack.c.l.s4 1983009808
        %v1270 = vunpack.c.0.s8 %v1269
        %v1271 = vperm.slane %v1265, %v1270
        %v1273 = vunpack.c.l.s4 1983009808
        %v1274 = vunpack.c.0.s8 %v1273
        %v1275 = vperm.slane %v1267, %v1274
        %v1276 = vrot.slane %v956, 4
        %v1277 = vsel %vm346, %v1276, %v946
        %v1278 = vrot.slane %v946, 4
        %v1279 = vsel %vm346, %v956, %v1278
        %v1281 = vunpack.c.l.s4 1983009808
        %v1282 = vunpack.c.0.s8 %v1281
        %v1283 = vperm.slane %v1277, %v1282
        %v1285 = vunpack.c.l.s4 1983009808
        %v1286 = vunpack.c.0.s8 %v1285
        %v1287 = vperm.slane %v1279, %v1286
        %v1288 = vrot.slane %v971, 4
        %v1289 = vsel %vm346, %v1288, %v961
        %v1290 = vrot.slane %v961, 4
        %v1291 = vsel %vm346, %v971, %v1290
        %v1293 = vunpack.c.l.s4 1983009808
        %v1294 = vunpack.c.0.s8 %v1293
        %v1295 = vperm.slane %v1289, %v1294
        %v1297 = vunpack.c.l.s4 1983009808
        %v1298 = vunpack.c.0.s8 %v1297
        %v1299 = vperm.slane %v1291, %v1298
        %v1300 = vrot.slane %v976, 4
        %v1301 = vsel %vm346, %v1300, %v966
        %v1302 = vrot.slane %v966, 4
        %v1303 = vsel %vm346, %v976, %v1302
        %v1305 = vunpack.c.l.s4 1983009808
        %v1306 = vunpack.c.0.s8 %v1305
        %v1307 = vperm.slane %v1301, %v1306
        %v1309 = vunpack.c.l.s4 1983009808
        %v1310 = vunpack.c.0.s8 %v1309
        %v1311 = vperm.slane %v1303, %v1310
        %v1312 = vrot.slane %v1283, 4
        %v1313 = vsel %vm346, %v1312, %v1271
        %v1314 = vrot.slane %v1271, 4
        %v1315 = vsel %vm346, %v1283, %v1314
        %v1317 = vunpack.c.l.s4 1934713408
        %v1318 = vunpack.c.0.s8 %v1317
        %v1319 = vperm.slane %v1313, %v1318
        %v1321 = vunpack.c.l.s4 1934713408
        %v1322 = vunpack.c.0.s8 %v1321
        %v1323 = vperm.slane %v1315, %v1322
        %v1324 = vrot.slane %v1287, 4
        %v1325 = vsel %vm346, %v1324, %v1275
        %v1326 = vrot.slane %v1275, 4
        %v1327 = vsel %vm346, %v1287, %v1326
        %v1329 = vunpack.c.l.s4 1934713408
        %v1330 = vunpack.c.0.s8 %v1329
        %v1331 = vperm.slane %v1325, %v1330
        %v1333 = vunpack.c.l.s4 1934713408
        %v1334 = vunpack.c.0.s8 %v1333
        %v1335 = vperm.slane %v1327, %v1334
        %v1336 = vrot.slane %v1307, 4
        %v1337 = vsel %vm346, %v1336, %v1295
        %v1338 = vrot.slane %v1295, 4
        %v1339 = vsel %vm346, %v1307, %v1338
        %v1341 = vunpack.c.l.s4 1934713408
        %v1342 = vunpack.c.0.s8 %v1341
        %v1343 = vperm.slane %v1337, %v1342
        %v1345 = vunpack.c.l.s4 1934713408
        %v1346 = vunpack.c.0.s8 %v1345
        %v1347 = vperm.slane %v1339, %v1346
        %v1348 = vrot.slane %v1311, 4
        %v1349 = vsel %vm346, %v1348, %v1299
        %v1350 = vrot.slane %v1299, 4
        %v1351 = vsel %vm346, %v1311, %v1350
        %v1353 = vunpack.c.l.s4 1934713408
        %v1354 = vunpack.c.0.s8 %v1353
        %v1355 = vperm.slane %v1349, %v1354
        %v1357 = vunpack.c.l.s4 1934713408
        %v1358 = vunpack.c.0.s8 %v1357
        %v1359 = vperm.slane %v1351, %v1358
        %v1360 = vrot.slane %v1343, 4
        %v1361 = vsel %vm346, %v1360, %v1319
        %v1362 = vrot.slane %v1319, 4
        %v1363 = vsel %vm346, %v1343, %v1362
        %v1364 = vrot.slane %v1347, 4
        %v1365 = vsel %vm346, %v1364, %v1323
        %v1366 = vrot.slane %v1323, 4
        %v1367 = vsel %vm346, %v1347, %v1366
        %v1368 = vrot.slane %v1355, 4
        %v1369 = vsel %vm346, %v1368, %v1331
        %v1370 = vrot.slane %v1331, 4
        %v1371 = vsel %vm346, %v1355, %v1370
        %v1372 = vrot.slane %v1359, 4
        %v1373 = vsel %vm346, %v1372, %v1335
        %v1374 = vrot.slane %v1335, 4
        %v1375 = vsel %vm346, %v1359, %v1374
        %v1376 = vrot.slane %v991, 4
        %v1377 = vsel %vm346, %v1376, %v981
        %v1378 = vrot.slane %v981, 4
        %v1379 = vsel %vm346, %v991, %v1378
        %v1381 = vunpack.c.l.s4 1983009808
        %v1382 = vunpack.c.0.s8 %v1381
        %v1383 = vperm.slane %v1377, %v1382
        %v1385 = vunpack.c.l.s4 1983009808
        %v1386 = vunpack.c.0.s8 %v1385
        %v1387 = vperm.slane %v1379, %v1386
        %v1388 = vrot.slane %v996, 4
        %v1389 = vsel %vm346, %v1388, %v986
        %v1390 = vrot.slane %v986, 4
        %v1391 = vsel %vm346, %v996, %v1390
        %v1393 = vunpack.c.l.s4 1983009808
        %v1394 = vunpack.c.0.s8 %v1393
        %v1395 = vperm.slane %v1389, %v1394
        %v1397 = vunpack.c.l.s4 1983009808
        %v1398 = vunpack.c.0.s8 %v1397
        %v1399 = vperm.slane %v1391, %v1398
        %v1400 = vrot.slane %v1011, 4
        %v1401 = vsel %vm346, %v1400, %v1001
        %v1402 = vrot.slane %v1001, 4
        %v1403 = vsel %vm346, %v1011, %v1402
        %v1405 = vunpack.c.l.s4 1983009808
        %v1406 = vunpack.c.0.s8 %v1405
        %v1407 = vperm.slane %v1401, %v1406
        %v1409 = vunpack.c.l.s4 1983009808
        %v1410 = vunpack.c.0.s8 %v1409
        %v1411 = vperm.slane %v1403, %v1410
        %v1412 = vrot.slane %v1006, 4
        %v1413 = vsel %vm346, 0.0, %v1412
        %v1415 = vunpack.c.l.s4 1983009808
        %v1416 = vunpack.c.0.s8 %v1415
        %v1417 = vperm.slane %v1006, %v1416
        %v1419 = vunpack.c.l.s4 1983009808
        %v1420 = vunpack.c.0.s8 %v1419
        %v1421 = vperm.slane %v1413, %v1420
        %v1422 = vrot.slane %v1395, 4
        %v1423 = vsel %vm346, %v1422, %v1383
        %v1424 = vrot.slane %v1383, 4
        %v1425 = vsel %vm346, %v1395, %v1424
        %v1427 = vunpack.c.l.s4 1934713408
        %v1428 = vunpack.c.0.s8 %v1427
        %v1429 = vperm.slane %v1423, %v1428
        %v1431 = vunpack.c.l.s4 1934713408
        %v1432 = vunpack.c.0.s8 %v1431
        %v1433 = vperm.slane %v1425, %v1432
        %v1434 = vrot.slane %v1399, 4
        %v1435 = vsel %vm346, %v1434, %v1387
        %v1436 = vrot.slane %v1387, 4
        %v1437 = vsel %vm346, %v1399, %v1436
        %v1439 = vunpack.c.l.s4 1934713408
        %v1440 = vunpack.c.0.s8 %v1439
        %v1441 = vperm.slane %v1435, %v1440
        %v1443 = vunpack.c.l.s4 1934713408
        %v1444 = vunpack.c.0.s8 %v1443
        %v1445 = vperm.slane %v1437, %v1444
        %v1446 = vrot.slane %v1417, 4
        %v1447 = vsel %vm346, %v1446, %v1407
        %v1448 = vrot.slane %v1407, 4
        %v1449 = vsel %vm346, %v1417, %v1448
        %v1451 = vunpack.c.l.s4 1934713408
        %v1452 = vunpack.c.0.s8 %v1451
        %v1453 = vperm.slane %v1447, %v1452
        %v1455 = vunpack.c.l.s4 1934713408
        %v1456 = vunpack.c.0.s8 %v1455
        %v1457 = vperm.slane %v1449, %v1456
        %v1458 = vrot.slane %v1421, 4
        %v1459 = vsel %vm346, %v1458, %v1411
        %v1460 = vrot.slane %v1411, 4
        %v1461 = vsel %vm346, %v1421, %v1460
        %v1463 = vunpack.c.l.s4 1934713408
        %v1464 = vunpack.c.0.s8 %v1463
        %v1465 = vperm.slane %v1459, %v1464
        %v1467 = vunpack.c.l.s4 1934713408
        %v1468 = vunpack.c.0.s8 %v1467
        %v1469 = vperm.slane %v1461, %v1468
        %v1470 = vrot.slane %v1453, 4
        %v1471 = vsel %vm346, %v1470, %v1429
        %v1472 = vrot.slane %v1429, 4
        %v1473 = vsel %vm346, %v1453, %v1472
        %v1474 = vrot.slane %v1457, 4
        %v1475 = vsel %vm346, %v1474, %v1433
        %v1476 = vrot.slane %v1433, 4
        %v1477 = vsel %vm346, %v1457, %v1476
        %v1478 = vrot.slane %v1465, 4
        %v1479 = vsel %vm346, %v1478, %v1441
        %v1480 = vrot.slane %v1441, 4
        %v1481 = vsel %vm346, %v1465, %v1480
        %v1482 = vrot.slane %v1469, 4
        %v1483 = vsel %vm346, %v1482, %v1445
        %v1484 = vrot.slane %v1445, 4
        %v1485 = vsel %vm346, %v1469, %v1484
        %s1486 = scalar_lea.vmem %s1, 16
        %v1487 = vld [vmem:[%s1486] sm:$0xff]
        %v1488 = vld [vmem:[%s1486 + $0x8] sm:$0xff]
        %vm1489 = vcmask 121856
        %v1491 = vsel %vm1489, %v1487, 0
        %v1494 = vsel %vm1489, %v1488, 0
        %v1497 = vsel %vm936, %v1249, 0
        %v1500 = vsel %vm936, %v1251, 0
        %v1503 = vsel %vm936, %v1253, 0
        %v1506 = vsel %vm936, %v1255, 0
        %v1509 = vsel %vm936, %v1257, 0
        %v1512 = vsel %vm936, %v1259, 0
        %v1515 = vsel %vm936, %v1261, 0
        %v1518 = vsel %vm936, %v1263, 0
        %v1521 = vsel %vm936, %v1471, 0
        %v1524 = vsel %vm936, %v1473, 0
        %v1527 = vsel %vm936, %v1475, 0
        %v1530 = vsel %vm936, %v1477, 0
        %v1533 = vsel %vm936, %v1479, 0
        %v1536 = vsel %vm936, %v1481, 0
        %v1539 = vsel %vm936, %v1483, 0
        %v1542 = vsel %vm936, %v1485, 0
        %1544 = vmatpush.msra.mxu0 0.0
        %1545 = vmatpush.msra.mxu0 0.0
        %1546 = vmatpush.msra.mxu0 0.0
        %1547 = vmatpush.msra.mxu0 0.0
        %1548 = vmatpush.msra.mxu0 0.0
        %1549 = vmatpush.msra.mxu0 0.0
        %1550 = vmatpush.msra.mxu0 0.0
        %1551 = vmatpush.msra.mxu0 0.0
        %1552 = vmatpush.msra.mxu0 0.0
        %1553 = vmatpush.msra.mxu0 0.0
        %1554 = vmatpush.msra.mxu0 0.0
        %1555 = vmatpush.msra.mxu0 0.0
        %1556 = vmatpush.msra.mxu0 0.0
        %1557 = vmatpush.msra.mxu0 0.0
        %1558 = vmatpush.msra.mxu0 %v1497
        %1559 = vmatpush.msra.mxu0 %v1139
        %1560 = vmatmul.f32.gmra.mxu0 %v1491
        %v1561 = vpop.f32.mrf.mxu0
        %v1562 = vadd.f32 0.0, %v1561
        %1563 = vmatmul.f32.gmra.mxu0 %v1494
        %v1564 = vpop.f32.mrf.mxu0
        %v1565 = vadd.f32 0.0, %v1564
        %1566 = vdwg.mxu0
        %1567 = vmatpush.msra.mxu0 0.0
        %1568 = vmatpush.msra.mxu0 0.0
        %1569 = vmatpush.msra.mxu0 0.0
        %1570 = vmatpush.msra.mxu0 0.0
        %1571 = vmatpush.msra.mxu0 0.0
        %1572 = vmatpush.msra.mxu0 0.0
        %1573 = vmatpush.msra.mxu0 0.0
        %1574 = vmatpush.msra.mxu0 0.0
        %1575 = vmatpush.msra.mxu0 0.0
        %1576 = vmatpush.msra.mxu0 0.0
        %1577 = vmatpush.msra.mxu0 0.0
        %1578 = vmatpush.msra.mxu0 0.0
        %1579 = vmatpush.msra.mxu0 0.0
        %1580 = vmatpush.msra.mxu0 0.0
        %1581 = vmatpush.msra.mxu0 %v1500
        %1582 = vmatpush.msra.mxu0 %v1141
        %1583 = vmatmul.f32.gmra.mxu0 %v1491
        %v1584 = vpop.f32.mrf.mxu0
        %v1585 = vadd.f32 0.0, %v1584
        %1586 = vmatmul.f32.gmra.mxu0 %v1494
        %v1587 = vpop.f32.mrf.mxu0
        %v1588 = vadd.f32 0.0, %v1587
        %1589 = vdwg.mxu0
        %1590 = vmatpush.msra.mxu0 0.0
        %1591 = vmatpush.msra.mxu0 0.0
        %1592 = vmatpush.msra.mxu0 0.0
        %1593 = vmatpush.msra.mxu0 0.0
        %1594 = vmatpush.msra.mxu0 0.0
        %1595 = vmatpush.msra.mxu0 0.0
        %1596 = vmatpush.msra.mxu0 0.0
        %1597 = vmatpush.msra.mxu0 0.0
        %1598 = vmatpush.msra.mxu0 0.0
        %1599 = vmatpush.msra.mxu0 0.0
        %1600 = vmatpush.msra.mxu0 0.0
        %1601 = vmatpush.msra.mxu0 0.0
        %1602 = vmatpush.msra.mxu0 0.0
        %1603 = vmatpush.msra.mxu0 0.0
        %1604 = vmatpush.msra.mxu0 %v1503
        %1605 = vmatpush.msra.mxu0 %v1143
        %1606 = vmatmul.f32.gmra.mxu0 %v1491
        %v1607 = vpop.f32.mrf.mxu0
        %v1608 = vadd.f32 0.0, %v1607
        %1609 = vmatmul.f32.gmra.mxu0 %v1494
        %v1610 = vpop.f32.mrf.mxu0
        %v1611 = vadd.f32 0.0, %v1610
        %1612 = vdwg.mxu0
        %1613 = vmatpush.msra.mxu0 0.0
        %1614 = vmatpush.msra.mxu0 0.0
        %1615 = vmatpush.msra.mxu0 0.0
        %1616 = vmatpush.msra.mxu0 0.0
        %1617 = vmatpush.msra.mxu0 0.0
        %1618 = vmatpush.msra.mxu0 0.0
        %1619 = vmatpush.msra.mxu0 0.0
        %1620 = vmatpush.msra.mxu0 0.0
        %1621 = vmatpush.msra.mxu0 0.0
        %1622 = vmatpush.msra.mxu0 0.0
        %1623 = vmatpush.msra.mxu0 0.0
        %1624 = vmatpush.msra.mxu0 0.0
        %1625 = vmatpush.msra.mxu0 0.0
        %1626 = vmatpush.msra.mxu0 0.0
        %1627 = vmatpush.msra.mxu0 %v1506
        %1628 = vmatpush.msra.mxu0 %v1145
        %1629 = vmatmul.f32.gmra.mxu0 %v1491
        %v1630 = vpop.f32.mrf.mxu0
        %v1631 = vadd.f32 0.0, %v1630
        %1632 = vmatmul.f32.gmra.mxu0 %v1494
        %v1633 = vpop.f32.mrf.mxu0
        %v1634 = vadd.f32 0.0, %v1633
        %1635 = vdwg.mxu0
        %1636 = vmatpush.msra.mxu0 0.0
        %1637 = vmatpush.msra.mxu0 0.0
        %1638 = vmatpush.msra.mxu0 0.0
        %1639 = vmatpush.msra.mxu0 0.0
        %1640 = vmatpush.msra.mxu0 0.0
        %1641 = vmatpush.msra.mxu0 0.0
        %1642 = vmatpush.msra.mxu0 0.0
        %1643 = vmatpush.msra.mxu0 0.0
        %1644 = vmatpush.msra.mxu0 0.0
        %1645 = vmatpush.msra.mxu0 0.0
        %1646 = vmatpush.msra.mxu0 0.0
        %1647 = vmatpush.msra.mxu0 0.0
        %1648 = vmatpush.msra.mxu0 0.0
        %1649 = vmatpush.msra.mxu0 0.0
        %1650 = vmatpush.msra.mxu0 %v1509
        %1651 = vmatpush.msra.mxu0 %v1147
        %1652 = vmatmul.f32.gmra.mxu0 %v1491
        %v1653 = vpop.f32.mrf.mxu0
        %v1654 = vadd.f32 0.0, %v1653
        %1655 = vmatmul.f32.gmra.mxu0 %v1494
        %v1656 = vpop.f32.mrf.mxu0
        %v1657 = vadd.f32 0.0, %v1656
        %1658 = vdwg.mxu0
        %1659 = vmatpush.msra.mxu0 0.0
        %1660 = vmatpush.msra.mxu0 0.0
        %1661 = vmatpush.msra.mxu0 0.0
        %1662 = vmatpush.msra.mxu0 0.0
        %1663 = vmatpush.msra.mxu0 0.0
        %1664 = vmatpush.msra.mxu0 0.0
        %1665 = vmatpush.msra.mxu0 0.0
        %1666 = vmatpush.msra.mxu0 0.0
        %1667 = vmatpush.msra.mxu0 0.0
        %1668 = vmatpush.msra.mxu0 0.0
        %1669 = vmatpush.msra.mxu0 0.0
        %1670 = vmatpush.msra.mxu0 0.0
        %1671 = vmatpush.msra.mxu0 0.0
        %1672 = vmatpush.msra.mxu0 0.0
        %1673 = vmatpush.msra.mxu0 %v1512
        %1674 = vmatpush.msra.mxu0 %v1149
        %1675 = vmatmul.f32.gmra.mxu0 %v1491
        %v1676 = vpop.f32.mrf.mxu0
        %v1677 = vadd.f32 0.0, %v1676
        %1678 = vmatmul.f32.gmra.mxu0 %v1494
        %v1679 = vpop.f32.mrf.mxu0
        %v1680 = vadd.f32 0.0, %v1679
        %1681 = vdwg.mxu0
        %1682 = vmatpush.msra.mxu0 0.0
        %1683 = vmatpush.msra.mxu0 0.0
        %1684 = vmatpush.msra.mxu0 0.0
        %1685 = vmatpush.msra.mxu0 0.0
        %1686 = vmatpush.msra.mxu0 0.0
        %1687 = vmatpush.msra.mxu0 0.0
        %1688 = vmatpush.msra.mxu0 0.0
        %1689 = vmatpush.msra.mxu0 0.0
        %1690 = vmatpush.msra.mxu0 0.0
        %1691 = vmatpush.msra.mxu0 0.0
        %1692 = vmatpush.msra.mxu0 0.0
        %1693 = vmatpush.msra.mxu0 0.0
        %1694 = vmatpush.msra.mxu0 0.0
        %1695 = vmatpush.msra.mxu0 0.0
        %1696 = vmatpush.msra.mxu0 %v1515
        %1697 = vmatpush.msra.mxu0 %v1151
        %1698 = vmatmul.f32.gmra.mxu0 %v1491
        %v1699 = vpop.f32.mrf.mxu0
        %v1700 = vadd.f32 0.0, %v1699
        %1701 = vmatmul.f32.gmra.mxu0 %v1494
        %v1702 = vpop.f32.mrf.mxu0
        %v1703 = vadd.f32 0.0, %v1702
        %1704 = vdwg.mxu0
        %1705 = vmatpush.msra.mxu0 0.0
        %1706 = vmatpush.msra.mxu0 0.0
        %1707 = vmatpush.msra.mxu0 0.0
        %1708 = vmatpush.msra.mxu0 0.0
        %1709 = vmatpush.msra.mxu0 0.0
        %1710 = vmatpush.msra.mxu0 0.0
        %1711 = vmatpush.msra.mxu0 0.0
        %1712 = vmatpush.msra.mxu0 0.0
        %1713 = vmatpush.msra.mxu0 0.0
        %1714 = vmatpush.msra.mxu0 0.0
        %1715 = vmatpush.msra.mxu0 0.0
        %1716 = vmatpush.msra.mxu0 0.0
        %1717 = vmatpush.msra.mxu0 0.0
        %1718 = vmatpush.msra.mxu0 0.0
        %1719 = vmatpush.msra.mxu0 %v1518
        %1720 = vmatpush.msra.mxu0 %v1153
        %1721 = vmatmul.f32.gmra.mxu0 %v1491
        %v1722 = vpop.f32.mrf.mxu0
        %v1723 = vadd.f32 0.0, %v1722
        %1724 = vmatmul.f32.gmra.mxu0 %v1494
        %v1725 = vpop.f32.mrf.mxu0
        %v1726 = vadd.f32 0.0, %v1725
        %1727 = vdwg.mxu0
        %1728 = vmatpush.msra.mxu0 0.0
        %1729 = vmatpush.msra.mxu0 0.0
        %1730 = vmatpush.msra.mxu0 0.0
        %1731 = vmatpush.msra.mxu0 0.0
        %1732 = vmatpush.msra.mxu0 0.0
        %1733 = vmatpush.msra.mxu0 0.0
        %1734 = vmatpush.msra.mxu0 0.0
        %1735 = vmatpush.msra.mxu0 0.0
        %1736 = vmatpush.msra.mxu0 0.0
        %1737 = vmatpush.msra.mxu0 0.0
        %1738 = vmatpush.msra.mxu0 0.0
        %1739 = vmatpush.msra.mxu0 0.0
        %1740 = vmatpush.msra.mxu0 0.0
        %1741 = vmatpush.msra.mxu0 0.0
        %1742 = vmatpush.msra.mxu0 %v1521
        %1743 = vmatpush.msra.mxu0 %v1361
        %1744 = vmatmul.f32.gmra.mxu0 %v1491
        %v1745 = vpop.f32.mrf.mxu0
        %v1746 = vadd.f32 0.0, %v1745
        %1747 = vmatmul.f32.gmra.mxu0 %v1494
        %v1748 = vpop.f32.mrf.mxu0
        %v1749 = vadd.f32 0.0, %v1748
        %1750 = vdwg.mxu0
        %1751 = vmatpush.msra.mxu0 0.0
        %1752 = vmatpush.msra.mxu0 0.0
        %1753 = vmatpush.msra.mxu0 0.0
        %1754 = vmatpush.msra.mxu0 0.0
        %1755 = vmatpush.msra.mxu0 0.0
        %1756 = vmatpush.msra.mxu0 0.0
        %1757 = vmatpush.msra.mxu0 0.0
        %1758 = vmatpush.msra.mxu0 0.0
        %1759 = vmatpush.msra.mxu0 0.0
        %1760 = vmatpush.msra.mxu0 0.0
        %1761 = vmatpush.msra.mxu0 0.0
        %1762 = vmatpush.msra.mxu0 0.0
        %1763 = vmatpush.msra.mxu0 0.0
        %1764 = vmatpush.msra.mxu0 0.0
        %1765 = vmatpush.msra.mxu0 %v1524
        %1766 = vmatpush.msra.mxu0 %v1363
        %1767 = vmatmul.f32.gmra.mxu0 %v1491
        %v1768 = vpop.f32.mrf.mxu0
        %v1769 = vadd.f32 0.0, %v1768
        %1770 = vmatmul.f32.gmra.mxu0 %v1494
        %v1771 = vpop.f32.mrf.mxu0
        %v1772 = vadd.f32 0.0, %v1771
        %1773 = vdwg.mxu0
        %1774 = vmatpush.msra.mxu0 0.0
        %1775 = vmatpush.msra.mxu0 0.0
        %1776 = vmatpush.msra.mxu0 0.0
        %1777 = vmatpush.msra.mxu0 0.0
        %1778 = vmatpush.msra.mxu0 0.0
        %1779 = vmatpush.msra.mxu0 0.0
        %1780 = vmatpush.msra.mxu0 0.0
        %1781 = vmatpush.msra.mxu0 0.0
        %1782 = vmatpush.msra.mxu0 0.0
        %1783 = vmatpush.msra.mxu0 0.0
        %1784 = vmatpush.msra.mxu0 0.0
        %1785 = vmatpush.msra.mxu0 0.0
        %1786 = vmatpush.msra.mxu0 0.0
        %1787 = vmatpush.msra.mxu0 0.0
        %1788 = vmatpush.msra.mxu0 %v1527
        %1789 = vmatpush.msra.mxu0 %v1365
        %1790 = vmatmul.f32.gmra.mxu0 %v1491
        %v1791 = vpop.f32.mrf.mxu0
        %v1792 = vadd.f32 0.0, %v1791
        %1793 = vmatmul.f32.gmra.mxu0 %v1494
        %v1794 = vpop.f32.mrf.mxu0
        %v1795 = vadd.f32 0.0, %v1794
        %1796 = vdwg.mxu0
        %1797 = vmatpush.msra.mxu0 0.0
        %1798 = vmatpush.msra.mxu0 0.0
        %1799 = vmatpush.msra.mxu0 0.0
        %1800 = vmatpush.msra.mxu0 0.0
        %1801 = vmatpush.msra.mxu0 0.0
        %1802 = vmatpush.msra.mxu0 0.0
        %1803 = vmatpush.msra.mxu0 0.0
        %1804 = vmatpush.msra.mxu0 0.0
        %1805 = vmatpush.msra.mxu0 0.0
        %1806 = vmatpush.msra.mxu0 0.0
        %1807 = vmatpush.msra.mxu0 0.0
        %1808 = vmatpush.msra.mxu0 0.0
        %1809 = vmatpush.msra.mxu0 0.0
        %1810 = vmatpush.msra.mxu0 0.0
        %1811 = vmatpush.msra.mxu0 %v1530
        %1812 = vmatpush.msra.mxu0 %v1367
        %1813 = vmatmul.f32.gmra.mxu0 %v1491
        %v1814 = vpop.f32.mrf.mxu0
        %v1815 = vadd.f32 0.0, %v1814
        %1816 = vmatmul.f32.gmra.mxu0 %v1494
        %v1817 = vpop.f32.mrf.mxu0
        %v1818 = vadd.f32 0.0, %v1817
        %1819 = vdwg.mxu0
        %1820 = vmatpush.msra.mxu0 0.0
        %1821 = vmatpush.msra.mxu0 0.0
        %1822 = vmatpush.msra.mxu0 0.0
        %1823 = vmatpush.msra.mxu0 0.0
        %1824 = vmatpush.msra.mxu0 0.0
        %1825 = vmatpush.msra.mxu0 0.0
        %1826 = vmatpush.msra.mxu0 0.0
        %1827 = vmatpush.msra.mxu0 0.0
        %1828 = vmatpush.msra.mxu0 0.0
        %1829 = vmatpush.msra.mxu0 0.0
        %1830 = vmatpush.msra.mxu0 0.0
        %1831 = vmatpush.msra.mxu0 0.0
        %1832 = vmatpush.msra.mxu0 0.0
        %1833 = vmatpush.msra.mxu0 0.0
        %1834 = vmatpush.msra.mxu0 %v1533
        %1835 = vmatpush.msra.mxu0 %v1369
        %1836 = vmatmul.f32.gmra.mxu0 %v1491
        %v1837 = vpop.f32.mrf.mxu0
        %v1838 = vadd.f32 0.0, %v1837
        %1839 = vmatmul.f32.gmra.mxu0 %v1494
        %v1840 = vpop.f32.mrf.mxu0
        %v1841 = vadd.f32 0.0, %v1840
        %1842 = vdwg.mxu0
        %1843 = vmatpush.msra.mxu0 0.0
        %1844 = vmatpush.msra.mxu0 0.0
        %1845 = vmatpush.msra.mxu0 0.0
        %1846 = vmatpush.msra.mxu0 0.0
        %1847 = vmatpush.msra.mxu0 0.0
        %1848 = vmatpush.msra.mxu0 0.0
        %1849 = vmatpush.msra.mxu0 0.0
        %1850 = vmatpush.msra.mxu0 0.0
        %1851 = vmatpush.msra.mxu0 0.0
        %1852 = vmatpush.msra.mxu0 0.0
        %1853 = vmatpush.msra.mxu0 0.0
        %1854 = vmatpush.msra.mxu0 0.0
        %1855 = vmatpush.msra.mxu0 0.0
        %1856 = vmatpush.msra.mxu0 0.0
        %1857 = vmatpush.msra.mxu0 %v1536
        %1858 = vmatpush.msra.mxu0 %v1371
        %1859 = vmatmul.f32.gmra.mxu0 %v1491
        %v1860 = vpop.f32.mrf.mxu0
        %v1861 = vadd.f32 0.0, %v1860
        %1862 = vmatmul.f32.gmra.mxu0 %v1494
        %v1863 = vpop.f32.mrf.mxu0
        %v1864 = vadd.f32 0.0, %v1863
        %1865 = vdwg.mxu0
        %1866 = vmatpush.msra.mxu0 0.0
        %1867 = vmatpush.msra.mxu0 0.0
        %1868 = vmatpush.msra.mxu0 0.0
        %1869 = vmatpush.msra.mxu0 0.0
        %1870 = vmatpush.msra.mxu0 0.0
        %1871 = vmatpush.msra.mxu0 0.0
        %1872 = vmatpush.msra.mxu0 0.0
        %1873 = vmatpush.msra.mxu0 0.0
        %1874 = vmatpush.msra.mxu0 0.0
        %1875 = vmatpush.msra.mxu0 0.0
        %1876 = vmatpush.msra.mxu0 0.0
        %1877 = vmatpush.msra.mxu0 0.0
        %1878 = vmatpush.msra.mxu0 0.0
        %1879 = vmatpush.msra.mxu0 0.0
        %1880 = vmatpush.msra.mxu0 %v1539
        %1881 = vmatpush.msra.mxu0 %v1373
        %1882 = vmatmul.f32.gmra.mxu0 %v1491
        %v1883 = vpop.f32.mrf.mxu0
        %v1884 = vadd.f32 0.0, %v1883
        %1885 = vmatmul.f32.gmra.mxu0 %v1494
        %v1886 = vpop.f32.mrf.mxu0
        %v1887 = vadd.f32 0.0, %v1886
        %1888 = vdwg.mxu0
        %1889 = vmatpush.msra.mxu0 0.0
        %1890 = vmatpush.msra.mxu0 0.0
        %1891 = vmatpush.msra.mxu0 0.0
        %1892 = vmatpush.msra.mxu0 0.0
        %1893 = vmatpush.msra.mxu0 0.0
        %1894 = vmatpush.msra.mxu0 0.0
        %1895 = vmatpush.msra.mxu0 0.0
        %1896 = vmatpush.msra.mxu0 0.0
        %1897 = vmatpush.msra.mxu0 0.0
        %1898 = vmatpush.msra.mxu0 0.0
        %1899 = vmatpush.msra.mxu0 0.0
        %1900 = vmatpush.msra.mxu0 0.0
        %1901 = vmatpush.msra.mxu0 0.0
        %1902 = vmatpush.msra.mxu0 0.0
        %1903 = vmatpush.msra.mxu0 %v1542
        %1904 = vmatpush.msra.mxu0 %v1375
        %1905 = vmatmul.f32.gmra.mxu0 %v1491
        %v1906 = vpop.f32.mrf.mxu0
        %v1907 = vadd.f32 0.0, %v1906
        %1908 = vmatmul.f32.gmra.mxu0 %v1494
        %v1909 = vpop.f32.mrf.mxu0
        %v1910 = vadd.f32 0.0, %v1909
        %1911 = vdwg.mxu0
        %v1913 = vsel %vm1489, %v790, 0
        %v1916 = vsel %vm1489, %v791, 0
        %v1919 = vsel %vm936, %v553, 0
        %v1922 = vsel %vm936, %v555, 0
        %v1925 = vsel %vm936, %v557, 0
        %v1928 = vsel %vm936, %v559, 0
        %v1931 = vsel %vm936, %v561, 0
        %v1934 = vsel %vm936, %v563, 0
        %v1937 = vsel %vm936, %v565, 0
        %v1940 = vsel %vm936, %v567, 0
        %v1943 = vsel %vm936, %v775, 0
        %v1946 = vsel %vm936, %v777, 0
        %v1949 = vsel %vm936, %v779, 0
        %v1952 = vsel %vm936, %v781, 0
        %v1955 = vsel %vm936, %v783, 0
        %v1958 = vsel %vm936, %v785, 0
        %v1961 = vsel %vm936, %v787, 0
        %v1964 = vsel %vm936, %v789, 0
        %1966 = vmatpush.msra.mxu0 0.0
        %1967 = vmatpush.msra.mxu0 0.0
        %1968 = vmatpush.msra.mxu0 0.0
        %1969 = vmatpush.msra.mxu0 0.0
        %1970 = vmatpush.msra.mxu0 0.0
        %1971 = vmatpush.msra.mxu0 0.0
        %1972 = vmatpush.msra.mxu0 0.0
        %1973 = vmatpush.msra.mxu0 0.0
        %1974 = vmatpush.msra.mxu0 0.0
        %1975 = vmatpush.msra.mxu0 0.0
        %1976 = vmatpush.msra.mxu0 0.0
        %1977 = vmatpush.msra.mxu0 0.0
        %1978 = vmatpush.msra.mxu0 0.0
        %1979 = vmatpush.msra.mxu0 0.0
        %1980 = vmatpush.msra.mxu0 %v1919
        %1981 = vmatpush.msra.mxu0 %v443
        %1982 = vmatmul.f32.gmra.mxu0 %v1913
        %v1983 = vpop.f32.mrf.mxu0
        %v1984 = vadd.f32 %v1562, %v1983
        %1985 = vmatmul.f32.gmra.mxu0 %v1916
        %v1986 = vpop.f32.mrf.mxu0
        %v1987 = vadd.f32 %v1565, %v1986
        %1988 = vdwg.mxu0
        %1989 = vmatpush.msra.mxu0 0.0
        %1990 = vmatpush.msra.mxu0 0.0
        %1991 = vmatpush.msra.mxu0 0.0
        %1992 = vmatpush.msra.mxu0 0.0
        %1993 = vmatpush.msra.mxu0 0.0
        %1994 = vmatpush.msra.mxu0 0.0
        %1995 = vmatpush.msra.mxu0 0.0
        %1996 = vmatpush.msra.mxu0 0.0
        %1997 = vmatpush.msra.mxu0 0.0
        %1998 = vmatpush.msra.mxu0 0.0
        %1999 = vmatpush.msra.mxu0 0.0
        %2000 = vmatpush.msra.mxu0 0.0
        %2001 = vmatpush.msra.mxu0 0.0
        %2002 = vmatpush.msra.mxu0 0.0
        %2003 = vmatpush.msra.mxu0 %v1922
        %2004 = vmatpush.msra.mxu0 %v445
        %2005 = vmatmul.f32.gmra.mxu0 %v1913
        %v2006 = vpop.f32.mrf.mxu0
        %v2007 = vadd.f32 %v1585, %v2006
        %2008 = vmatmul.f32.gmra.mxu0 %v1916
        %v2009 = vpop.f32.mrf.mxu0
        %v2010 = vadd.f32 %v1588, %v2009
        %2011 = vdwg.mxu0
        %2012 = vmatpush.msra.mxu0 0.0
        %2013 = vmatpush.msra.mxu0 0.0
        %2014 = vmatpush.msra.mxu0 0.0
        %2015 = vmatpush.msra.mxu0 0.0
        %2016 = vmatpush.msra.mxu0 0.0
        %2017 = vmatpush.msra.mxu0 0.0
        %2018 = vmatpush.msra.mxu0 0.0
        %2019 = vmatpush.msra.mxu0 0.0
        %2020 = vmatpush.msra.mxu0 0.0
        %2021 = vmatpush.msra.mxu0 0.0
        %2022 = vmatpush.msra.mxu0 0.0
        %2023 = vmatpush.msra.mxu0 0.0
        %2024 = vmatpush.msra.mxu0 0.0
        %2025 = vmatpush.msra.mxu0 0.0
        %2026 = vmatpush.msra.mxu0 %v1925
        %2027 = vmatpush.msra.mxu0 %v447
        %2028 = vmatmul.f32.gmra.mxu0 %v1913
        %v2029 = vpop.f32.mrf.mxu0
        %v2030 = vadd.f32 %v1608, %v2029
        %2031 = vmatmul.f32.gmra.mxu0 %v1916
        %v2032 = vpop.f32.mrf.mxu0
        %v2033 = vadd.f32 %v1611, %v2032
        %2034 = vdwg.mxu0
        %2035 = vmatpush.msra.mxu0 0.0
        %2036 = vmatpush.msra.mxu0 0.0
        %2037 = vmatpush.msra.mxu0 0.0
        %2038 = vmatpush.msra.mxu0 0.0
        %2039 = vmatpush.msra.mxu0 0.0
        %2040 = vmatpush.msra.mxu0 0.0
        %2041 = vmatpush.msra.mxu0 0.0
        %2042 = vmatpush.msra.mxu0 0.0
        %2043 = vmatpush.msra.mxu0 0.0
        %2044 = vmatpush.msra.mxu0 0.0
        %2045 = vmatpush.msra.mxu0 0.0
        %2046 = vmatpush.msra.mxu0 0.0
        %2047 = vmatpush.msra.mxu0 0.0
        %2048 = vmatpush.msra.mxu0 0.0
        %2049 = vmatpush.msra.mxu0 %v1928
        %2050 = vmatpush.msra.mxu0 %v449
        %2051 = vmatmul.f32.gmra.mxu0 %v1913
        %v2052 = vpop.f32.mrf.mxu0
        %v2053 = vadd.f32 %v1631, %v2052
        %2054 = vmatmul.f32.gmra.mxu0 %v1916
        %v2055 = vpop.f32.mrf.mxu0
        %v2056 = vadd.f32 %v1634, %v2055
        %2057 = vdwg.mxu0
        %2058 = vmatpush.msra.mxu0 0.0
        %2059 = vmatpush.msra.mxu0 0.0
        %2060 = vmatpush.msra.mxu0 0.0
        %2061 = vmatpush.msra.mxu0 0.0
        %2062 = vmatpush.msra.mxu0 0.0
        %2063 = vmatpush.msra.mxu0 0.0
        %2064 = vmatpush.msra.mxu0 0.0
        %2065 = vmatpush.msra.mxu0 0.0
        %2066 = vmatpush.msra.mxu0 0.0
        %2067 = vmatpush.msra.mxu0 0.0
        %2068 = vmatpush.msra.mxu0 0.0
        %2069 = vmatpush.msra.mxu0 0.0
        %2070 = vmatpush.msra.mxu0 0.0
        %2071 = vmatpush.msra.mxu0 0.0
        %2072 = vmatpush.msra.mxu0 %v1931
        %2073 = vmatpush.msra.mxu0 %v451
        %2074 = vmatmul.f32.gmra.mxu0 %v1913
        %v2075 = vpop.f32.mrf.mxu0
        %v2076 = vadd.f32 %v1654, %v2075
        %2077 = vmatmul.f32.gmra.mxu0 %v1916
        %v2078 = vpop.f32.mrf.mxu0
        %v2079 = vadd.f32 %v1657, %v2078
        %2080 = vdwg.mxu0
        %2081 = vmatpush.msra.mxu0 0.0
        %2082 = vmatpush.msra.mxu0 0.0
        %2083 = vmatpush.msra.mxu0 0.0
        %2084 = vmatpush.msra.mxu0 0.0
        %2085 = vmatpush.msra.mxu0 0.0
        %2086 = vmatpush.msra.mxu0 0.0
        %2087 = vmatpush.msra.mxu0 0.0
        %2088 = vmatpush.msra.mxu0 0.0
        %2089 = vmatpush.msra.mxu0 0.0
        %2090 = vmatpush.msra.mxu0 0.0
        %2091 = vmatpush.msra.mxu0 0.0
        %2092 = vmatpush.msra.mxu0 0.0
        %2093 = vmatpush.msra.mxu0 0.0
        %2094 = vmatpush.msra.mxu0 0.0
        %2095 = vmatpush.msra.mxu0 %v1934
        %2096 = vmatpush.msra.mxu0 %v453
        %2097 = vmatmul.f32.gmra.mxu0 %v1913
        %v2098 = vpop.f32.mrf.mxu0
        %v2099 = vadd.f32 %v1677, %v2098
        %2100 = vmatmul.f32.gmra.mxu0 %v1916
        %v2101 = vpop.f32.mrf.mxu0
        %v2102 = vadd.f32 %v1680, %v2101
        %2103 = vdwg.mxu0
        %2104 = vmatpush.msra.mxu0 0.0
        %2105 = vmatpush.msra.mxu0 0.0
        %2106 = vmatpush.msra.mxu0 0.0
        %2107 = vmatpush.msra.mxu0 0.0
        %2108 = vmatpush.msra.mxu0 0.0
        %2109 = vmatpush.msra.mxu0 0.0
        %2110 = vmatpush.msra.mxu0 0.0
        %2111 = vmatpush.msra.mxu0 0.0
        %2112 = vmatpush.msra.mxu0 0.0
        %2113 = vmatpush.msra.mxu0 0.0
        %2114 = vmatpush.msra.mxu0 0.0
        %2115 = vmatpush.msra.mxu0 0.0
        %2116 = vmatpush.msra.mxu0 0.0
        %2117 = vmatpush.msra.mxu0 0.0
        %2118 = vmatpush.msra.mxu0 %v1937
        %2119 = vmatpush.msra.mxu0 %v455
        %2120 = vmatmul.f32.gmra.mxu0 %v1913
        %v2121 = vpop.f32.mrf.mxu0
        %v2122 = vadd.f32 %v1700, %v2121
        %2123 = vmatmul.f32.gmra.mxu0 %v1916
        %v2124 = vpop.f32.mrf.mxu0
        %v2125 = vadd.f32 %v1703, %v2124
        %2126 = vdwg.mxu0
        %2127 = vmatpush.msra.mxu0 0.0
        %2128 = vmatpush.msra.mxu0 0.0
        %2129 = vmatpush.msra.mxu0 0.0
        %2130 = vmatpush.msra.mxu0 0.0
        %2131 = vmatpush.msra.mxu0 0.0
        %2132 = vmatpush.msra.mxu0 0.0
        %2133 = vmatpush.msra.mxu0 0.0
        %2134 = vmatpush.msra.mxu0 0.0
        %2135 = vmatpush.msra.mxu0 0.0
        %2136 = vmatpush.msra.mxu0 0.0
        %2137 = vmatpush.msra.mxu0 0.0
        %2138 = vmatpush.msra.mxu0 0.0
        %2139 = vmatpush.msra.mxu0 0.0
        %2140 = vmatpush.msra.mxu0 0.0
        %2141 = vmatpush.msra.mxu0 %v1940
        %2142 = vmatpush.msra.mxu0 %v457
        %2143 = vmatmul.f32.gmra.mxu0 %v1913
        %v2144 = vpop.f32.mrf.mxu0
        %v2145 = vadd.f32 %v1723, %v2144
        %2146 = vmatmul.f32.gmra.mxu0 %v1916
        %v2147 = vpop.f32.mrf.mxu0
        %v2148 = vadd.f32 %v1726, %v2147
        %2149 = vdwg.mxu0
        %2150 = vmatpush.msra.mxu0 0.0
        %2151 = vmatpush.msra.mxu0 0.0
        %2152 = vmatpush.msra.mxu0 0.0
        %2153 = vmatpush.msra.mxu0 0.0
        %2154 = vmatpush.msra.mxu0 0.0
        %2155 = vmatpush.msra.mxu0 0.0
        %2156 = vmatpush.msra.mxu0 0.0
        %2157 = vmatpush.msra.mxu0 0.0
        %2158 = vmatpush.msra.mxu0 0.0
        %2159 = vmatpush.msra.mxu0 0.0
        %2160 = vmatpush.msra.mxu0 0.0
        %2161 = vmatpush.msra.mxu0 0.0
        %2162 = vmatpush.msra.mxu0 0.0
        %2163 = vmatpush.msra.mxu0 0.0
        %2164 = vmatpush.msra.mxu0 %v1943
        %2165 = vmatpush.msra.mxu0 %v665
        %2166 = vmatmul.f32.gmra.mxu0 %v1913
        %v2167 = vpop.f32.mrf.mxu0
        %v2168 = vadd.f32 %v1746, %v2167
        %2169 = vmatmul.f32.gmra.mxu0 %v1916
        %v2170 = vpop.f32.mrf.mxu0
        %v2171 = vadd.f32 %v1749, %v2170
        %2172 = vdwg.mxu0
        %2173 = vmatpush.msra.mxu0 0.0
        %2174 = vmatpush.msra.mxu0 0.0
        %2175 = vmatpush.msra.mxu0 0.0
        %2176 = vmatpush.msra.mxu0 0.0
        %2177 = vmatpush.msra.mxu0 0.0
        %2178 = vmatpush.msra.mxu0 0.0
        %2179 = vmatpush.msra.mxu0 0.0
        %2180 = vmatpush.msra.mxu0 0.0
        %2181 = vmatpush.msra.mxu0 0.0
        %2182 = vmatpush.msra.mxu0 0.0
        %2183 = vmatpush.msra.mxu0 0.0
        %2184 = vmatpush.msra.mxu0 0.0
        %2185 = vmatpush.msra.mxu0 0.0
        %2186 = vmatpush.msra.mxu0 0.0
        %2187 = vmatpush.msra.mxu0 %v1946
        %2188 = vmatpush.msra.mxu0 %v667
        %2189 = vmatmul.f32.gmra.mxu0 %v1913
        %v2190 = vpop.f32.mrf.mxu0
        %v2191 = vadd.f32 %v1769, %v2190
        %2192 = vmatmul.f32.gmra.mxu0 %v1916
        %v2193 = vpop.f32.mrf.mxu0
        %v2194 = vadd.f32 %v1772, %v2193
        %2195 = vdwg.mxu0
        %2196 = vmatpush.msra.mxu0 0.0
        %2197 = vmatpush.msra.mxu0 0.0
        %2198 = vmatpush.msra.mxu0 0.0
        %2199 = vmatpush.msra.mxu0 0.0
        %2200 = vmatpush.msra.mxu0 0.0
        %2201 = vmatpush.msra.mxu0 0.0
        %2202 = vmatpush.msra.mxu0 0.0
        %2203 = vmatpush.msra.mxu0 0.0
        %2204 = vmatpush.msra.mxu0 0.0
        %2205 = vmatpush.msra.mxu0 0.0
        %2206 = vmatpush.msra.mxu0 0.0
        %2207 = vmatpush.msra.mxu0 0.0
        %2208 = vmatpush.msra.mxu0 0.0
        %2209 = vmatpush.msra.mxu0 0.0
        %2210 = vmatpush.msra.mxu0 %v1949
        %2211 = vmatpush.msra.mxu0 %v669
        %2212 = vmatmul.f32.gmra.mxu0 %v1913
        %v2213 = vpop.f32.mrf.mxu0
        %v2214 = vadd.f32 %v1792, %v2213
        %2215 = vmatmul.f32.gmra.mxu0 %v1916
        %v2216 = vpop.f32.mrf.mxu0
        %v2217 = vadd.f32 %v1795, %v2216
        %2218 = vdwg.mxu0
        %2219 = vmatpush.msra.mxu0 0.0
        %2220 = vmatpush.msra.mxu0 0.0
        %2221 = vmatpush.msra.mxu0 0.0
        %2222 = vmatpush.msra.mxu0 0.0
        %2223 = vmatpush.msra.mxu0 0.0
        %2224 = vmatpush.msra.mxu0 0.0
        %2225 = vmatpush.msra.mxu0 0.0
        %2226 = vmatpush.msra.mxu0 0.0
        %2227 = vmatpush.msra.mxu0 0.0
        %2228 = vmatpush.msra.mxu0 0.0
        %2229 = vmatpush.msra.mxu0 0.0
        %2230 = vmatpush.msra.mxu0 0.0
        %2231 = vmatpush.msra.mxu0 0.0
        %2232 = vmatpush.msra.mxu0 0.0
        %2233 = vmatpush.msra.mxu0 %v1952
        %2234 = vmatpush.msra.mxu0 %v671
        %2235 = vmatmul.f32.gmra.mxu0 %v1913
        %v2236 = vpop.f32.mrf.mxu0
        %v2237 = vadd.f32 %v1815, %v2236
        %2238 = vmatmul.f32.gmra.mxu0 %v1916
        %v2239 = vpop.f32.mrf.mxu0
        %v2240 = vadd.f32 %v1818, %v2239
        %2241 = vdwg.mxu0
        %2242 = vmatpush.msra.mxu0 0.0
        %2243 = vmatpush.msra.mxu0 0.0
        %2244 = vmatpush.msra.mxu0 0.0
        %2245 = vmatpush.msra.mxu0 0.0
        %2246 = vmatpush.msra.mxu0 0.0
        %2247 = vmatpush.msra.mxu0 0.0
        %2248 = vmatpush.msra.mxu0 0.0
        %2249 = vmatpush.msra.mxu0 0.0
        %2250 = vmatpush.msra.mxu0 0.0
        %2251 = vmatpush.msra.mxu0 0.0
        %2252 = vmatpush.msra.mxu0 0.0
        %2253 = vmatpush.msra.mxu0 0.0
        %2254 = vmatpush.msra.mxu0 0.0
        %2255 = vmatpush.msra.mxu0 0.0
        %2256 = vmatpush.msra.mxu0 %v1955
        %2257 = vmatpush.msra.mxu0 %v673
        %2258 = vmatmul.f32.gmra.mxu0 %v1913
        %v2259 = vpop.f32.mrf.mxu0
        %v2260 = vadd.f32 %v1838, %v2259
        %2261 = vmatmul.f32.gmra.mxu0 %v1916
        %v2262 = vpop.f32.mrf.mxu0
        %v2263 = vadd.f32 %v1841, %v2262
        %2264 = vdwg.mxu0
        %2265 = vmatpush.msra.mxu0 0.0
        %2266 = vmatpush.msra.mxu0 0.0
        %2267 = vmatpush.msra.mxu0 0.0
        %2268 = vmatpush.msra.mxu0 0.0
        %2269 = vmatpush.msra.mxu0 0.0
        %2270 = vmatpush.msra.mxu0 0.0
        %2271 = vmatpush.msra.mxu0 0.0
        %2272 = vmatpush.msra.mxu0 0.0
        %2273 = vmatpush.msra.mxu0 0.0
        %2274 = vmatpush.msra.mxu0 0.0
        %2275 = vmatpush.msra.mxu0 0.0
        %2276 = vmatpush.msra.mxu0 0.0
        %2277 = vmatpush.msra.mxu0 0.0
        %2278 = vmatpush.msra.mxu0 0.0
        %2279 = vmatpush.msra.mxu0 %v1958
        %2280 = vmatpush.msra.mxu0 %v675
        %2281 = vmatmul.f32.gmra.mxu0 %v1913
        %v2282 = vpop.f32.mrf.mxu0
        %v2283 = vadd.f32 %v1861, %v2282
        %2284 = vmatmul.f32.gmra.mxu0 %v1916
        %v2285 = vpop.f32.mrf.mxu0
        %v2286 = vadd.f32 %v1864, %v2285
        %2287 = vdwg.mxu0
        %2288 = vmatpush.msra.mxu0 0.0
        %2289 = vmatpush.msra.mxu0 0.0
        %2290 = vmatpush.msra.mxu0 0.0
        %2291 = vmatpush.msra.mxu0 0.0
        %2292 = vmatpush.msra.mxu0 0.0
        %2293 = vmatpush.msra.mxu0 0.0
        %2294 = vmatpush.msra.mxu0 0.0
        %2295 = vmatpush.msra.mxu0 0.0
        %2296 = vmatpush.msra.mxu0 0.0
        %2297 = vmatpush.msra.mxu0 0.0
        %2298 = vmatpush.msra.mxu0 0.0
        %2299 = vmatpush.msra.mxu0 0.0
        %2300 = vmatpush.msra.mxu0 0.0
        %2301 = vmatpush.msra.mxu0 0.0
        %2302 = vmatpush.msra.mxu0 %v1961
        %2303 = vmatpush.msra.mxu0 %v677
        %2304 = vmatmul.f32.gmra.mxu0 %v1913
        %v2305 = vpop.f32.mrf.mxu0
        %v2306 = vadd.f32 %v1884, %v2305
        %2307 = vmatmul.f32.gmra.mxu0 %v1916
        %v2308 = vpop.f32.mrf.mxu0
        %v2309 = vadd.f32 %v1887, %v2308
        %2310 = vdwg.mxu0
        %2311 = vmatpush.msra.mxu0 0.0
        %2312 = vmatpush.msra.mxu0 0.0
        %2313 = vmatpush.msra.mxu0 0.0
        %2314 = vmatpush.msra.mxu0 0.0
        %2315 = vmatpush.msra.mxu0 0.0
        %2316 = vmatpush.msra.mxu0 0.0
        %2317 = vmatpush.msra.mxu0 0.0
        %2318 = vmatpush.msra.mxu0 0.0
        %2319 = vmatpush.msra.mxu0 0.0
        %2320 = vmatpush.msra.mxu0 0.0
        %2321 = vmatpush.msra.mxu0 0.0
        %2322 = vmatpush.msra.mxu0 0.0
        %2323 = vmatpush.msra.mxu0 0.0
        %2324 = vmatpush.msra.mxu0 0.0
        %2325 = vmatpush.msra.mxu0 %v1964
        %2326 = vmatpush.msra.mxu0 %v679
        %2327 = vmatmul.f32.gmra.mxu0 %v1913
        %v2328 = vpop.f32.mrf.mxu0
        %v2329 = vadd.f32 %v1907, %v2328
        %2330 = vmatmul.f32.gmra.mxu0 %v1916
        %v2331 = vpop.f32.mrf.mxu0
        %v2332 = vadd.f32 %v1910, %v2331
        %2333 = vdwg.mxu0
        %v2334 = vld [vmem:[%s169] sm:$0xfc]
        %v2335 = vld [vmem:[%s169 + $0x10] sm:$0xff]
        %v2336 = vld [vmem:[%s169 + $0x20] sm:$0x3]
        %v2337 = vld [vmem:[%s169 + $0x8] sm:$0xfc]
        %v2338 = vld [vmem:[%s169 + $0x18] sm:$0xff]
        %v2339 = vld [vmem:[%s169 + $0x28] sm:$0x3]
        %v2340 = vld [vmem:[%s175] sm:$0xfc]
        %v2341 = vld [vmem:[%s175 + $0x10] sm:$0xff]
        %v2342 = vld [vmem:[%s175 + $0x20] sm:$0x3]
        %v2343 = vld [vmem:[%s175 + $0x8] sm:$0xfc]
        %v2344 = vld [vmem:[%s175 + $0x18] sm:$0xff]
        %v2345 = vld [vmem:[%s175 + $0x28] sm:$0x3]
        %v2346 = vld [vmem:[%s180] sm:$0xfc]
        %v2347 = vld [vmem:[%s180 + $0x10] sm:$0xff]
        %v2348 = vld [vmem:[%s180 + $0x20] sm:$0x3]
        %v2349 = vld [vmem:[%s180 + $0x8] sm:$0xfc]
        %v2350 = vld [vmem:[%s180 + $0x18] sm:$0xff]
        %v2351 = vld [vmem:[%s180 + $0x28] sm:$0x3]
        %2358 = vrot.lane.b32.xlu0 %v2334, 127
        %v2359 = vpop.permute.xlu0 %2358
        %2360 = vrot.lane.b32.xlu0 %v2337, 127
        %v2361 = vpop.permute.xlu0 %2360
        %2362 = vrot.lane.b32.xlu0 %v2335, 127
        %v2363 = vpop.permute.xlu0 %2362
        %2364 = vrot.lane.b32.xlu0 %v2338, 127
        %v2365 = vpop.permute.xlu0 %2364
        %2366 = vrot.lane.b32.xlu0 %v2336, 127
        %v2367 = vpop.permute.xlu0 %2366
        %2368 = vrot.lane.b32.xlu0 %v2339, 127
        %v2369 = vpop.permute.xlu0 %2368
        %v2370 = vsel %vm197, %v2359, %v2361
        %v2371 = vsel %vm197, %v2363, %v2365
        %v2372 = vsel %vm197, %v2367, %v2369
        %2373 = vrot.lane.b32.xlu0 %v2334, 126
        %v2374 = vpop.permute.xlu0 %2373
        %2375 = vrot.lane.b32.xlu0 %v2337, 126
        %v2376 = vpop.permute.xlu0 %2375
        %2377 = vrot.lane.b32.xlu0 %v2335, 126
        %v2378 = vpop.permute.xlu0 %2377
        %2379 = vrot.lane.b32.xlu0 %v2338, 126
        %v2380 = vpop.permute.xlu0 %2379
        %2381 = vrot.lane.b32.xlu0 %v2336, 126
        %v2382 = vpop.permute.xlu0 %2381
        %2383 = vrot.lane.b32.xlu0 %v2339, 126
        %v2384 = vpop.permute.xlu0 %2383
        %v2385 = vsel %vm210, %v2374, %v2376
        %v2386 = vsel %vm210, %v2378, %v2380
        %v2387 = vsel %vm210, %v2382, %v2384
        %2388 = vrot.lane.b32.xlu0 %v2334, 125
        %v2389 = vpop.permute.xlu0 %2388
        %2390 = vrot.lane.b32.xlu0 %v2337, 125
        %v2391 = vpop.permute.xlu0 %2390
        %2392 = vrot.lane.b32.xlu0 %v2335, 125
        %v2393 = vpop.permute.xlu0 %2392
        %2394 = vrot.lane.b32.xlu0 %v2338, 125
        %v2395 = vpop.permute.xlu0 %2394
        %2396 = vrot.lane.b32.xlu0 %v2336, 125
        %v2397 = vpop.permute.xlu0 %2396
        %2398 = vrot.lane.b32.xlu0 %v2339, 125
        %v2399 = vpop.permute.xlu0 %2398
        %v2400 = vsel %vm223, %v2389, %v2391
        %v2401 = vsel %vm223, %v2393, %v2395
        %v2402 = vsel %vm223, %v2397, %v2399
        %2403 = vrot.lane.b32.xlu0 %v2334, 124
        %v2404 = vpop.permute.xlu0 %2403
        %2405 = vrot.lane.b32.xlu0 %v2337, 124
        %v2406 = vpop.permute.xlu0 %2405
        %2407 = vrot.lane.b32.xlu0 %v2335, 124
        %v2408 = vpop.permute.xlu0 %2407
        %2409 = vrot.lane.b32.xlu0 %v2338, 124
        %v2410 = vpop.permute.xlu0 %2409
        %2411 = vrot.lane.b32.xlu0 %v2336, 124
        %v2412 = vpop.permute.xlu0 %2411
        %2413 = vrot.lane.b32.xlu0 %v2339, 124
        %v2414 = vpop.permute.xlu0 %2413
        %v2415 = vsel %vm236, %v2404, %v2406
        %v2416 = vsel %vm236, %v2408, %v2410
        %v2417 = vsel %vm236, %v2412, %v2414
        %2424 = vrot.lane.b32.xlu0 %v2340, 127
        %v2425 = vpop.permute.xlu0 %2424
        %2426 = vrot.lane.b32.xlu0 %v2343, 127
        %v2427 = vpop.permute.xlu0 %2426
        %2428 = vrot.lane.b32.xlu0 %v2341, 127
        %v2429 = vpop.permute.xlu0 %2428
        %2430 = vrot.lane.b32.xlu0 %v2344, 127
        %v2431 = vpop.permute.xlu0 %2430
        %2432 = vrot.lane.b32.xlu0 %v2342, 127
        %v2433 = vpop.permute.xlu0 %2432
        %2434 = vrot.lane.b32.xlu0 %v2345, 127
        %v2435 = vpop.permute.xlu0 %2434
        %v2436 = vsel %vm197, %v2425, %v2427
        %v2437 = vsel %vm197, %v2429, %v2431
        %v2438 = vsel %vm197, %v2433, %v2435
        %2439 = vrot.lane.b32.xlu0 %v2340, 126
        %v2440 = vpop.permute.xlu0 %2439
        %2441 = vrot.lane.b32.xlu0 %v2343, 126
        %v2442 = vpop.permute.xlu0 %2441
        %2443 = vrot.lane.b32.xlu0 %v2341, 126
        %v2444 = vpop.permute.xlu0 %2443
        %2445 = vrot.lane.b32.xlu0 %v2344, 126
        %v2446 = vpop.permute.xlu0 %2445
        %2447 = vrot.lane.b32.xlu0 %v2342, 126
        %v2448 = vpop.permute.xlu0 %2447
        %2449 = vrot.lane.b32.xlu0 %v2345, 126
        %v2450 = vpop.permute.xlu0 %2449
        %v2451 = vsel %vm210, %v2440, %v2442
        %v2452 = vsel %vm210, %v2444, %v2446
        %v2453 = vsel %vm210, %v2448, %v2450
        %2454 = vrot.lane.b32.xlu0 %v2340, 125
        %v2455 = vpop.permute.xlu0 %2454
        %2456 = vrot.lane.b32.xlu0 %v2343, 125
        %v2457 = vpop.permute.xlu0 %2456
        %2458 = vrot.lane.b32.xlu0 %v2341, 125
        %v2459 = vpop.permute.xlu0 %2458
        %2460 = vrot.lane.b32.xlu0 %v2344, 125
        %v2461 = vpop.permute.xlu0 %2460
        %2462 = vrot.lane.b32.xlu0 %v2342, 125
        %v2463 = vpop.permute.xlu0 %2462
        %2464 = vrot.lane.b32.xlu0 %v2345, 125
        %v2465 = vpop.permute.xlu0 %2464
        %v2466 = vsel %vm223, %v2455, %v2457
        %v2467 = vsel %vm223, %v2459, %v2461
        %v2468 = vsel %vm223, %v2463, %v2465
        %2469 = vrot.lane.b32.xlu0 %v2340, 124
        %v2470 = vpop.permute.xlu0 %2469
        %2471 = vrot.lane.b32.xlu0 %v2343, 124
        %v2472 = vpop.permute.xlu0 %2471
        %2473 = vrot.lane.b32.xlu0 %v2341, 124
        %v2474 = vpop.permute.xlu0 %2473
        %2475 = vrot.lane.b32.xlu0 %v2344, 124
        %v2476 = vpop.permute.xlu0 %2475
        %2477 = vrot.lane.b32.xlu0 %v2342, 124
        %v2478 = vpop.permute.xlu0 %2477
        %2479 = vrot.lane.b32.xlu0 %v2345, 124
        %v2480 = vpop.permute.xlu0 %2479
        %v2481 = vsel %vm236, %v2470, %v2472
        %v2482 = vsel %vm236, %v2474, %v2476
        %v2483 = vsel %vm236, %v2478, %v2480
        %2490 = vrot.lane.b32.xlu0 %v2346, 127
        %v2491 = vpop.permute.xlu0 %2490
        %2492 = vrot.lane.b32.xlu0 %v2349, 127
        %v2493 = vpop.permute.xlu0 %2492
        %2494 = vrot.lane.b32.xlu0 %v2347, 127
        %v2495 = vpop.permute.xlu0 %2494
        %2496 = vrot.lane.b32.xlu0 %v2350, 127
        %v2497 = vpop.permute.xlu0 %2496
        %2498 = vrot.lane.b32.xlu0 %v2348, 127
        %v2499 = vpop.permute.xlu0 %2498
        %2500 = vrot.lane.b32.xlu0 %v2351, 127
        %v2501 = vpop.permute.xlu0 %2500
        %v2502 = vsel %vm197, %v2491, %v2493
        %v2503 = vsel %vm197, %v2495, %v2497
        %v2504 = vsel %vm197, %v2499, %v2501
        %2505 = vrot.lane.b32.xlu0 %v2346, 126
        %v2506 = vpop.permute.xlu0 %2505
        %2507 = vrot.lane.b32.xlu0 %v2349, 126
        %v2508 = vpop.permute.xlu0 %2507
        %2509 = vrot.lane.b32.xlu0 %v2347, 126
        %v2510 = vpop.permute.xlu0 %2509
        %2511 = vrot.lane.b32.xlu0 %v2350, 126
        %v2512 = vpop.permute.xlu0 %2511
        %2513 = vrot.lane.b32.xlu0 %v2348, 126
        %v2514 = vpop.permute.xlu0 %2513
        %2515 = vrot.lane.b32.xlu0 %v2351, 126
        %v2516 = vpop.permute.xlu0 %2515
        %v2517 = vsel %vm210, %v2506, %v2508
        %v2518 = vsel %vm210, %v2510, %v2512
        %v2519 = vsel %vm210, %v2514, %v2516
        %2520 = vrot.lane.b32.xlu0 %v2346, 125
        %v2521 = vpop.permute.xlu0 %2520
        %2522 = vrot.lane.b32.xlu0 %v2349, 125
        %v2523 = vpop.permute.xlu0 %2522
        %2524 = vrot.lane.b32.xlu0 %v2347, 125
        %v2525 = vpop.permute.xlu0 %2524
        %2526 = vrot.lane.b32.xlu0 %v2350, 125
        %v2527 = vpop.permute.xlu0 %2526
        %2528 = vrot.lane.b32.xlu0 %v2348, 125
        %v2529 = vpop.permute.xlu0 %2528
        %2530 = vrot.lane.b32.xlu0 %v2351, 125
        %v2531 = vpop.permute.xlu0 %2530
        %v2532 = vsel %vm223, %v2521, %v2523
        %v2533 = vsel %vm223, %v2525, %v2527
        %v2534 = vsel %vm223, %v2529, %v2531
        %2535 = vrot.lane.b32.xlu0 %v2346, 124
        %v2536 = vpop.permute.xlu0 %2535
        %2537 = vrot.lane.b32.xlu0 %v2349, 124
        %v2538 = vpop.permute.xlu0 %2537
        %2539 = vrot.lane.b32.xlu0 %v2347, 124
        %v2540 = vpop.permute.xlu0 %2539
        %2541 = vrot.lane.b32.xlu0 %v2350, 124
        %v2542 = vpop.permute.xlu0 %2541
        %2543 = vrot.lane.b32.xlu0 %v2348, 124
        %v2544 = vpop.permute.xlu0 %2543
        %2545 = vrot.lane.b32.xlu0 %v2351, 124
        %v2546 = vpop.permute.xlu0 %2545
        %v2547 = vsel %vm236, %v2536, %v2538
        %v2548 = vsel %vm236, %v2540, %v2542
        %v2549 = vsel %vm236, %v2544, %v2546
        %vm2550 = vcmask 1045504
        %v2551 = vrot.slane %v2334, 2
        %v2552 = vrot.slane %v2335, 2
        %v2553 = vsel %vm2550, %v2551, %v2552
        %v2554 = vrot.slane %v2336, 2
        %v2555 = vsel %vm2550, %v2552, %v2554
        %v2556 = vrot.slane %v2370, 2
        %v2557 = vrot.slane %v2371, 2
        %v2558 = vsel %vm2550, %v2556, %v2557
        %v2559 = vrot.slane %v2372, 2
        %v2560 = vsel %vm2550, %v2557, %v2559
        %v2561 = vrot.slane %v2385, 2
        %v2562 = vrot.slane %v2386, 2
        %v2563 = vsel %vm2550, %v2561, %v2562
        %v2564 = vrot.slane %v2387, 2
        %v2565 = vsel %vm2550, %v2562, %v2564
        %v2566 = vrot.slane %v2400, 2
        %v2567 = vrot.slane %v2401, 2
        %v2568 = vsel %vm2550, %v2566, %v2567
        %v2569 = vrot.slane %v2402, 2
        %v2570 = vsel %vm2550, %v2567, %v2569
        %v2571 = vrot.slane %v2415, 2
        %v2572 = vrot.slane %v2416, 2
        %v2573 = vsel %vm2550, %v2571, %v2572
        %v2574 = vrot.slane %v2417, 2
        %v2575 = vsel %vm2550, %v2572, %v2574
        %v2576 = vrot.slane %v2340, 2
        %v2577 = vrot.slane %v2341, 2
        %v2578 = vsel %vm2550, %v2576, %v2577
        %v2579 = vrot.slane %v2342, 2
        %v2580 = vsel %vm2550, %v2577, %v2579
        %v2581 = vrot.slane %v2436, 2
        %v2582 = vrot.slane %v2437, 2
        %v2583 = vsel %vm2550, %v2581, %v2582
        %v2584 = vrot.slane %v2438, 2
        %v2585 = vsel %vm2550, %v2582, %v2584
        %v2586 = vrot.slane %v2451, 2
        %v2587 = vrot.slane %v2452, 2
        %v2588 = vsel %vm2550, %v2586, %v2587
        %v2589 = vrot.slane %v2453, 2
        %v2590 = vsel %vm2550, %v2587, %v2589
        %v2591 = vrot.slane %v2466, 2
        %v2592 = vrot.slane %v2467, 2
        %v2593 = vsel %vm2550, %v2591, %v2592
        %v2594 = vrot.slane %v2468, 2
        %v2595 = vsel %vm2550, %v2592, %v2594
        %v2596 = vrot.slane %v2481, 2
        %v2597 = vrot.slane %v2482, 2
        %v2598 = vsel %vm2550, %v2596, %v2597
        %v2599 = vrot.slane %v2483, 2
        %v2600 = vsel %vm2550, %v2597, %v2599
        %v2601 = vrot.slane %v2346, 2
        %v2602 = vrot.slane %v2347, 2
        %v2603 = vsel %vm2550, %v2601, %v2602
        %v2604 = vrot.slane %v2348, 2
        %v2605 = vsel %vm2550, %v2602, %v2604
        %v2606 = vrot.slane %v2502, 2
        %v2607 = vrot.slane %v2503, 2
        %v2608 = vsel %vm2550, %v2606, %v2607
        %v2609 = vrot.slane %v2504, 2
        %v2610 = vsel %vm2550, %v2607, %v2609
        %v2611 = vrot.slane %v2517, 2
        %v2612 = vrot.slane %v2518, 2
        %v2613 = vsel %vm2550, %v2611, %v2612
        %v2614 = vrot.slane %v2519, 2
        %v2615 = vsel %vm2550, %v2612, %v2614
        %v2616 = vrot.slane %v2532, 2
        %v2617 = vrot.slane %v2533, 2
        %v2618 = vsel %vm2550, %v2616, %v2617
        %v2619 = vrot.slane %v2534, 2
        %v2620 = vsel %vm2550, %v2617, %v2619
        %v2621 = vrot.slane %v2547, 2
        %v2622 = vrot.slane %v2548, 2
        %v2623 = vsel %vm2550, %v2621, %v2622
        %v2624 = vrot.slane %v2549, 2
        %v2625 = vsel %vm2550, %v2622, %v2624
        %v2656 = vrot.slane %v2563, 4
        %v2657 = vsel %vm346, %v2656, %v2553
        %v2658 = vrot.slane %v2553, 4
        %v2659 = vsel %vm346, %v2563, %v2658
        %v2661 = vunpack.c.l.s4 1983009808
        %v2662 = vunpack.c.0.s8 %v2661
        %v2663 = vperm.slane %v2657, %v2662
        %v2665 = vunpack.c.l.s4 1983009808
        %v2666 = vunpack.c.0.s8 %v2665
        %v2667 = vperm.slane %v2659, %v2666
        %v2668 = vrot.slane %v2568, 4
        %v2669 = vsel %vm346, %v2668, %v2558
        %v2670 = vrot.slane %v2558, 4
        %v2671 = vsel %vm346, %v2568, %v2670
        %v2673 = vunpack.c.l.s4 1983009808
        %v2674 = vunpack.c.0.s8 %v2673
        %v2675 = vperm.slane %v2669, %v2674
        %v2677 = vunpack.c.l.s4 1983009808
        %v2678 = vunpack.c.0.s8 %v2677
        %v2679 = vperm.slane %v2671, %v2678
        %v2680 = vrot.slane %v2583, 4
        %v2681 = vsel %vm346, %v2680, %v2573
        %v2682 = vrot.slane %v2573, 4
        %v2683 = vsel %vm346, %v2583, %v2682
        %v2685 = vunpack.c.l.s4 1983009808
        %v2686 = vunpack.c.0.s8 %v2685
        %v2687 = vperm.slane %v2681, %v2686
        %v2689 = vunpack.c.l.s4 1983009808
        %v2690 = vunpack.c.0.s8 %v2689
        %v2691 = vperm.slane %v2683, %v2690
        %v2692 = vrot.slane %v2588, 4
        %v2693 = vsel %vm346, %v2692, %v2578
        %v2694 = vrot.slane %v2578, 4
        %v2695 = vsel %vm346, %v2588, %v2694
        %v2697 = vunpack.c.l.s4 1983009808
        %v2698 = vunpack.c.0.s8 %v2697
        %v2699 = vperm.slane %v2693, %v2698
        %v2701 = vunpack.c.l.s4 1983009808
        %v2702 = vunpack.c.0.s8 %v2701
        %v2703 = vperm.slane %v2695, %v2702
        %v2704 = vrot.slane %v2675, 4
        %v2705 = vsel %vm346, %v2704, %v2663
        %v2706 = vrot.slane %v2663, 4
        %v2707 = vsel %vm346, %v2675, %v2706
        %v2709 = vunpack.c.l.s4 1934713408
        %v2710 = vunpack.c.0.s8 %v2709
        %v2711 = vperm.slane %v2705, %v2710
        %v2713 = vunpack.c.l.s4 1934713408
        %v2714 = vunpack.c.0.s8 %v2713
        %v2715 = vperm.slane %v2707, %v2714
        %v2716 = vrot.slane %v2679, 4
        %v2717 = vsel %vm346, %v2716, %v2667
        %v2718 = vrot.slane %v2667, 4
        %v2719 = vsel %vm346, %v2679, %v2718
        %v2721 = vunpack.c.l.s4 1934713408
        %v2722 = vunpack.c.0.s8 %v2721
        %v2723 = vperm.slane %v2717, %v2722
        %v2725 = vunpack.c.l.s4 1934713408
        %v2726 = vunpack.c.0.s8 %v2725
        %v2727 = vperm.slane %v2719, %v2726
        %v2728 = vrot.slane %v2699, 4
        %v2729 = vsel %vm346, %v2728, %v2687
        %v2730 = vrot.slane %v2687, 4
        %v2731 = vsel %vm346, %v2699, %v2730
        %v2733 = vunpack.c.l.s4 1934713408
        %v2734 = vunpack.c.0.s8 %v2733
        %v2735 = vperm.slane %v2729, %v2734
        %v2737 = vunpack.c.l.s4 1934713408
        %v2738 = vunpack.c.0.s8 %v2737
        %v2739 = vperm.slane %v2731, %v2738
        %v2740 = vrot.slane %v2703, 4
        %v2741 = vsel %vm346, %v2740, %v2691
        %v2742 = vrot.slane %v2691, 4
        %v2743 = vsel %vm346, %v2703, %v2742
        %v2745 = vunpack.c.l.s4 1934713408
        %v2746 = vunpack.c.0.s8 %v2745
        %v2747 = vperm.slane %v2741, %v2746
        %v2749 = vunpack.c.l.s4 1934713408
        %v2750 = vunpack.c.0.s8 %v2749
        %v2751 = vperm.slane %v2743, %v2750
        %v2752 = vrot.slane %v2735, 4
        %v2753 = vsel %vm346, %v2752, %v2711
        %v2754 = vrot.slane %v2711, 4
        %v2755 = vsel %vm346, %v2735, %v2754
        %v2756 = vrot.slane %v2739, 4
        %v2757 = vsel %vm346, %v2756, %v2715
        %v2758 = vrot.slane %v2715, 4
        %v2759 = vsel %vm346, %v2739, %v2758
        %v2760 = vrot.slane %v2747, 4
        %v2761 = vsel %vm346, %v2760, %v2723
        %v2762 = vrot.slane %v2723, 4
        %v2763 = vsel %vm346, %v2747, %v2762
        %v2764 = vrot.slane %v2751, 4
        %v2765 = vsel %vm346, %v2764, %v2727
        %v2766 = vrot.slane %v2727, 4
        %v2767 = vsel %vm346, %v2751, %v2766
        %v2768 = vrot.slane %v2603, 4
        %v2769 = vsel %vm346, %v2768, %v2593
        %v2770 = vrot.slane %v2593, 4
        %v2771 = vsel %vm346, %v2603, %v2770
        %v2773 = vunpack.c.l.s4 1983009808
        %v2774 = vunpack.c.0.s8 %v2773
        %v2775 = vperm.slane %v2769, %v2774
        %v2777 = vunpack.c.l.s4 1983009808
        %v2778 = vunpack.c.0.s8 %v2777
        %v2779 = vperm.slane %v2771, %v2778
        %v2780 = vrot.slane %v2608, 4
        %v2781 = vsel %vm346, %v2780, %v2598
        %v2782 = vrot.slane %v2598, 4
        %v2783 = vsel %vm346, %v2608, %v2782
        %v2785 = vunpack.c.l.s4 1983009808
        %v2786 = vunpack.c.0.s8 %v2785
        %v2787 = vperm.slane %v2781, %v2786
        %v2789 = vunpack.c.l.s4 1983009808
        %v2790 = vunpack.c.0.s8 %v2789
        %v2791 = vperm.slane %v2783, %v2790
        %v2792 = vrot.slane %v2623, 4
        %v2793 = vsel %vm346, %v2792, %v2613
        %v2794 = vrot.slane %v2613, 4
        %v2795 = vsel %vm346, %v2623, %v2794
        %v2797 = vunpack.c.l.s4 1983009808
        %v2798 = vunpack.c.0.s8 %v2797
        %v2799 = vperm.slane %v2793, %v2798
        %v2801 = vunpack.c.l.s4 1983009808
        %v2802 = vunpack.c.0.s8 %v2801
        %v2803 = vperm.slane %v2795, %v2802
        %v2804 = vrot.slane %v2618, 4
        %v2805 = vsel %vm346, 0.0, %v2804
        %v2807 = vunpack.c.l.s4 1983009808
        %v2808 = vunpack.c.0.s8 %v2807
        %v2809 = vperm.slane %v2618, %v2808
        %v2811 = vunpack.c.l.s4 1983009808
        %v2812 = vunpack.c.0.s8 %v2811
        %v2813 = vperm.slane %v2805, %v2812
        %v2814 = vrot.slane %v2787, 4
        %v2815 = vsel %vm346, %v2814, %v2775
        %v2816 = vrot.slane %v2775, 4
        %v2817 = vsel %vm346, %v2787, %v2816
        %v2819 = vunpack.c.l.s4 1934713408
        %v2820 = vunpack.c.0.s8 %v2819
        %v2821 = vperm.slane %v2815, %v2820
        %v2823 = vunpack.c.l.s4 1934713408
        %v2824 = vunpack.c.0.s8 %v2823
        %v2825 = vperm.slane %v2817, %v2824
        %v2826 = vrot.slane %v2791, 4
        %v2827 = vsel %vm346, %v2826, %v2779
        %v2828 = vrot.slane %v2779, 4
        %v2829 = vsel %vm346, %v2791, %v2828
        %v2831 = vunpack.c.l.s4 1934713408
        %v2832 = vunpack.c.0.s8 %v2831
        %v2833 = vperm.slane %v2827, %v2832
        %v2835 = vunpack.c.l.s4 1934713408
        %v2836 = vunpack.c.0.s8 %v2835
        %v2837 = vperm.slane %v2829, %v2836
        %v2838 = vrot.slane %v2809, 4
        %v2839 = vsel %vm346, %v2838, %v2799
        %v2840 = vrot.slane %v2799, 4
        %v2841 = vsel %vm346, %v2809, %v2840
        %v2843 = vunpack.c.l.s4 1934713408
        %v2844 = vunpack.c.0.s8 %v2843
        %v2845 = vperm.slane %v2839, %v2844
        %v2847 = vunpack.c.l.s4 1934713408
        %v2848 = vunpack.c.0.s8 %v2847
        %v2849 = vperm.slane %v2841, %v2848
        %v2850 = vrot.slane %v2813, 4
        %v2851 = vsel %vm346, %v2850, %v2803
        %v2852 = vrot.slane %v2803, 4
        %v2853 = vsel %vm346, %v2813, %v2852
        %v2855 = vunpack.c.l.s4 1934713408
        %v2856 = vunpack.c.0.s8 %v2855
        %v2857 = vperm.slane %v2851, %v2856
        %v2859 = vunpack.c.l.s4 1934713408
        %v2860 = vunpack.c.0.s8 %v2859
        %v2861 = vperm.slane %v2853, %v2860
        %v2862 = vrot.slane %v2845, 4
        %v2863 = vsel %vm346, %v2862, %v2821
        %v2864 = vrot.slane %v2821, 4
        %v2865 = vsel %vm346, %v2845, %v2864
        %v2866 = vrot.slane %v2849, 4
        %v2867 = vsel %vm346, %v2866, %v2825
        %v2868 = vrot.slane %v2825, 4
        %v2869 = vsel %vm346, %v2849, %v2868
        %v2870 = vrot.slane %v2857, 4
        %v2871 = vsel %vm346, %v2870, %v2833
        %v2872 = vrot.slane %v2833, 4
        %v2873 = vsel %vm346, %v2857, %v2872
        %v2874 = vrot.slane %v2861, 4
        %v2875 = vsel %vm346, %v2874, %v2837
        %v2876 = vrot.slane %v2837, 4
        %v2877 = vsel %vm346, %v2861, %v2876
        %v2878 = vrot.slane %v2565, 4
        %v2879 = vsel %vm346, %v2878, %v2555
        %v2880 = vrot.slane %v2555, 4
        %v2881 = vsel %vm346, %v2565, %v2880
        %v2883 = vunpack.c.l.s4 1983009808
        %v2884 = vunpack.c.0.s8 %v2883
        %v2885 = vperm.slane %v2879, %v2884
        %v2887 = vunpack.c.l.s4 1983009808
        %v2888 = vunpack.c.0.s8 %v2887
        %v2889 = vperm.slane %v2881, %v2888
        %v2890 = vrot.slane %v2570, 4
        %v2891 = vsel %vm346, %v2890, %v2560
        %v2892 = vrot.slane %v2560, 4
        %v2893 = vsel %vm346, %v2570, %v2892
        %v2895 = vunpack.c.l.s4 1983009808
        %v2896 = vunpack.c.0.s8 %v2895
        %v2897 = vperm.slane %v2891, %v2896
        %v2899 = vunpack.c.l.s4 1983009808
        %v2900 = vunpack.c.0.s8 %v2899
        %v2901 = vperm.slane %v2893, %v2900
        %v2902 = vrot.slane %v2585, 4
        %v2903 = vsel %vm346, %v2902, %v2575
        %v2904 = vrot.slane %v2575, 4
        %v2905 = vsel %vm346, %v2585, %v2904
        %v2907 = vunpack.c.l.s4 1983009808
        %v2908 = vunpack.c.0.s8 %v2907
        %v2909 = vperm.slane %v2903, %v2908
        %v2911 = vunpack.c.l.s4 1983009808
        %v2912 = vunpack.c.0.s8 %v2911
        %v2913 = vperm.slane %v2905, %v2912
        %v2914 = vrot.slane %v2590, 4
        %v2915 = vsel %vm346, %v2914, %v2580
        %v2916 = vrot.slane %v2580, 4
        %v2917 = vsel %vm346, %v2590, %v2916
        %v2919 = vunpack.c.l.s4 1983009808
        %v2920 = vunpack.c.0.s8 %v2919
        %v2921 = vperm.slane %v2915, %v2920
        %v2923 = vunpack.c.l.s4 1983009808
        %v2924 = vunpack.c.0.s8 %v2923
        %v2925 = vperm.slane %v2917, %v2924
        %v2926 = vrot.slane %v2897, 4
        %v2927 = vsel %vm346, %v2926, %v2885
        %v2928 = vrot.slane %v2885, 4
        %v2929 = vsel %vm346, %v2897, %v2928
        %v2931 = vunpack.c.l.s4 1934713408
        %v2932 = vunpack.c.0.s8 %v2931
        %v2933 = vperm.slane %v2927, %v2932
        %v2935 = vunpack.c.l.s4 1934713408
        %v2936 = vunpack.c.0.s8 %v2935
        %v2937 = vperm.slane %v2929, %v2936
        %v2938 = vrot.slane %v2901, 4
        %v2939 = vsel %vm346, %v2938, %v2889
        %v2940 = vrot.slane %v2889, 4
        %v2941 = vsel %vm346, %v2901, %v2940
        %v2943 = vunpack.c.l.s4 1934713408
        %v2944 = vunpack.c.0.s8 %v2943
        %v2945 = vperm.slane %v2939, %v2944
        %v2947 = vunpack.c.l.s4 1934713408
        %v2948 = vunpack.c.0.s8 %v2947
        %v2949 = vperm.slane %v2941, %v2948
        %v2950 = vrot.slane %v2921, 4
        %v2951 = vsel %vm346, %v2950, %v2909
        %v2952 = vrot.slane %v2909, 4
        %v2953 = vsel %vm346, %v2921, %v2952
        %v2955 = vunpack.c.l.s4 1934713408
        %v2956 = vunpack.c.0.s8 %v2955
        %v2957 = vperm.slane %v2951, %v2956
        %v2959 = vunpack.c.l.s4 1934713408
        %v2960 = vunpack.c.0.s8 %v2959
        %v2961 = vperm.slane %v2953, %v2960
        %v2962 = vrot.slane %v2925, 4
        %v2963 = vsel %vm346, %v2962, %v2913
        %v2964 = vrot.slane %v2913, 4
        %v2965 = vsel %vm346, %v2925, %v2964
        %v2967 = vunpack.c.l.s4 1934713408
        %v2968 = vunpack.c.0.s8 %v2967
        %v2969 = vperm.slane %v2963, %v2968
        %v2971 = vunpack.c.l.s4 1934713408
        %v2972 = vunpack.c.0.s8 %v2971
        %v2973 = vperm.slane %v2965, %v2972
        %v2974 = vrot.slane %v2957, 4
        %v2975 = vsel %vm346, %v2974, %v2933
        %v2976 = vrot.slane %v2933, 4
        %v2977 = vsel %vm346, %v2957, %v2976
        %v2978 = vrot.slane %v2961, 4
        %v2979 = vsel %vm346, %v2978, %v2937
        %v2980 = vrot.slane %v2937, 4
        %v2981 = vsel %vm346, %v2961, %v2980
        %v2982 = vrot.slane %v2969, 4
        %v2983 = vsel %vm346, %v2982, %v2945
        %v2984 = vrot.slane %v2945, 4
        %v2985 = vsel %vm346, %v2969, %v2984
        %v2986 = vrot.slane %v2973, 4
        %v2987 = vsel %vm346, %v2986, %v2949
        %v2988 = vrot.slane %v2949, 4
        %v2989 = vsel %vm346, %v2973, %v2988
        %v2990 = vrot.slane %v2605, 4
        %v2991 = vsel %vm346, %v2990, %v2595
        %v2992 = vrot.slane %v2595, 4
        %v2993 = vsel %vm346, %v2605, %v2992
        %v2995 = vunpack.c.l.s4 1983009808
        %v2996 = vunpack.c.0.s8 %v2995
        %v2997 = vperm.slane %v2991, %v2996
        %v2999 = vunpack.c.l.s4 1983009808
        %v3000 = vunpack.c.0.s8 %v2999
        %v3001 = vperm.slane %v2993, %v3000
        %v3002 = vrot.slane %v2610, 4
        %v3003 = vsel %vm346, %v3002, %v2600
        %v3004 = vrot.slane %v2600, 4
        %v3005 = vsel %vm346, %v2610, %v3004
        %v3007 = vunpack.c.l.s4 1983009808
        %v3008 = vunpack.c.0.s8 %v3007
        %v3009 = vperm.slane %v3003, %v3008
        %v3011 = vunpack.c.l.s4 1983009808
        %v3012 = vunpack.c.0.s8 %v3011
        %v3013 = vperm.slane %v3005, %v3012
        %v3014 = vrot.slane %v2625, 4
        %v3015 = vsel %vm346, %v3014, %v2615
        %v3016 = vrot.slane %v2615, 4
        %v3017 = vsel %vm346, %v2625, %v3016
        %v3019 = vunpack.c.l.s4 1983009808
        %v3020 = vunpack.c.0.s8 %v3019
        %v3021 = vperm.slane %v3015, %v3020
        %v3023 = vunpack.c.l.s4 1983009808
        %v3024 = vunpack.c.0.s8 %v3023
        %v3025 = vperm.slane %v3017, %v3024
        %v3026 = vrot.slane %v2620, 4
        %v3027 = vsel %vm346, 0.0, %v3026
        %v3029 = vunpack.c.l.s4 1983009808
        %v3030 = vunpack.c.0.s8 %v3029
        %v3031 = vperm.slane %v2620, %v3030
        %v3033 = vunpack.c.l.s4 1983009808
        %v3034 = vunpack.c.0.s8 %v3033
        %v3035 = vperm.slane %v3027, %v3034
        %v3036 = vrot.slane %v3009, 4
        %v3037 = vsel %vm346, %v3036, %v2997
        %v3038 = vrot.slane %v2997, 4
        %v3039 = vsel %vm346, %v3009, %v3038
        %v3041 = vunpack.c.l.s4 1934713408
        %v3042 = vunpack.c.0.s8 %v3041
        %v3043 = vperm.slane %v3037, %v3042
        %v3045 = vunpack.c.l.s4 1934713408
        %v3046 = vunpack.c.0.s8 %v3045
        %v3047 = vperm.slane %v3039, %v3046
        %v3048 = vrot.slane %v3013, 4
        %v3049 = vsel %vm346, %v3048, %v3001
        %v3050 = vrot.slane %v3001, 4
        %v3051 = vsel %vm346, %v3013, %v3050
        %v3053 = vunpack.c.l.s4 1934713408
        %v3054 = vunpack.c.0.s8 %v3053
        %v3055 = vperm.slane %v3049, %v3054
        %v3057 = vunpack.c.l.s4 1934713408
        %v3058 = vunpack.c.0.s8 %v3057
        %v3059 = vperm.slane %v3051, %v3058
        %v3060 = vrot.slane %v3031, 4
        %v3061 = vsel %vm346, %v3060, %v3021
        %v3062 = vrot.slane %v3021, 4
        %v3063 = vsel %vm346, %v3031, %v3062
        %v3065 = vunpack.c.l.s4 1934713408
        %v3066 = vunpack.c.0.s8 %v3065
        %v3067 = vperm.slane %v3061, %v3066
        %v3069 = vunpack.c.l.s4 1934713408
        %v3070 = vunpack.c.0.s8 %v3069
        %v3071 = vperm.slane %v3063, %v3070
        %v3072 = vrot.slane %v3035, 4
        %v3073 = vsel %vm346, %v3072, %v3025
        %v3074 = vrot.slane %v3025, 4
        %v3075 = vsel %vm346, %v3035, %v3074
        %v3077 = vunpack.c.l.s4 1934713408
        %v3078 = vunpack.c.0.s8 %v3077
        %v3079 = vperm.slane %v3073, %v3078
        %v3081 = vunpack.c.l.s4 1934713408
        %v3082 = vunpack.c.0.s8 %v3081
        %v3083 = vperm.slane %v3075, %v3082
        %v3084 = vrot.slane %v3067, 4
        %v3085 = vsel %vm346, %v3084, %v3043
        %v3086 = vrot.slane %v3043, 4
        %v3087 = vsel %vm346, %v3067, %v3086
        %v3088 = vrot.slane %v3071, 4
        %v3089 = vsel %vm346, %v3088, %v3047
        %v3090 = vrot.slane %v3047, 4
        %v3091 = vsel %vm346, %v3071, %v3090
        %v3092 = vrot.slane %v3079, 4
        %v3093 = vsel %vm346, %v3092, %v3055
        %v3094 = vrot.slane %v3055, 4
        %v3095 = vsel %vm346, %v3079, %v3094
        %v3096 = vrot.slane %v3083, 4
        %v3097 = vsel %vm346, %v3096, %v3059
        %v3098 = vrot.slane %v3059, 4
        %v3099 = vsel %vm346, %v3083, %v3098
        %s3100 = scalar_lea.vmem %s1, 32
        %v3101 = vld [vmem:[%s3100] sm:$0xff]
        %v3102 = vld [vmem:[%s3100 + $0x8] sm:$0xff]
        %v3104 = vsel %vm1489, %v3101, 0
        %v3107 = vsel %vm1489, %v3102, 0
        %v3110 = vsel %vm936, %v2863, 0
        %v3113 = vsel %vm936, %v2865, 0
        %v3116 = vsel %vm936, %v2867, 0
        %v3119 = vsel %vm936, %v2869, 0
        %v3122 = vsel %vm936, %v2871, 0
        %v3125 = vsel %vm936, %v2873, 0
        %v3128 = vsel %vm936, %v2875, 0
        %v3131 = vsel %vm936, %v2877, 0
        %v3134 = vsel %vm936, %v3085, 0
        %v3137 = vsel %vm936, %v3087, 0
        %v3140 = vsel %vm936, %v3089, 0
        %v3143 = vsel %vm936, %v3091, 0
        %v3146 = vsel %vm936, %v3093, 0
        %v3149 = vsel %vm936, %v3095, 0
        %v3152 = vsel %vm936, %v3097, 0
        %v3155 = vsel %vm936, %v3099, 0
        %3157 = vmatpush.msra.mxu0 0.0
        %3158 = vmatpush.msra.mxu0 0.0
        %3159 = vmatpush.msra.mxu0 0.0
        %3160 = vmatpush.msra.mxu0 0.0
        %3161 = vmatpush.msra.mxu0 0.0
        %3162 = vmatpush.msra.mxu0 0.0
        %3163 = vmatpush.msra.mxu0 0.0
        %3164 = vmatpush.msra.mxu0 0.0
        %3165 = vmatpush.msra.mxu0 0.0
        %3166 = vmatpush.msra.mxu0 0.0
        %3167 = vmatpush.msra.mxu0 0.0
        %3168 = vmatpush.msra.mxu0 0.0
        %3169 = vmatpush.msra.mxu0 0.0
        %3170 = vmatpush.msra.mxu0 0.0
        %3171 = vmatpush.msra.mxu0 %v3110
        %3172 = vmatpush.msra.mxu0 %v2753
        %3173 = vmatmul.f32.gmra.mxu0 %v3104
        %v3174 = vpop.f32.mrf.mxu0
        %v3175 = vadd.f32 0.0, %v3174
        %3176 = vmatmul.f32.gmra.mxu0 %v3107
        %v3177 = vpop.f32.mrf.mxu0
        %v3178 = vadd.f32 0.0, %v3177
        %3179 = vdwg.mxu0
        %3180 = vmatpush.msra.mxu0 0.0
        %3181 = vmatpush.msra.mxu0 0.0
        %3182 = vmatpush.msra.mxu0 0.0
        %3183 = vmatpush.msra.mxu0 0.0
        %3184 = vmatpush.msra.mxu0 0.0
        %3185 = vmatpush.msra.mxu0 0.0
        %3186 = vmatpush.msra.mxu0 0.0
        %3187 = vmatpush.msra.mxu0 0.0
        %3188 = vmatpush.msra.mxu0 0.0
        %3189 = vmatpush.msra.mxu0 0.0
        %3190 = vmatpush.msra.mxu0 0.0
        %3191 = vmatpush.msra.mxu0 0.0
        %3192 = vmatpush.msra.mxu0 0.0
        %3193 = vmatpush.msra.mxu0 0.0
        %3194 = vmatpush.msra.mxu0 %v3113
        %3195 = vmatpush.msra.mxu0 %v2755
        %3196 = vmatmul.f32.gmra.mxu0 %v3104
        %v3197 = vpop.f32.mrf.mxu0
        %v3198 = vadd.f32 0.0, %v3197
        %3199 = vmatmul.f32.gmra.mxu0 %v3107
        %v3200 = vpop.f32.mrf.mxu0
        %v3201 = vadd.f32 0.0, %v3200
        %3202 = vdwg.mxu0
        %3203 = vmatpush.msra.mxu0 0.0
        %3204 = vmatpush.msra.mxu0 0.0
        %3205 = vmatpush.msra.mxu0 0.0
        %3206 = vmatpush.msra.mxu0 0.0
        %3207 = vmatpush.msra.mxu0 0.0
        %3208 = vmatpush.msra.mxu0 0.0
        %3209 = vmatpush.msra.mxu0 0.0
        %3210 = vmatpush.msra.mxu0 0.0
        %3211 = vmatpush.msra.mxu0 0.0
        %3212 = vmatpush.msra.mxu0 0.0
        %3213 = vmatpush.msra.mxu0 0.0
        %3214 = vmatpush.msra.mxu0 0.0
        %3215 = vmatpush.msra.mxu0 0.0
        %3216 = vmatpush.msra.mxu0 0.0
        %3217 = vmatpush.msra.mxu0 %v3116
        %3218 = vmatpush.msra.mxu0 %v2757
        %3219 = vmatmul.f32.gmra.mxu0 %v3104
        %v3220 = vpop.f32.mrf.mxu0
        %v3221 = vadd.f32 0.0, %v3220
        %3222 = vmatmul.f32.gmra.mxu0 %v3107
        %v3223 = vpop.f32.mrf.mxu0
        %v3224 = vadd.f32 0.0, %v3223
        %3225 = vdwg.mxu0
        %3226 = vmatpush.msra.mxu0 0.0
        %3227 = vmatpush.msra.mxu0 0.0
        %3228 = vmatpush.msra.mxu0 0.0
        %3229 = vmatpush.msra.mxu0 0.0
        %3230 = vmatpush.msra.mxu0 0.0
        %3231 = vmatpush.msra.mxu0 0.0
        %3232 = vmatpush.msra.mxu0 0.0
        %3233 = vmatpush.msra.mxu0 0.0
        %3234 = vmatpush.msra.mxu0 0.0
        %3235 = vmatpush.msra.mxu0 0.0
        %3236 = vmatpush.msra.mxu0 0.0
        %3237 = vmatpush.msra.mxu0 0.0
        %3238 = vmatpush.msra.mxu0 0.0
        %3239 = vmatpush.msra.mxu0 0.0
        %3240 = vmatpush.msra.mxu0 %v3119
        %3241 = vmatpush.msra.mxu0 %v2759
        %3242 = vmatmul.f32.gmra.mxu0 %v3104
        %v3243 = vpop.f32.mrf.mxu0
        %v3244 = vadd.f32 0.0, %v3243
        %3245 = vmatmul.f32.gmra.mxu0 %v3107
        %v3246 = vpop.f32.mrf.mxu0
        %v3247 = vadd.f32 0.0, %v3246
        %3248 = vdwg.mxu0
        %3249 = vmatpush.msra.mxu0 0.0
        %3250 = vmatpush.msra.mxu0 0.0
        %3251 = vmatpush.msra.mxu0 0.0
        %3252 = vmatpush.msra.mxu0 0.0
        %3253 = vmatpush.msra.mxu0 0.0
        %3254 = vmatpush.msra.mxu0 0.0
        %3255 = vmatpush.msra.mxu0 0.0
        %3256 = vmatpush.msra.mxu0 0.0
        %3257 = vmatpush.msra.mxu0 0.0
        %3258 = vmatpush.msra.mxu0 0.0
        %3259 = vmatpush.msra.mxu0 0.0
        %3260 = vmatpush.msra.mxu0 0.0
        %3261 = vmatpush.msra.mxu0 0.0
        %3262 = vmatpush.msra.mxu0 0.0
        %3263 = vmatpush.msra.mxu0 %v3122
        %3264 = vmatpush.msra.mxu0 %v2761
        %3265 = vmatmul.f32.gmra.mxu0 %v3104
        %v3266 = vpop.f32.mrf.mxu0
        %v3267 = vadd.f32 0.0, %v3266
        %3268 = vmatmul.f32.gmra.mxu0 %v3107
        %v3269 = vpop.f32.mrf.mxu0
        %v3270 = vadd.f32 0.0, %v3269
        %3271 = vdwg.mxu0
        %3272 = vmatpush.msra.mxu0 0.0
        %3273 = vmatpush.msra.mxu0 0.0
        %3274 = vmatpush.msra.mxu0 0.0
        %3275 = vmatpush.msra.mxu0 0.0
        %3276 = vmatpush.msra.mxu0 0.0
        %3277 = vmatpush.msra.mxu0 0.0
        %3278 = vmatpush.msra.mxu0 0.0
        %3279 = vmatpush.msra.mxu0 0.0
        %3280 = vmatpush.msra.mxu0 0.0
        %3281 = vmatpush.msra.mxu0 0.0
        %3282 = vmatpush.msra.mxu0 0.0
        %3283 = vmatpush.msra.mxu0 0.0
        %3284 = vmatpush.msra.mxu0 0.0
        %3285 = vmatpush.msra.mxu0 0.0
        %3286 = vmatpush.msra.mxu0 %v3125
        %3287 = vmatpush.msra.mxu0 %v2763
        %3288 = vmatmul.f32.gmra.mxu0 %v3104
        %v3289 = vpop.f32.mrf.mxu0
        %v3290 = vadd.f32 0.0, %v3289
        %3291 = vmatmul.f32.gmra.mxu0 %v3107
        %v3292 = vpop.f32.mrf.mxu0
        %v3293 = vadd.f32 0.0, %v3292
        %3294 = vdwg.mxu0
        %3295 = vmatpush.msra.mxu0 0.0
        %3296 = vmatpush.msra.mxu0 0.0
        %3297 = vmatpush.msra.mxu0 0.0
        %3298 = vmatpush.msra.mxu0 0.0
        %3299 = vmatpush.msra.mxu0 0.0
        %3300 = vmatpush.msra.mxu0 0.0
        %3301 = vmatpush.msra.mxu0 0.0
        %3302 = vmatpush.msra.mxu0 0.0
        %3303 = vmatpush.msra.mxu0 0.0
        %3304 = vmatpush.msra.mxu0 0.0
        %3305 = vmatpush.msra.mxu0 0.0
        %3306 = vmatpush.msra.mxu0 0.0
        %3307 = vmatpush.msra.mxu0 0.0
        %3308 = vmatpush.msra.mxu0 0.0
        %3309 = vmatpush.msra.mxu0 %v3128
        %3310 = vmatpush.msra.mxu0 %v2765
        %3311 = vmatmul.f32.gmra.mxu0 %v3104
        %v3312 = vpop.f32.mrf.mxu0
        %v3313 = vadd.f32 0.0, %v3312
        %3314 = vmatmul.f32.gmra.mxu0 %v3107
        %v3315 = vpop.f32.mrf.mxu0
        %v3316 = vadd.f32 0.0, %v3315
        %3317 = vdwg.mxu0
        %3318 = vmatpush.msra.mxu0 0.0
        %3319 = vmatpush.msra.mxu0 0.0
        %3320 = vmatpush.msra.mxu0 0.0
        %3321 = vmatpush.msra.mxu0 0.0
        %3322 = vmatpush.msra.mxu0 0.0
        %3323 = vmatpush.msra.mxu0 0.0
        %3324 = vmatpush.msra.mxu0 0.0
        %3325 = vmatpush.msra.mxu0 0.0
        %3326 = vmatpush.msra.mxu0 0.0
        %3327 = vmatpush.msra.mxu0 0.0
        %3328 = vmatpush.msra.mxu0 0.0
        %3329 = vmatpush.msra.mxu0 0.0
        %3330 = vmatpush.msra.mxu0 0.0
        %3331 = vmatpush.msra.mxu0 0.0
        %3332 = vmatpush.msra.mxu0 %v3131
        %3333 = vmatpush.msra.mxu0 %v2767
        %3334 = vmatmul.f32.gmra.mxu0 %v3104
        %v3335 = vpop.f32.mrf.mxu0
        %v3336 = vadd.f32 0.0, %v3335
        %3337 = vmatmul.f32.gmra.mxu0 %v3107
        %v3338 = vpop.f32.mrf.mxu0
        %v3339 = vadd.f32 0.0, %v3338
        %3340 = vdwg.mxu0
        %3341 = vmatpush.msra.mxu0 0.0
        %3342 = vmatpush.msra.mxu0 0.0
        %3343 = vmatpush.msra.mxu0 0.0
        %3344 = vmatpush.msra.mxu0 0.0
        %3345 = vmatpush.msra.mxu0 0.0
        %3346 = vmatpush.msra.mxu0 0.0
        %3347 = vmatpush.msra.mxu0 0.0
        %3348 = vmatpush.msra.mxu0 0.0
        %3349 = vmatpush.msra.mxu0 0.0
        %3350 = vmatpush.msra.mxu0 0.0
        %3351 = vmatpush.msra.mxu0 0.0
        %3352 = vmatpush.msra.mxu0 0.0
        %3353 = vmatpush.msra.mxu0 0.0
        %3354 = vmatpush.msra.mxu0 0.0
        %3355 = vmatpush.msra.mxu0 %v3134
        %3356 = vmatpush.msra.mxu0 %v2975
        %3357 = vmatmul.f32.gmra.mxu0 %v3104
        %v3358 = vpop.f32.mrf.mxu0
        %v3359 = vadd.f32 0.0, %v3358
        %3360 = vmatmul.f32.gmra.mxu0 %v3107
        %v3361 = vpop.f32.mrf.mxu0
        %v3362 = vadd.f32 0.0, %v3361
        %3363 = vdwg.mxu0
        %3364 = vmatpush.msra.mxu0 0.0
        %3365 = vmatpush.msra.mxu0 0.0
        %3366 = vmatpush.msra.mxu0 0.0
        %3367 = vmatpush.msra.mxu0 0.0
        %3368 = vmatpush.msra.mxu0 0.0
        %3369 = vmatpush.msra.mxu0 0.0
        %3370 = vmatpush.msra.mxu0 0.0
        %3371 = vmatpush.msra.mxu0 0.0
        %3372 = vmatpush.msra.mxu0 0.0
        %3373 = vmatpush.msra.mxu0 0.0
        %3374 = vmatpush.msra.mxu0 0.0
        %3375 = vmatpush.msra.mxu0 0.0
        %3376 = vmatpush.msra.mxu0 0.0
        %3377 = vmatpush.msra.mxu0 0.0
        %3378 = vmatpush.msra.mxu0 %v3137
        %3379 = vmatpush.msra.mxu0 %v2977
        %3380 = vmatmul.f32.gmra.mxu0 %v3104
        %v3381 = vpop.f32.mrf.mxu0
        %v3382 = vadd.f32 0.0, %v3381
        %3383 = vmatmul.f32.gmra.mxu0 %v3107
        %v3384 = vpop.f32.mrf.mxu0
        %v3385 = vadd.f32 0.0, %v3384
        %3386 = vdwg.mxu0
        %3387 = vmatpush.msra.mxu0 0.0
        %3388 = vmatpush.msra.mxu0 0.0
        %3389 = vmatpush.msra.mxu0 0.0
        %3390 = vmatpush.msra.mxu0 0.0
        %3391 = vmatpush.msra.mxu0 0.0
        %3392 = vmatpush.msra.mxu0 0.0
        %3393 = vmatpush.msra.mxu0 0.0
        %3394 = vmatpush.msra.mxu0 0.0
        %3395 = vmatpush.msra.mxu0 0.0
        %3396 = vmatpush.msra.mxu0 0.0
        %3397 = vmatpush.msra.mxu0 0.0
        %3398 = vmatpush.msra.mxu0 0.0
        %3399 = vmatpush.msra.mxu0 0.0
        %3400 = vmatpush.msra.mxu0 0.0
        %3401 = vmatpush.msra.mxu0 %v3140
        %3402 = vmatpush.msra.mxu0 %v2979
        %3403 = vmatmul.f32.gmra.mxu0 %v3104
        %v3404 = vpop.f32.mrf.mxu0
        %v3405 = vadd.f32 0.0, %v3404
        %3406 = vmatmul.f32.gmra.mxu0 %v3107
        %v3407 = vpop.f32.mrf.mxu0
        %v3408 = vadd.f32 0.0, %v3407
        %3409 = vdwg.mxu0
        %3410 = vmatpush.msra.mxu0 0.0
        %3411 = vmatpush.msra.mxu0 0.0
        %3412 = vmatpush.msra.mxu0 0.0
        %3413 = vmatpush.msra.mxu0 0.0
        %3414 = vmatpush.msra.mxu0 0.0
        %3415 = vmatpush.msra.mxu0 0.0
        %3416 = vmatpush.msra.mxu0 0.0
        %3417 = vmatpush.msra.mxu0 0.0
        %3418 = vmatpush.msra.mxu0 0.0
        %3419 = vmatpush.msra.mxu0 0.0
        %3420 = vmatpush.msra.mxu0 0.0
        %3421 = vmatpush.msra.mxu0 0.0
        %3422 = vmatpush.msra.mxu0 0.0
        %3423 = vmatpush.msra.mxu0 0.0
        %3424 = vmatpush.msra.mxu0 %v3143
        %3425 = vmatpush.msra.mxu0 %v2981
        %3426 = vmatmul.f32.gmra.mxu0 %v3104
        %v3427 = vpop.f32.mrf.mxu0
        %v3428 = vadd.f32 0.0, %v3427
        %3429 = vmatmul.f32.gmra.mxu0 %v3107
        %v3430 = vpop.f32.mrf.mxu0
        %v3431 = vadd.f32 0.0, %v3430
        %3432 = vdwg.mxu0
        %3433 = vmatpush.msra.mxu0 0.0
        %3434 = vmatpush.msra.mxu0 0.0
        %3435 = vmatpush.msra.mxu0 0.0
        %3436 = vmatpush.msra.mxu0 0.0
        %3437 = vmatpush.msra.mxu0 0.0
        %3438 = vmatpush.msra.mxu0 0.0
        %3439 = vmatpush.msra.mxu0 0.0
        %3440 = vmatpush.msra.mxu0 0.0
        %3441 = vmatpush.msra.mxu0 0.0
        %3442 = vmatpush.msra.mxu0 0.0
        %3443 = vmatpush.msra.mxu0 0.0
        %3444 = vmatpush.msra.mxu0 0.0
        %3445 = vmatpush.msra.mxu0 0.0
        %3446 = vmatpush.msra.mxu0 0.0
        %3447 = vmatpush.msra.mxu0 %v3146
        %3448 = vmatpush.msra.mxu0 %v2983
        %3449 = vmatmul.f32.gmra.mxu0 %v3104
        %v3450 = vpop.f32.mrf.mxu0
        %v3451 = vadd.f32 0.0, %v3450
        %3452 = vmatmul.f32.gmra.mxu0 %v3107
        %v3453 = vpop.f32.mrf.mxu0
        %v3454 = vadd.f32 0.0, %v3453
        %3455 = vdwg.mxu0
        %3456 = vmatpush.msra.mxu0 0.0
        %3457 = vmatpush.msra.mxu0 0.0
        %3458 = vmatpush.msra.mxu0 0.0
        %3459 = vmatpush.msra.mxu0 0.0
        %3460 = vmatpush.msra.mxu0 0.0
        %3461 = vmatpush.msra.mxu0 0.0
        %3462 = vmatpush.msra.mxu0 0.0
        %3463 = vmatpush.msra.mxu0 0.0
        %3464 = vmatpush.msra.mxu0 0.0
        %3465 = vmatpush.msra.mxu0 0.0
        %3466 = vmatpush.msra.mxu0 0.0
        %3467 = vmatpush.msra.mxu0 0.0
        %3468 = vmatpush.msra.mxu0 0.0
        %3469 = vmatpush.msra.mxu0 0.0
        %3470 = vmatpush.msra.mxu0 %v3149
        %3471 = vmatpush.msra.mxu0 %v2985
        %3472 = vmatmul.f32.gmra.mxu0 %v3104
        %v3473 = vpop.f32.mrf.mxu0
        %v3474 = vadd.f32 0.0, %v3473
        %3475 = vmatmul.f32.gmra.mxu0 %v3107
        %v3476 = vpop.f32.mrf.mxu0
        %v3477 = vadd.f32 0.0, %v3476
        %3478 = vdwg.mxu0
        %3479 = vmatpush.msra.mxu0 0.0
        %3480 = vmatpush.msra.mxu0 0.0
        %3481 = vmatpush.msra.mxu0 0.0
        %3482 = vmatpush.msra.mxu0 0.0
        %3483 = vmatpush.msra.mxu0 0.0
        %3484 = vmatpush.msra.mxu0 0.0
        %3485 = vmatpush.msra.mxu0 0.0
        %3486 = vmatpush.msra.mxu0 0.0
        %3487 = vmatpush.msra.mxu0 0.0
        %3488 = vmatpush.msra.mxu0 0.0
        %3489 = vmatpush.msra.mxu0 0.0
        %3490 = vmatpush.msra.mxu0 0.0
        %3491 = vmatpush.msra.mxu0 0.0
        %3492 = vmatpush.msra.mxu0 0.0
        %3493 = vmatpush.msra.mxu0 %v3152
        %3494 = vmatpush.msra.mxu0 %v2987
        %3495 = vmatmul.f32.gmra.mxu0 %v3104
        %v3496 = vpop.f32.mrf.mxu0
        %v3497 = vadd.f32 0.0, %v3496
        %3498 = vmatmul.f32.gmra.mxu0 %v3107
        %v3499 = vpop.f32.mrf.mxu0
        %v3500 = vadd.f32 0.0, %v3499
        %3501 = vdwg.mxu0
        %3502 = vmatpush.msra.mxu0 0.0
        %3503 = vmatpush.msra.mxu0 0.0
        %3504 = vmatpush.msra.mxu0 0.0
        %3505 = vmatpush.msra.mxu0 0.0
        %3506 = vmatpush.msra.mxu0 0.0
        %3507 = vmatpush.msra.mxu0 0.0
        %3508 = vmatpush.msra.mxu0 0.0
        %3509 = vmatpush.msra.mxu0 0.0
        %3510 = vmatpush.msra.mxu0 0.0
        %3511 = vmatpush.msra.mxu0 0.0
        %3512 = vmatpush.msra.mxu0 0.0
        %3513 = vmatpush.msra.mxu0 0.0
        %3514 = vmatpush.msra.mxu0 0.0
        %3515 = vmatpush.msra.mxu0 0.0
        %3516 = vmatpush.msra.mxu0 %v3155
        %3517 = vmatpush.msra.mxu0 %v2989
        %3518 = vmatmul.f32.gmra.mxu0 %v3104
        %v3519 = vpop.f32.mrf.mxu0
        %v3520 = vadd.f32 0.0, %v3519
        %3521 = vmatmul.f32.gmra.mxu0 %v3107
        %v3522 = vpop.f32.mrf.mxu0
        %v3523 = vadd.f32 0.0, %v3522
        %3524 = vdwg.mxu0
        %v3525 = vadd.f32 %v1984, %v3175
        %v3526 = vadd.f32 %v2007, %v3198
        %v3527 = vadd.f32 %v2030, %v3221
        %v3528 = vadd.f32 %v2053, %v3244
        %v3529 = vadd.f32 %v2076, %v3267
        %v3530 = vadd.f32 %v2099, %v3290
        %v3531 = vadd.f32 %v2122, %v3313
        %v3532 = vadd.f32 %v2145, %v3336
        %v3533 = vadd.f32 %v2168, %v3359
        %v3534 = vadd.f32 %v2191, %v3382
        %v3535 = vadd.f32 %v2214, %v3405
        %v3536 = vadd.f32 %v2237, %v3428
        %v3537 = vadd.f32 %v2260, %v3451
        %v3538 = vadd.f32 %v2283, %v3474
        %v3539 = vadd.f32 %v2306, %v3497
        %v3540 = vadd.f32 %v2329, %v3520
        %v3541 = vadd.f32 %v1987, %v3178
        %v3542 = vadd.f32 %v2010, %v3201
        %v3543 = vadd.f32 %v2033, %v3224
        %v3544 = vadd.f32 %v2056, %v3247
        %v3545 = vadd.f32 %v2079, %v3270
        %v3546 = vadd.f32 %v2102, %v3293
        %v3547 = vadd.f32 %v2125, %v3316
        %v3548 = vadd.f32 %v2148, %v3339
        %v3549 = vadd.f32 %v2171, %v3362
        %v3550 = vadd.f32 %v2194, %v3385
        %v3551 = vadd.f32 %v2217, %v3408
        %v3552 = vadd.f32 %v2240, %v3431
        %v3553 = vadd.f32 %v2263, %v3454
        %v3554 = vadd.f32 %v2286, %v3477
        %v3555 = vadd.f32 %v2309, %v3500
        %v3556 = vadd.f32 %v2332, %v3523
        %v3557 = vld [vmem:[%s169] sm:$0xf8]
        %v3558 = vld [vmem:[%s169 + $0x10] sm:$0xff]
        %v3559 = vld [vmem:[%s169 + $0x20] sm:$0x7]
        %v3560 = vld [vmem:[%s169 + $0x8] sm:$0xf8]
        %v3561 = vld [vmem:[%s169 + $0x18] sm:$0xff]
        %v3562 = vld [vmem:[%s169 + $0x28] sm:$0x7]
        %v3563 = vld [vmem:[%s175] sm:$0xf8]
        %v3564 = vld [vmem:[%s175 + $0x10] sm:$0xff]
        %v3565 = vld [vmem:[%s175 + $0x20] sm:$0x7]
        %v3566 = vld [vmem:[%s175 + $0x8] sm:$0xf8]
        %v3567 = vld [vmem:[%s175 + $0x18] sm:$0xff]
        %v3568 = vld [vmem:[%s175 + $0x28] sm:$0x7]
        %v3569 = vld [vmem:[%s180] sm:$0xf8]
        %v3570 = vld [vmem:[%s180 + $0x10] sm:$0xff]
        %v3571 = vld [vmem:[%s180 + $0x20] sm:$0x7]
        %v3572 = vld [vmem:[%s180 + $0x8] sm:$0xf8]
        %v3573 = vld [vmem:[%s180 + $0x18] sm:$0xff]
        %v3574 = vld [vmem:[%s180 + $0x28] sm:$0x7]
        %3581 = vrot.lane.b32.xlu0 %v3557, 127
        %v3582 = vpop.permute.xlu0 %3581
        %3583 = vrot.lane.b32.xlu0 %v3560, 127
        %v3584 = vpop.permute.xlu0 %3583
        %3585 = vrot.lane.b32.xlu0 %v3558, 127
        %v3586 = vpop.permute.xlu0 %3585
        %3587 = vrot.lane.b32.xlu0 %v3561, 127
        %v3588 = vpop.permute.xlu0 %3587
        %3589 = vrot.lane.b32.xlu0 %v3559, 127
        %v3590 = vpop.permute.xlu0 %3589
        %3591 = vrot.lane.b32.xlu0 %v3562, 127
        %v3592 = vpop.permute.xlu0 %3591
        %v3593 = vsel %vm197, %v3582, %v3584
        %v3594 = vsel %vm197, %v3586, %v3588
        %v3595 = vsel %vm197, %v3590, %v3592
        %3596 = vrot.lane.b32.xlu0 %v3557, 126
        %v3597 = vpop.permute.xlu0 %3596
        %3598 = vrot.lane.b32.xlu0 %v3560, 126
        %v3599 = vpop.permute.xlu0 %3598
        %3600 = vrot.lane.b32.xlu0 %v3558, 126
        %v3601 = vpop.permute.xlu0 %3600
        %3602 = vrot.lane.b32.xlu0 %v3561, 126
        %v3603 = vpop.permute.xlu0 %3602
        %3604 = vrot.lane.b32.xlu0 %v3559, 126
        %v3605 = vpop.permute.xlu0 %3604
        %3606 = vrot.lane.b32.xlu0 %v3562, 126
        %v3607 = vpop.permute.xlu0 %3606
        %v3608 = vsel %vm210, %v3597, %v3599
        %v3609 = vsel %vm210, %v3601, %v3603
        %v3610 = vsel %vm210, %v3605, %v3607
        %3611 = vrot.lane.b32.xlu0 %v3557, 125
        %v3612 = vpop.permute.xlu0 %3611
        %3613 = vrot.lane.b32.xlu0 %v3560, 125
        %v3614 = vpop.permute.xlu0 %3613
        %3615 = vrot.lane.b32.xlu0 %v3558, 125
        %v3616 = vpop.permute.xlu0 %3615
        %3617 = vrot.lane.b32.xlu0 %v3561, 125
        %v3618 = vpop.permute.xlu0 %3617
        %3619 = vrot.lane.b32.xlu0 %v3559, 125
        %v3620 = vpop.permute.xlu0 %3619
        %3621 = vrot.lane.b32.xlu0 %v3562, 125
        %v3622 = vpop.permute.xlu0 %3621
        %v3623 = vsel %vm223, %v3612, %v3614
        %v3624 = vsel %vm223, %v3616, %v3618
        %v3625 = vsel %vm223, %v3620, %v3622
        %3626 = vrot.lane.b32.xlu0 %v3557, 124
        %v3627 = vpop.permute.xlu0 %3626
        %3628 = vrot.lane.b32.xlu0 %v3560, 124
        %v3629 = vpop.permute.xlu0 %3628
        %3630 = vrot.lane.b32.xlu0 %v3558, 124
        %v3631 = vpop.permute.xlu0 %3630
        %3632 = vrot.lane.b32.xlu0 %v3561, 124
        %v3633 = vpop.permute.xlu0 %3632
        %3634 = vrot.lane.b32.xlu0 %v3559, 124
        %v3635 = vpop.permute.xlu0 %3634
        %3636 = vrot.lane.b32.xlu0 %v3562, 124
        %v3637 = vpop.permute.xlu0 %3636
        %v3638 = vsel %vm236, %v3627, %v3629
        %v3639 = vsel %vm236, %v3631, %v3633
        %v3640 = vsel %vm236, %v3635, %v3637
        %3647 = vrot.lane.b32.xlu0 %v3563, 127
        %v3648 = vpop.permute.xlu0 %3647
        %3649 = vrot.lane.b32.xlu0 %v3566, 127
        %v3650 = vpop.permute.xlu0 %3649
        %3651 = vrot.lane.b32.xlu0 %v3564, 127
        %v3652 = vpop.permute.xlu0 %3651
        %3653 = vrot.lane.b32.xlu0 %v3567, 127
        %v3654 = vpop.permute.xlu0 %3653
        %3655 = vrot.lane.b32.xlu0 %v3565, 127
        %v3656 = vpop.permute.xlu0 %3655
        %3657 = vrot.lane.b32.xlu0 %v3568, 127
        %v3658 = vpop.permute.xlu0 %3657
        %v3659 = vsel %vm197, %v3648, %v3650
        %v3660 = vsel %vm197, %v3652, %v3654
        %v3661 = vsel %vm197, %v3656, %v3658
        %3662 = vrot.lane.b32.xlu0 %v3563, 126
        %v3663 = vpop.permute.xlu0 %3662
        %3664 = vrot.lane.b32.xlu0 %v3566, 126
        %v3665 = vpop.permute.xlu0 %3664
        %3666 = vrot.lane.b32.xlu0 %v3564, 126
        %v3667 = vpop.permute.xlu0 %3666
        %3668 = vrot.lane.b32.xlu0 %v3567, 126
        %v3669 = vpop.permute.xlu0 %3668
        %3670 = vrot.lane.b32.xlu0 %v3565, 126
        %v3671 = vpop.permute.xlu0 %3670
        %3672 = vrot.lane.b32.xlu0 %v3568, 126
        %v3673 = vpop.permute.xlu0 %3672
        %v3674 = vsel %vm210, %v3663, %v3665
        %v3675 = vsel %vm210, %v3667, %v3669
        %v3676 = vsel %vm210, %v3671, %v3673
        %3677 = vrot.lane.b32.xlu0 %v3563, 125
        %v3678 = vpop.permute.xlu0 %3677
        %3679 = vrot.lane.b32.xlu0 %v3566, 125
        %v3680 = vpop.permute.xlu0 %3679
        %3681 = vrot.lane.b32.xlu0 %v3564, 125
        %v3682 = vpop.permute.xlu0 %3681
        %3683 = vrot.lane.b32.xlu0 %v3567, 125
        %v3684 = vpop.permute.xlu0 %3683
        %3685 = vrot.lane.b32.xlu0 %v3565, 125
        %v3686 = vpop.permute.xlu0 %3685
        %3687 = vrot.lane.b32.xlu0 %v3568, 125
        %v3688 = vpop.permute.xlu0 %3687
        %v3689 = vsel %vm223, %v3678, %v3680
        %v3690 = vsel %vm223, %v3682, %v3684
        %v3691 = vsel %vm223, %v3686, %v3688
        %3692 = vrot.lane.b32.xlu0 %v3563, 124
        %v3693 = vpop.permute.xlu0 %3692
        %3694 = vrot.lane.b32.xlu0 %v3566, 124
        %v3695 = vpop.permute.xlu0 %3694
        %3696 = vrot.lane.b32.xlu0 %v3564, 124
        %v3697 = vpop.permute.xlu0 %3696
        %3698 = vrot.lane.b32.xlu0 %v3567, 124
        %v3699 = vpop.permute.xlu0 %3698
        %3700 = vrot.lane.b32.xlu0 %v3565, 124
        %v3701 = vpop.permute.xlu0 %3700
        %3702 = vrot.lane.b32.xlu0 %v3568, 124
        %v3703 = vpop.permute.xlu0 %3702
        %v3704 = vsel %vm236, %v3693, %v3695
        %v3705 = vsel %vm236, %v3697, %v3699
        %v3706 = vsel %vm236, %v3701, %v3703
        %3713 = vrot.lane.b32.xlu0 %v3569, 127
        %v3714 = vpop.permute.xlu0 %3713
        %3715 = vrot.lane.b32.xlu0 %v3572, 127
        %v3716 = vpop.permute.xlu0 %3715
        %3717 = vrot.lane.b32.xlu0 %v3570, 127
        %v3718 = vpop.permute.xlu0 %3717
        %3719 = vrot.lane.b32.xlu0 %v3573, 127
        %v3720 = vpop.permute.xlu0 %3719
        %3721 = vrot.lane.b32.xlu0 %v3571, 127
        %v3722 = vpop.permute.xlu0 %3721
        %3723 = vrot.lane.b32.xlu0 %v3574, 127
        %v3724 = vpop.permute.xlu0 %3723
        %v3725 = vsel %vm197, %v3714, %v3716
        %v3726 = vsel %vm197, %v3718, %v3720
        %v3727 = vsel %vm197, %v3722, %v3724
        %3728 = vrot.lane.b32.xlu0 %v3569, 126
        %v3729 = vpop.permute.xlu0 %3728
        %3730 = vrot.lane.b32.xlu0 %v3572, 126
        %v3731 = vpop.permute.xlu0 %3730
        %3732 = vrot.lane.b32.xlu0 %v3570, 126
        %v3733 = vpop.permute.xlu0 %3732
        %3734 = vrot.lane.b32.xlu0 %v3573, 126
        %v3735 = vpop.permute.xlu0 %3734
        %3736 = vrot.lane.b32.xlu0 %v3571, 126
        %v3737 = vpop.permute.xlu0 %3736
        %3738 = vrot.lane.b32.xlu0 %v3574, 126
        %v3739 = vpop.permute.xlu0 %3738
        %v3740 = vsel %vm210, %v3729, %v3731
        %v3741 = vsel %vm210, %v3733, %v3735
        %v3742 = vsel %vm210, %v3737, %v3739
        %3743 = vrot.lane.b32.xlu0 %v3569, 125
        %v3744 = vpop.permute.xlu0 %3743
        %3745 = vrot.lane.b32.xlu0 %v3572, 125
        %v3746 = vpop.permute.xlu0 %3745
        %3747 = vrot.lane.b32.xlu0 %v3570, 125
        %v3748 = vpop.permute.xlu0 %3747
        %3749 = vrot.lane.b32.xlu0 %v3573, 125
        %v3750 = vpop.permute.xlu0 %3749
        %3751 = vrot.lane.b32.xlu0 %v3571, 125
        %v3752 = vpop.permute.xlu0 %3751
        %3753 = vrot.lane.b32.xlu0 %v3574, 125
        %v3754 = vpop.permute.xlu0 %3753
        %v3755 = vsel %vm223, %v3744, %v3746
        %v3756 = vsel %vm223, %v3748, %v3750
        %v3757 = vsel %vm223, %v3752, %v3754
        %3758 = vrot.lane.b32.xlu0 %v3569, 124
        %v3759 = vpop.permute.xlu0 %3758
        %3760 = vrot.lane.b32.xlu0 %v3572, 124
        %v3761 = vpop.permute.xlu0 %3760
        %3762 = vrot.lane.b32.xlu0 %v3570, 124
        %v3763 = vpop.permute.xlu0 %3762
        %3764 = vrot.lane.b32.xlu0 %v3573, 124
        %v3765 = vpop.permute.xlu0 %3764
        %3766 = vrot.lane.b32.xlu0 %v3571, 124
        %v3767 = vpop.permute.xlu0 %3766
        %3768 = vrot.lane.b32.xlu0 %v3574, 124
        %v3769 = vpop.permute.xlu0 %3768
        %v3770 = vsel %vm236, %v3759, %v3761
        %v3771 = vsel %vm236, %v3763, %v3765
        %v3772 = vsel %vm236, %v3767, %v3769
        %vm3773 = vcmask 1044480
        %v3774 = vrot.slane %v3557, 3
        %v3775 = vrot.slane %v3558, 3
        %v3776 = vsel %vm3773, %v3774, %v3775
        %v3777 = vrot.slane %v3559, 3
        %v3778 = vsel %vm3773, %v3775, %v3777
        %v3779 = vrot.slane %v3593, 3
        %v3780 = vrot.slane %v3594, 3
        %v3781 = vsel %vm3773, %v3779, %v3780
        %v3782 = vrot.slane %v3595, 3
        %v3783 = vsel %vm3773, %v3780, %v3782
        %v3784 = vrot.slane %v3608, 3
        %v3785 = vrot.slane %v3609, 3
        %v3786 = vsel %vm3773, %v3784, %v3785
        %v3787 = vrot.slane %v3610, 3
        %v3788 = vsel %vm3773, %v3785, %v3787
        %v3789 = vrot.slane %v3623, 3
        %v3790 = vrot.slane %v3624, 3
        %v3791 = vsel %vm3773, %v3789, %v3790
        %v3792 = vrot.slane %v3625, 3
        %v3793 = vsel %vm3773, %v3790, %v3792
        %v3794 = vrot.slane %v3638, 3
        %v3795 = vrot.slane %v3639, 3
        %v3796 = vsel %vm3773, %v3794, %v3795
        %v3797 = vrot.slane %v3640, 3
        %v3798 = vsel %vm3773, %v3795, %v3797
        %v3799 = vrot.slane %v3563, 3
        %v3800 = vrot.slane %v3564, 3
        %v3801 = vsel %vm3773, %v3799, %v3800
        %v3802 = vrot.slane %v3565, 3
        %v3803 = vsel %vm3773, %v3800, %v3802
        %v3804 = vrot.slane %v3659, 3
        %v3805 = vrot.slane %v3660, 3
        %v3806 = vsel %vm3773, %v3804, %v3805
        %v3807 = vrot.slane %v3661, 3
        %v3808 = vsel %vm3773, %v3805, %v3807
        %v3809 = vrot.slane %v3674, 3
        %v3810 = vrot.slane %v3675, 3
        %v3811 = vsel %vm3773, %v3809, %v3810
        %v3812 = vrot.slane %v3676, 3
        %v3813 = vsel %vm3773, %v3810, %v3812
        %v3814 = vrot.slane %v3689, 3
        %v3815 = vrot.slane %v3690, 3
        %v3816 = vsel %vm3773, %v3814, %v3815
        %v3817 = vrot.slane %v3691, 3
        %v3818 = vsel %vm3773, %v3815, %v3817
        %v3819 = vrot.slane %v3704, 3
        %v3820 = vrot.slane %v3705, 3
        %v3821 = vsel %vm3773, %v3819, %v3820
        %v3822 = vrot.slane %v3706, 3
        %v3823 = vsel %vm3773, %v3820, %v3822
        %v3824 = vrot.slane %v3569, 3
        %v3825 = vrot.slane %v3570, 3
        %v3826 = vsel %vm3773, %v3824, %v3825
        %v3827 = vrot.slane %v3571, 3
        %v3828 = vsel %vm3773, %v3825, %v3827
        %v3829 = vrot.slane %v3725, 3
        %v3830 = vrot.slane %v3726, 3
        %v3831 = vsel %vm3773, %v3829, %v3830
        %v3832 = vrot.slane %v3727, 3
        %v3833 = vsel %vm3773, %v3830, %v3832
        %v3834 = vrot.slane %v3740, 3
        %v3835 = vrot.slane %v3741, 3
        %v3836 = vsel %vm3773, %v3834, %v3835
        %v3837 = vrot.slane %v3742, 3
        %v3838 = vsel %vm3773, %v3835, %v3837
        %v3839 = vrot.slane %v3755, 3
        %v3840 = vrot.slane %v3756, 3
        %v3841 = vsel %vm3773, %v3839, %v3840
        %v3842 = vrot.slane %v3757, 3
        %v3843 = vsel %vm3773, %v3840, %v3842
        %v3844 = vrot.slane %v3770, 3
        %v3845 = vrot.slane %v3771, 3
        %v3846 = vsel %vm3773, %v3844, %v3845
        %v3847 = vrot.slane %v3772, 3
        %v3848 = vsel %vm3773, %v3845, %v3847
        %v3879 = vrot.slane %v3786, 4
        %v3880 = vsel %vm346, %v3879, %v3776
        %v3881 = vrot.slane %v3776, 4
        %v3882 = vsel %vm346, %v3786, %v3881
        %v3884 = vunpack.c.l.s4 1983009808
        %v3885 = vunpack.c.0.s8 %v3884
        %v3886 = vperm.slane %v3880, %v3885
        %v3888 = vunpack.c.l.s4 1983009808
        %v3889 = vunpack.c.0.s8 %v3888
        %v3890 = vperm.slane %v3882, %v3889
        %v3891 = vrot.slane %v3791, 4
        %v3892 = vsel %vm346, %v3891, %v3781
        %v3893 = vrot.slane %v3781, 4
        %v3894 = vsel %vm346, %v3791, %v3893
        %v3896 = vunpack.c.l.s4 1983009808
        %v3897 = vunpack.c.0.s8 %v3896
        %v3898 = vperm.slane %v3892, %v3897
        %v3900 = vunpack.c.l.s4 1983009808
        %v3901 = vunpack.c.0.s8 %v3900
        %v3902 = vperm.slane %v3894, %v3901
        %v3903 = vrot.slane %v3806, 4
        %v3904 = vsel %vm346, %v3903, %v3796
        %v3905 = vrot.slane %v3796, 4
        %v3906 = vsel %vm346, %v3806, %v3905
        %v3908 = vunpack.c.l.s4 1983009808
        %v3909 = vunpack.c.0.s8 %v3908
        %v3910 = vperm.slane %v3904, %v3909
        %v3912 = vunpack.c.l.s4 1983009808
        %v3913 = vunpack.c.0.s8 %v3912
        %v3914 = vperm.slane %v3906, %v3913
        %v3915 = vrot.slane %v3811, 4
        %v3916 = vsel %vm346, %v3915, %v3801
        %v3917 = vrot.slane %v3801, 4
        %v3918 = vsel %vm346, %v3811, %v3917
        %v3920 = vunpack.c.l.s4 1983009808
        %v3921 = vunpack.c.0.s8 %v3920
        %v3922 = vperm.slane %v3916, %v3921
        %v3924 = vunpack.c.l.s4 1983009808
        %v3925 = vunpack.c.0.s8 %v3924
        %v3926 = vperm.slane %v3918, %v3925
        %v3927 = vrot.slane %v3898, 4
        %v3928 = vsel %vm346, %v3927, %v3886
        %v3929 = vrot.slane %v3886, 4
        %v3930 = vsel %vm346, %v3898, %v3929
        %v3932 = vunpack.c.l.s4 1934713408
        %v3933 = vunpack.c.0.s8 %v3932
        %v3934 = vperm.slane %v3928, %v3933
        %v3936 = vunpack.c.l.s4 1934713408
        %v3937 = vunpack.c.0.s8 %v3936
        %v3938 = vperm.slane %v3930, %v3937
        %v3939 = vrot.slane %v3902, 4
        %v3940 = vsel %vm346, %v3939, %v3890
        %v3941 = vrot.slane %v3890, 4
        %v3942 = vsel %vm346, %v3902, %v3941
        %v3944 = vunpack.c.l.s4 1934713408
        %v3945 = vunpack.c.0.s8 %v3944
        %v3946 = vperm.slane %v3940, %v3945
        %v3948 = vunpack.c.l.s4 1934713408
        %v3949 = vunpack.c.0.s8 %v3948
        %v3950 = vperm.slane %v3942, %v3949
        %v3951 = vrot.slane %v3922, 4
        %v3952 = vsel %vm346, %v3951, %v3910
        %v3953 = vrot.slane %v3910, 4
        %v3954 = vsel %vm346, %v3922, %v3953
        %v3956 = vunpack.c.l.s4 1934713408
        %v3957 = vunpack.c.0.s8 %v3956
        %v3958 = vperm.slane %v3952, %v3957
        %v3960 = vunpack.c.l.s4 1934713408
        %v3961 = vunpack.c.0.s8 %v3960
        %v3962 = vperm.slane %v3954, %v3961
        %v3963 = vrot.slane %v3926, 4
        %v3964 = vsel %vm346, %v3963, %v3914
        %v3965 = vrot.slane %v3914, 4
        %v3966 = vsel %vm346, %v3926, %v3965
        %v3968 = vunpack.c.l.s4 1934713408
        %v3969 = vunpack.c.0.s8 %v3968
        %v3970 = vperm.slane %v3964, %v3969
        %v3972 = vunpack.c.l.s4 1934713408
        %v3973 = vunpack.c.0.s8 %v3972
        %v3974 = vperm.slane %v3966, %v3973
        %v3975 = vrot.slane %v3958, 4
        %v3976 = vsel %vm346, %v3975, %v3934
        %v3977 = vrot.slane %v3934, 4
        %v3978 = vsel %vm346, %v3958, %v3977
        %v3979 = vrot.slane %v3962, 4
        %v3980 = vsel %vm346, %v3979, %v3938
        %v3981 = vrot.slane %v3938, 4
        %v3982 = vsel %vm346, %v3962, %v3981
        %v3983 = vrot.slane %v3970, 4
        %v3984 = vsel %vm346, %v3983, %v3946
        %v3985 = vrot.slane %v3946, 4
        %v3986 = vsel %vm346, %v3970, %v3985
        %v3987 = vrot.slane %v3974, 4
        %v3988 = vsel %vm346, %v3987, %v3950
        %v3989 = vrot.slane %v3950, 4
        %v3990 = vsel %vm346, %v3974, %v3989
        %v3991 = vrot.slane %v3826, 4
        %v3992 = vsel %vm346, %v3991, %v3816
        %v3993 = vrot.slane %v3816, 4
        %v3994 = vsel %vm346, %v3826, %v3993
        %v3996 = vunpack.c.l.s4 1983009808
        %v3997 = vunpack.c.0.s8 %v3996
        %v3998 = vperm.slane %v3992, %v3997
        %v4000 = vunpack.c.l.s4 1983009808
        %v4001 = vunpack.c.0.s8 %v4000
        %v4002 = vperm.slane %v3994, %v4001
        %v4003 = vrot.slane %v3831, 4
        %v4004 = vsel %vm346, %v4003, %v3821
        %v4005 = vrot.slane %v3821, 4
        %v4006 = vsel %vm346, %v3831, %v4005
        %v4008 = vunpack.c.l.s4 1983009808
        %v4009 = vunpack.c.0.s8 %v4008
        %v4010 = vperm.slane %v4004, %v4009
        %v4012 = vunpack.c.l.s4 1983009808
        %v4013 = vunpack.c.0.s8 %v4012
        %v4014 = vperm.slane %v4006, %v4013
        %v4015 = vrot.slane %v3846, 4
        %v4016 = vsel %vm346, %v4015, %v3836
        %v4017 = vrot.slane %v3836, 4
        %v4018 = vsel %vm346, %v3846, %v4017
        %v4020 = vunpack.c.l.s4 1983009808
        %v4021 = vunpack.c.0.s8 %v4020
        %v4022 = vperm.slane %v4016, %v4021
        %v4024 = vunpack.c.l.s4 1983009808
        %v4025 = vunpack.c.0.s8 %v4024
        %v4026 = vperm.slane %v4018, %v4025
        %v4027 = vrot.slane %v3841, 4
        %v4028 = vsel %vm346, 0.0, %v4027
        %v4030 = vunpack.c.l.s4 1983009808
        %v4031 = vunpack.c.0.s8 %v4030
        %v4032 = vperm.slane %v3841, %v4031
        %v4034 = vunpack.c.l.s4 1983009808
        %v4035 = vunpack.c.0.s8 %v4034
        %v4036 = vperm.slane %v4028, %v4035
        %v4037 = vrot.slane %v4010, 4
        %v4038 = vsel %vm346, %v4037, %v3998
        %v4039 = vrot.slane %v3998, 4
        %v4040 = vsel %vm346, %v4010, %v4039
        %v4042 = vunpack.c.l.s4 1934713408
        %v4043 = vunpack.c.0.s8 %v4042
        %v4044 = vperm.slane %v4038, %v4043
        %v4046 = vunpack.c.l.s4 1934713408
        %v4047 = vunpack.c.0.s8 %v4046
        %v4048 = vperm.slane %v4040, %v4047
        %v4049 = vrot.slane %v4014, 4
        %v4050 = vsel %vm346, %v4049, %v4002
        %v4051 = vrot.slane %v4002, 4
        %v4052 = vsel %vm346, %v4014, %v4051
        %v4054 = vunpack.c.l.s4 1934713408
        %v4055 = vunpack.c.0.s8 %v4054
        %v4056 = vperm.slane %v4050, %v4055
        %v4058 = vunpack.c.l.s4 1934713408
        %v4059 = vunpack.c.0.s8 %v4058
        %v4060 = vperm.slane %v4052, %v4059
        %v4061 = vrot.slane %v4032, 4
        %v4062 = vsel %vm346, %v4061, %v4022
        %v4063 = vrot.slane %v4022, 4
        %v4064 = vsel %vm346, %v4032, %v4063
        %v4066 = vunpack.c.l.s4 1934713408
        %v4067 = vunpack.c.0.s8 %v4066
        %v4068 = vperm.slane %v4062, %v4067
        %v4070 = vunpack.c.l.s4 1934713408
        %v4071 = vunpack.c.0.s8 %v4070
        %v4072 = vperm.slane %v4064, %v4071
        %v4073 = vrot.slane %v4036, 4
        %v4074 = vsel %vm346, %v4073, %v4026
        %v4075 = vrot.slane %v4026, 4
        %v4076 = vsel %vm346, %v4036, %v4075
        %v4078 = vunpack.c.l.s4 1934713408
        %v4079 = vunpack.c.0.s8 %v4078
        %v4080 = vperm.slane %v4074, %v4079
        %v4082 = vunpack.c.l.s4 1934713408
        %v4083 = vunpack.c.0.s8 %v4082
        %v4084 = vperm.slane %v4076, %v4083
        %v4085 = vrot.slane %v4068, 4
        %v4086 = vsel %vm346, %v4085, %v4044
        %v4087 = vrot.slane %v4044, 4
        %v4088 = vsel %vm346, %v4068, %v4087
        %v4089 = vrot.slane %v4072, 4
        %v4090 = vsel %vm346, %v4089, %v4048
        %v4091 = vrot.slane %v4048, 4
        %v4092 = vsel %vm346, %v4072, %v4091
        %v4093 = vrot.slane %v4080, 4
        %v4094 = vsel %vm346, %v4093, %v4056
        %v4095 = vrot.slane %v4056, 4
        %v4096 = vsel %vm346, %v4080, %v4095
        %v4097 = vrot.slane %v4084, 4
        %v4098 = vsel %vm346, %v4097, %v4060
        %v4099 = vrot.slane %v4060, 4
        %v4100 = vsel %vm346, %v4084, %v4099
        %v4101 = vrot.slane %v3788, 4
        %v4102 = vsel %vm346, %v4101, %v3778
        %v4103 = vrot.slane %v3778, 4
        %v4104 = vsel %vm346, %v3788, %v4103
        %v4106 = vunpack.c.l.s4 1983009808
        %v4107 = vunpack.c.0.s8 %v4106
        %v4108 = vperm.slane %v4102, %v4107
        %v4110 = vunpack.c.l.s4 1983009808
        %v4111 = vunpack.c.0.s8 %v4110
        %v4112 = vperm.slane %v4104, %v4111
        %v4113 = vrot.slane %v3793, 4
        %v4114 = vsel %vm346, %v4113, %v3783
        %v4115 = vrot.slane %v3783, 4
        %v4116 = vsel %vm346, %v3793, %v4115
        %v4118 = vunpack.c.l.s4 1983009808
        %v4119 = vunpack.c.0.s8 %v4118
        %v4120 = vperm.slane %v4114, %v4119
        %v4122 = vunpack.c.l.s4 1983009808
        %v4123 = vunpack.c.0.s8 %v4122
        %v4124 = vperm.slane %v4116, %v4123
        %v4125 = vrot.slane %v3808, 4
        %v4126 = vsel %vm346, %v4125, %v3798
        %v4127 = vrot.slane %v3798, 4
        %v4128 = vsel %vm346, %v3808, %v4127
        %v4130 = vunpack.c.l.s4 1983009808
        %v4131 = vunpack.c.0.s8 %v4130
        %v4132 = vperm.slane %v4126, %v4131
        %v4134 = vunpack.c.l.s4 1983009808
        %v4135 = vunpack.c.0.s8 %v4134
        %v4136 = vperm.slane %v4128, %v4135
        %v4137 = vrot.slane %v3813, 4
        %v4138 = vsel %vm346, %v4137, %v3803
        %v4139 = vrot.slane %v3803, 4
        %v4140 = vsel %vm346, %v3813, %v4139
        %v4142 = vunpack.c.l.s4 1983009808
        %v4143 = vunpack.c.0.s8 %v4142
        %v4144 = vperm.slane %v4138, %v4143
        %v4146 = vunpack.c.l.s4 1983009808
        %v4147 = vunpack.c.0.s8 %v4146
        %v4148 = vperm.slane %v4140, %v4147
        %v4149 = vrot.slane %v4120, 4
        %v4150 = vsel %vm346, %v4149, %v4108
        %v4151 = vrot.slane %v4108, 4
        %v4152 = vsel %vm346, %v4120, %v4151
        %v4154 = vunpack.c.l.s4 1934713408
        %v4155 = vunpack.c.0.s8 %v4154
        %v4156 = vperm.slane %v4150, %v4155
        %v4158 = vunpack.c.l.s4 1934713408
        %v4159 = vunpack.c.0.s8 %v4158
        %v4160 = vperm.slane %v4152, %v4159
        %v4161 = vrot.slane %v4124, 4
        %v4162 = vsel %vm346, %v4161, %v4112
        %v4163 = vrot.slane %v4112, 4
        %v4164 = vsel %vm346, %v4124, %v4163
        %v4166 = vunpack.c.l.s4 1934713408
        %v4167 = vunpack.c.0.s8 %v4166
        %v4168 = vperm.slane %v4162, %v4167
        %v4170 = vunpack.c.l.s4 1934713408
        %v4171 = vunpack.c.0.s8 %v4170
        %v4172 = vperm.slane %v4164, %v4171
        %v4173 = vrot.slane %v4144, 4
        %v4174 = vsel %vm346, %v4173, %v4132
        %v4175 = vrot.slane %v4132, 4
        %v4176 = vsel %vm346, %v4144, %v4175
        %v4178 = vunpack.c.l.s4 1934713408
        %v4179 = vunpack.c.0.s8 %v4178
        %v4180 = vperm.slane %v4174, %v4179
        %v4182 = vunpack.c.l.s4 1934713408
        %v4183 = vunpack.c.0.s8 %v4182
        %v4184 = vperm.slane %v4176, %v4183
        %v4185 = vrot.slane %v4148, 4
        %v4186 = vsel %vm346, %v4185, %v4136
        %v4187 = vrot.slane %v4136, 4
        %v4188 = vsel %vm346, %v4148, %v4187
        %v4190 = vunpack.c.l.s4 1934713408
        %v4191 = vunpack.c.0.s8 %v4190
        %v4192 = vperm.slane %v4186, %v4191
        %v4194 = vunpack.c.l.s4 1934713408
        %v4195 = vunpack.c.0.s8 %v4194
        %v4196 = vperm.slane %v4188, %v4195
        %v4197 = vrot.slane %v4180, 4
        %v4198 = vsel %vm346, %v4197, %v4156
        %v4199 = vrot.slane %v4156, 4
        %v4200 = vsel %vm346, %v4180, %v4199
        %v4201 = vrot.slane %v4184, 4
        %v4202 = vsel %vm346, %v4201, %v4160
        %v4203 = vrot.slane %v4160, 4
        %v4204 = vsel %vm346, %v4184, %v4203
        %v4205 = vrot.slane %v4192, 4
        %v4206 = vsel %vm346, %v4205, %v4168
        %v4207 = vrot.slane %v4168, 4
        %v4208 = vsel %vm346, %v4192, %v4207
        %v4209 = vrot.slane %v4196, 4
        %v4210 = vsel %vm346, %v4209, %v4172
        %v4211 = vrot.slane %v4172, 4
        %v4212 = vsel %vm346, %v4196, %v4211
        %v4213 = vrot.slane %v3828, 4
        %v4214 = vsel %vm346, %v4213, %v3818
        %v4215 = vrot.slane %v3818, 4
        %v4216 = vsel %vm346, %v3828, %v4215
        %v4218 = vunpack.c.l.s4 1983009808
        %v4219 = vunpack.c.0.s8 %v4218
        %v4220 = vperm.slane %v4214, %v4219
        %v4222 = vunpack.c.l.s4 1983009808
        %v4223 = vunpack.c.0.s8 %v4222
        %v4224 = vperm.slane %v4216, %v4223
        %v4225 = vrot.slane %v3833, 4
        %v4226 = vsel %vm346, %v4225, %v3823
        %v4227 = vrot.slane %v3823, 4
        %v4228 = vsel %vm346, %v3833, %v4227
        %v4230 = vunpack.c.l.s4 1983009808
        %v4231 = vunpack.c.0.s8 %v4230
        %v4232 = vperm.slane %v4226, %v4231
        %v4234 = vunpack.c.l.s4 1983009808
        %v4235 = vunpack.c.0.s8 %v4234
        %v4236 = vperm.slane %v4228, %v4235
        %v4237 = vrot.slane %v3848, 4
        %v4238 = vsel %vm346, %v4237, %v3838
        %v4239 = vrot.slane %v3838, 4
        %v4240 = vsel %vm346, %v3848, %v4239
        %v4242 = vunpack.c.l.s4 1983009808
        %v4243 = vunpack.c.0.s8 %v4242
        %v4244 = vperm.slane %v4238, %v4243
        %v4246 = vunpack.c.l.s4 1983009808
        %v4247 = vunpack.c.0.s8 %v4246
        %v4248 = vperm.slane %v4240, %v4247
        %v4249 = vrot.slane %v3843, 4
        %v4250 = vsel %vm346, 0.0, %v4249
        %v4252 = vunpack.c.l.s4 1983009808
        %v4253 = vunpack.c.0.s8 %v4252
        %v4254 = vperm.slane %v3843, %v4253
        %v4256 = vunpack.c.l.s4 1983009808
        %v4257 = vunpack.c.0.s8 %v4256
        %v4258 = vperm.slane %v4250, %v4257
        %v4259 = vrot.slane %v4232, 4
        %v4260 = vsel %vm346, %v4259, %v4220
        %v4261 = vrot.slane %v4220, 4
        %v4262 = vsel %vm346, %v4232, %v4261
        %v4264 = vunpack.c.l.s4 1934713408
        %v4265 = vunpack.c.0.s8 %v4264
        %v4266 = vperm.slane %v4260, %v4265
        %v4268 = vunpack.c.l.s4 1934713408
        %v4269 = vunpack.c.0.s8 %v4268
        %v4270 = vperm.slane %v4262, %v4269
        %v4271 = vrot.slane %v4236, 4
        %v4272 = vsel %vm346, %v4271, %v4224
        %v4273 = vrot.slane %v4224, 4
        %v4274 = vsel %vm346, %v4236, %v4273
        %v4276 = vunpack.c.l.s4 1934713408
        %v4277 = vunpack.c.0.s8 %v4276
        %v4278 = vperm.slane %v4272, %v4277
        %v4280 = vunpack.c.l.s4 1934713408
        %v4281 = vunpack.c.0.s8 %v4280
        %v4282 = vperm.slane %v4274, %v4281
        %v4283 = vrot.slane %v4254, 4
        %v4284 = vsel %vm346, %v4283, %v4244
        %v4285 = vrot.slane %v4244, 4
        %v4286 = vsel %vm346, %v4254, %v4285
        %v4288 = vunpack.c.l.s4 1934713408
        %v4289 = vunpack.c.0.s8 %v4288
        %v4290 = vperm.slane %v4284, %v4289
        %v4292 = vunpack.c.l.s4 1934713408
        %v4293 = vunpack.c.0.s8 %v4292
        %v4294 = vperm.slane %v4286, %v4293
        %v4295 = vrot.slane %v4258, 4
        %v4296 = vsel %vm346, %v4295, %v4248
        %v4297 = vrot.slane %v4248, 4
        %v4298 = vsel %vm346, %v4258, %v4297
        %v4300 = vunpack.c.l.s4 1934713408
        %v4301 = vunpack.c.0.s8 %v4300
        %v4302 = vperm.slane %v4296, %v4301
        %v4304 = vunpack.c.l.s4 1934713408
        %v4305 = vunpack.c.0.s8 %v4304
        %v4306 = vperm.slane %v4298, %v4305
        %v4307 = vrot.slane %v4290, 4
        %v4308 = vsel %vm346, %v4307, %v4266
        %v4309 = vrot.slane %v4266, 4
        %v4310 = vsel %vm346, %v4290, %v4309
        %v4311 = vrot.slane %v4294, 4
        %v4312 = vsel %vm346, %v4311, %v4270
        %v4313 = vrot.slane %v4270, 4
        %v4314 = vsel %vm346, %v4294, %v4313
        %v4315 = vrot.slane %v4302, 4
        %v4316 = vsel %vm346, %v4315, %v4278
        %v4317 = vrot.slane %v4278, 4
        %v4318 = vsel %vm346, %v4302, %v4317
        %v4319 = vrot.slane %v4306, 4
        %v4320 = vsel %vm346, %v4319, %v4282
        %v4321 = vrot.slane %v4282, 4
        %v4322 = vsel %vm346, %v4306, %v4321
        %s4323 = scalar_lea.vmem %s1, 48
        %v4324 = vld [vmem:[%s4323] sm:$0xff]
        %v4325 = vld [vmem:[%s4323 + $0x8] sm:$0xff]
        %v4327 = vsel %vm1489, %v4324, 0
        %v4330 = vsel %vm1489, %v4325, 0
        %v4333 = vsel %vm936, %v4086, 0
        %v4336 = vsel %vm936, %v4088, 0
        %v4339 = vsel %vm936, %v4090, 0
        %v4342 = vsel %vm936, %v4092, 0
        %v4345 = vsel %vm936, %v4094, 0
        %v4348 = vsel %vm936, %v4096, 0
        %v4351 = vsel %vm936, %v4098, 0
        %v4354 = vsel %vm936, %v4100, 0
        %v4357 = vsel %vm936, %v4308, 0
        %v4360 = vsel %vm936, %v4310, 0
        %v4363 = vsel %vm936, %v4312, 0
        %v4366 = vsel %vm936, %v4314, 0
        %v4369 = vsel %vm936, %v4316, 0
        %v4372 = vsel %vm936, %v4318, 0
        %v4375 = vsel %vm936, %v4320, 0
        %v4378 = vsel %vm936, %v4322, 0
        %4380 = vmatpush.msra.mxu0 0.0
        %4381 = vmatpush.msra.mxu0 0.0
        %4382 = vmatpush.msra.mxu0 0.0
        %4383 = vmatpush.msra.mxu0 0.0
        %4384 = vmatpush.msra.mxu0 0.0
        %4385 = vmatpush.msra.mxu0 0.0
        %4386 = vmatpush.msra.mxu0 0.0
        %4387 = vmatpush.msra.mxu0 0.0
        %4388 = vmatpush.msra.mxu0 0.0
        %4389 = vmatpush.msra.mxu0 0.0
        %4390 = vmatpush.msra.mxu0 0.0
        %4391 = vmatpush.msra.mxu0 0.0
        %4392 = vmatpush.msra.mxu0 0.0
        %4393 = vmatpush.msra.mxu0 0.0
        %4394 = vmatpush.msra.mxu0 %v4333
        %4395 = vmatpush.msra.mxu0 %v3976
        %4396 = vmatmul.f32.gmra.mxu0 %v4327
        %v4397 = vpop.f32.mrf.mxu0
        %v4398 = vadd.f32 0.0, %v4397
        %4399 = vmatmul.f32.gmra.mxu0 %v4330
        %v4400 = vpop.f32.mrf.mxu0
        %v4401 = vadd.f32 0.0, %v4400
        %4402 = vdwg.mxu0
        %4403 = vmatpush.msra.mxu0 0.0
        %4404 = vmatpush.msra.mxu0 0.0
        %4405 = vmatpush.msra.mxu0 0.0
        %4406 = vmatpush.msra.mxu0 0.0
        %4407 = vmatpush.msra.mxu0 0.0
        %4408 = vmatpush.msra.mxu0 0.0
        %4409 = vmatpush.msra.mxu0 0.0
        %4410 = vmatpush.msra.mxu0 0.0
        %4411 = vmatpush.msra.mxu0 0.0
        %4412 = vmatpush.msra.mxu0 0.0
        %4413 = vmatpush.msra.mxu0 0.0
        %4414 = vmatpush.msra.mxu0 0.0
        %4415 = vmatpush.msra.mxu0 0.0
        %4416 = vmatpush.msra.mxu0 0.0
        %4417 = vmatpush.msra.mxu0 %v4336
        %4418 = vmatpush.msra.mxu0 %v3978
        %4419 = vmatmul.f32.gmra.mxu0 %v4327
        %v4420 = vpop.f32.mrf.mxu0
        %v4421 = vadd.f32 0.0, %v4420
        %4422 = vmatmul.f32.gmra.mxu0 %v4330
        %v4423 = vpop.f32.mrf.mxu0
        %v4424 = vadd.f32 0.0, %v4423
        %4425 = vdwg.mxu0
        %4426 = vmatpush.msra.mxu0 0.0
        %4427 = vmatpush.msra.mxu0 0.0
        %4428 = vmatpush.msra.mxu0 0.0
        %4429 = vmatpush.msra.mxu0 0.0
        %4430 = vmatpush.msra.mxu0 0.0
        %4431 = vmatpush.msra.mxu0 0.0
        %4432 = vmatpush.msra.mxu0 0.0
        %4433 = vmatpush.msra.mxu0 0.0
        %4434 = vmatpush.msra.mxu0 0.0
        %4435 = vmatpush.msra.mxu0 0.0
        %4436 = vmatpush.msra.mxu0 0.0
        %4437 = vmatpush.msra.mxu0 0.0
        %4438 = vmatpush.msra.mxu0 0.0
        %4439 = vmatpush.msra.mxu0 0.0
        %4440 = vmatpush.msra.mxu0 %v4339
        %4441 = vmatpush.msra.mxu0 %v3980
        %4442 = vmatmul.f32.gmra.mxu0 %v4327
        %v4443 = vpop.f32.mrf.mxu0
        %v4444 = vadd.f32 0.0, %v4443
        %4445 = vmatmul.f32.gmra.mxu0 %v4330
        %v4446 = vpop.f32.mrf.mxu0
        %v4447 = vadd.f32 0.0, %v4446
        %4448 = vdwg.mxu0
        %4449 = vmatpush.msra.mxu0 0.0
        %4450 = vmatpush.msra.mxu0 0.0
        %4451 = vmatpush.msra.mxu0 0.0
        %4452 = vmatpush.msra.mxu0 0.0
        %4453 = vmatpush.msra.mxu0 0.0
        %4454 = vmatpush.msra.mxu0 0.0
        %4455 = vmatpush.msra.mxu0 0.0
        %4456 = vmatpush.msra.mxu0 0.0
        %4457 = vmatpush.msra.mxu0 0.0
        %4458 = vmatpush.msra.mxu0 0.0
        %4459 = vmatpush.msra.mxu0 0.0
        %4460 = vmatpush.msra.mxu0 0.0
        %4461 = vmatpush.msra.mxu0 0.0
        %4462 = vmatpush.msra.mxu0 0.0
        %4463 = vmatpush.msra.mxu0 %v4342
        %4464 = vmatpush.msra.mxu0 %v3982
        %4465 = vmatmul.f32.gmra.mxu0 %v4327
        %v4466 = vpop.f32.mrf.mxu0
        %v4467 = vadd.f32 0.0, %v4466
        %4468 = vmatmul.f32.gmra.mxu0 %v4330
        %v4469 = vpop.f32.mrf.mxu0
        %v4470 = vadd.f32 0.0, %v4469
        %4471 = vdwg.mxu0
        %4472 = vmatpush.msra.mxu0 0.0
        %4473 = vmatpush.msra.mxu0 0.0
        %4474 = vmatpush.msra.mxu0 0.0
        %4475 = vmatpush.msra.mxu0 0.0
        %4476 = vmatpush.msra.mxu0 0.0
        %4477 = vmatpush.msra.mxu0 0.0
        %4478 = vmatpush.msra.mxu0 0.0
        %4479 = vmatpush.msra.mxu0 0.0
        %4480 = vmatpush.msra.mxu0 0.0
        %4481 = vmatpush.msra.mxu0 0.0
        %4482 = vmatpush.msra.mxu0 0.0
        %4483 = vmatpush.msra.mxu0 0.0
        %4484 = vmatpush.msra.mxu0 0.0
        %4485 = vmatpush.msra.mxu0 0.0
        %4486 = vmatpush.msra.mxu0 %v4345
        %4487 = vmatpush.msra.mxu0 %v3984
        %4488 = vmatmul.f32.gmra.mxu0 %v4327
        %v4489 = vpop.f32.mrf.mxu0
        %v4490 = vadd.f32 0.0, %v4489
        %4491 = vmatmul.f32.gmra.mxu0 %v4330
        %v4492 = vpop.f32.mrf.mxu0
        %v4493 = vadd.f32 0.0, %v4492
        %4494 = vdwg.mxu0
        %4495 = vmatpush.msra.mxu0 0.0
        %4496 = vmatpush.msra.mxu0 0.0
        %4497 = vmatpush.msra.mxu0 0.0
        %4498 = vmatpush.msra.mxu0 0.0
        %4499 = vmatpush.msra.mxu0 0.0
        %4500 = vmatpush.msra.mxu0 0.0
        %4501 = vmatpush.msra.mxu0 0.0
        %4502 = vmatpush.msra.mxu0 0.0
        %4503 = vmatpush.msra.mxu0 0.0
        %4504 = vmatpush.msra.mxu0 0.0
        %4505 = vmatpush.msra.mxu0 0.0
        %4506 = vmatpush.msra.mxu0 0.0
        %4507 = vmatpush.msra.mxu0 0.0
        %4508 = vmatpush.msra.mxu0 0.0
        %4509 = vmatpush.msra.mxu0 %v4348
        %4510 = vmatpush.msra.mxu0 %v3986
        %4511 = vmatmul.f32.gmra.mxu0 %v4327
        %v4512 = vpop.f32.mrf.mxu0
        %v4513 = vadd.f32 0.0, %v4512
        %4514 = vmatmul.f32.gmra.mxu0 %v4330
        %v4515 = vpop.f32.mrf.mxu0
        %v4516 = vadd.f32 0.0, %v4515
        %4517 = vdwg.mxu0
        %4518 = vmatpush.msra.mxu0 0.0
        %4519 = vmatpush.msra.mxu0 0.0
        %4520 = vmatpush.msra.mxu0 0.0
        %4521 = vmatpush.msra.mxu0 0.0
        %4522 = vmatpush.msra.mxu0 0.0
        %4523 = vmatpush.msra.mxu0 0.0
        %4524 = vmatpush.msra.mxu0 0.0
        %4525 = vmatpush.msra.mxu0 0.0
        %4526 = vmatpush.msra.mxu0 0.0
        %4527 = vmatpush.msra.mxu0 0.0
        %4528 = vmatpush.msra.mxu0 0.0
        %4529 = vmatpush.msra.mxu0 0.0
        %4530 = vmatpush.msra.mxu0 0.0
        %4531 = vmatpush.msra.mxu0 0.0
        %4532 = vmatpush.msra.mxu0 %v4351
        %4533 = vmatpush.msra.mxu0 %v3988
        %4534 = vmatmul.f32.gmra.mxu0 %v4327
        %v4535 = vpop.f32.mrf.mxu0
        %v4536 = vadd.f32 0.0, %v4535
        %4537 = vmatmul.f32.gmra.mxu0 %v4330
        %v4538 = vpop.f32.mrf.mxu0
        %v4539 = vadd.f32 0.0, %v4538
        %4540 = vdwg.mxu0
        %4541 = vmatpush.msra.mxu0 0.0
        %4542 = vmatpush.msra.mxu0 0.0
        %4543 = vmatpush.msra.mxu0 0.0
        %4544 = vmatpush.msra.mxu0 0.0
        %4545 = vmatpush.msra.mxu0 0.0
        %4546 = vmatpush.msra.mxu0 0.0
        %4547 = vmatpush.msra.mxu0 0.0
        %4548 = vmatpush.msra.mxu0 0.0
        %4549 = vmatpush.msra.mxu0 0.0
        %4550 = vmatpush.msra.mxu0 0.0
        %4551 = vmatpush.msra.mxu0 0.0
        %4552 = vmatpush.msra.mxu0 0.0
        %4553 = vmatpush.msra.mxu0 0.0
        %4554 = vmatpush.msra.mxu0 0.0
        %4555 = vmatpush.msra.mxu0 %v4354
        %4556 = vmatpush.msra.mxu0 %v3990
        %4557 = vmatmul.f32.gmra.mxu0 %v4327
        %v4558 = vpop.f32.mrf.mxu0
        %v4559 = vadd.f32 0.0, %v4558
        %4560 = vmatmul.f32.gmra.mxu0 %v4330
        %v4561 = vpop.f32.mrf.mxu0
        %v4562 = vadd.f32 0.0, %v4561
        %4563 = vdwg.mxu0
        %4564 = vmatpush.msra.mxu0 0.0
        %4565 = vmatpush.msra.mxu0 0.0
        %4566 = vmatpush.msra.mxu0 0.0
        %4567 = vmatpush.msra.mxu0 0.0
        %4568 = vmatpush.msra.mxu0 0.0
        %4569 = vmatpush.msra.mxu0 0.0
        %4570 = vmatpush.msra.mxu0 0.0
        %4571 = vmatpush.msra.mxu0 0.0
        %4572 = vmatpush.msra.mxu0 0.0
        %4573 = vmatpush.msra.mxu0 0.0
        %4574 = vmatpush.msra.mxu0 0.0
        %4575 = vmatpush.msra.mxu0 0.0
        %4576 = vmatpush.msra.mxu0 0.0
        %4577 = vmatpush.msra.mxu0 0.0
        %4578 = vmatpush.msra.mxu0 %v4357
        %4579 = vmatpush.msra.mxu0 %v4198
        %4580 = vmatmul.f32.gmra.mxu0 %v4327
        %v4581 = vpop.f32.mrf.mxu0
        %v4582 = vadd.f32 0.0, %v4581
        %4583 = vmatmul.f32.gmra.mxu0 %v4330
        %v4584 = vpop.f32.mrf.mxu0
        %v4585 = vadd.f32 0.0, %v4584
        %4586 = vdwg.mxu0
        %4587 = vmatpush.msra.mxu0 0.0
        %4588 = vmatpush.msra.mxu0 0.0
        %4589 = vmatpush.msra.mxu0 0.0
        %4590 = vmatpush.msra.mxu0 0.0
        %4591 = vmatpush.msra.mxu0 0.0
        %4592 = vmatpush.msra.mxu0 0.0
        %4593 = vmatpush.msra.mxu0 0.0
        %4594 = vmatpush.msra.mxu0 0.0
        %4595 = vmatpush.msra.mxu0 0.0
        %4596 = vmatpush.msra.mxu0 0.0
        %4597 = vmatpush.msra.mxu0 0.0
        %4598 = vmatpush.msra.mxu0 0.0
        %4599 = vmatpush.msra.mxu0 0.0
        %4600 = vmatpush.msra.mxu0 0.0
        %4601 = vmatpush.msra.mxu0 %v4360
        %4602 = vmatpush.msra.mxu0 %v4200
        %4603 = vmatmul.f32.gmra.mxu0 %v4327
        %v4604 = vpop.f32.mrf.mxu0
        %v4605 = vadd.f32 0.0, %v4604
        %4606 = vmatmul.f32.gmra.mxu0 %v4330
        %v4607 = vpop.f32.mrf.mxu0
        %v4608 = vadd.f32 0.0, %v4607
        %4609 = vdwg.mxu0
        %4610 = vmatpush.msra.mxu0 0.0
        %4611 = vmatpush.msra.mxu0 0.0
        %4612 = vmatpush.msra.mxu0 0.0
        %4613 = vmatpush.msra.mxu0 0.0
        %4614 = vmatpush.msra.mxu0 0.0
        %4615 = vmatpush.msra.mxu0 0.0
        %4616 = vmatpush.msra.mxu0 0.0
        %4617 = vmatpush.msra.mxu0 0.0
        %4618 = vmatpush.msra.mxu0 0.0
        %4619 = vmatpush.msra.mxu0 0.0
        %4620 = vmatpush.msra.mxu0 0.0
        %4621 = vmatpush.msra.mxu0 0.0
        %4622 = vmatpush.msra.mxu0 0.0
        %4623 = vmatpush.msra.mxu0 0.0
        %4624 = vmatpush.msra.mxu0 %v4363
        %4625 = vmatpush.msra.mxu0 %v4202
        %4626 = vmatmul.f32.gmra.mxu0 %v4327
        %v4627 = vpop.f32.mrf.mxu0
        %v4628 = vadd.f32 0.0, %v4627
        %4629 = vmatmul.f32.gmra.mxu0 %v4330
        %v4630 = vpop.f32.mrf.mxu0
        %v4631 = vadd.f32 0.0, %v4630
        %4632 = vdwg.mxu0
        %4633 = vmatpush.msra.mxu0 0.0
        %4634 = vmatpush.msra.mxu0 0.0
        %4635 = vmatpush.msra.mxu0 0.0
        %4636 = vmatpush.msra.mxu0 0.0
        %4637 = vmatpush.msra.mxu0 0.0
        %4638 = vmatpush.msra.mxu0 0.0
        %4639 = vmatpush.msra.mxu0 0.0
        %4640 = vmatpush.msra.mxu0 0.0
        %4641 = vmatpush.msra.mxu0 0.0
        %4642 = vmatpush.msra.mxu0 0.0
        %4643 = vmatpush.msra.mxu0 0.0
        %4644 = vmatpush.msra.mxu0 0.0
        %4645 = vmatpush.msra.mxu0 0.0
        %4646 = vmatpush.msra.mxu0 0.0
        %4647 = vmatpush.msra.mxu0 %v4366
        %4648 = vmatpush.msra.mxu0 %v4204
        %4649 = vmatmul.f32.gmra.mxu0 %v4327
        %v4650 = vpop.f32.mrf.mxu0
        %v4651 = vadd.f32 0.0, %v4650
        %4652 = vmatmul.f32.gmra.mxu0 %v4330
        %v4653 = vpop.f32.mrf.mxu0
        %v4654 = vadd.f32 0.0, %v4653
        %4655 = vdwg.mxu0
        %4656 = vmatpush.msra.mxu0 0.0
        %4657 = vmatpush.msra.mxu0 0.0
        %4658 = vmatpush.msra.mxu0 0.0
        %4659 = vmatpush.msra.mxu0 0.0
        %4660 = vmatpush.msra.mxu0 0.0
        %4661 = vmatpush.msra.mxu0 0.0
        %4662 = vmatpush.msra.mxu0 0.0
        %4663 = vmatpush.msra.mxu0 0.0
        %4664 = vmatpush.msra.mxu0 0.0
        %4665 = vmatpush.msra.mxu0 0.0
        %4666 = vmatpush.msra.mxu0 0.0
        %4667 = vmatpush.msra.mxu0 0.0
        %4668 = vmatpush.msra.mxu0 0.0
        %4669 = vmatpush.msra.mxu0 0.0
        %4670 = vmatpush.msra.mxu0 %v4369
        %4671 = vmatpush.msra.mxu0 %v4206
        %4672 = vmatmul.f32.gmra.mxu0 %v4327
        %v4673 = vpop.f32.mrf.mxu0
        %v4674 = vadd.f32 0.0, %v4673
        %4675 = vmatmul.f32.gmra.mxu0 %v4330
        %v4676 = vpop.f32.mrf.mxu0
        %v4677 = vadd.f32 0.0, %v4676
        %4678 = vdwg.mxu0
        %4679 = vmatpush.msra.mxu0 0.0
        %4680 = vmatpush.msra.mxu0 0.0
        %4681 = vmatpush.msra.mxu0 0.0
        %4682 = vmatpush.msra.mxu0 0.0
        %4683 = vmatpush.msra.mxu0 0.0
        %4684 = vmatpush.msra.mxu0 0.0
        %4685 = vmatpush.msra.mxu0 0.0
        %4686 = vmatpush.msra.mxu0 0.0
        %4687 = vmatpush.msra.mxu0 0.0
        %4688 = vmatpush.msra.mxu0 0.0
        %4689 = vmatpush.msra.mxu0 0.0
        %4690 = vmatpush.msra.mxu0 0.0
        %4691 = vmatpush.msra.mxu0 0.0
        %4692 = vmatpush.msra.mxu0 0.0
        %4693 = vmatpush.msra.mxu0 %v4372
        %4694 = vmatpush.msra.mxu0 %v4208
        %4695 = vmatmul.f32.gmra.mxu0 %v4327
        %v4696 = vpop.f32.mrf.mxu0
        %v4697 = vadd.f32 0.0, %v4696
        %4698 = vmatmul.f32.gmra.mxu0 %v4330
        %v4699 = vpop.f32.mrf.mxu0
        %v4700 = vadd.f32 0.0, %v4699
        %4701 = vdwg.mxu0
        %4702 = vmatpush.msra.mxu0 0.0
        %4703 = vmatpush.msra.mxu0 0.0
        %4704 = vmatpush.msra.mxu0 0.0
        %4705 = vmatpush.msra.mxu0 0.0
        %4706 = vmatpush.msra.mxu0 0.0
        %4707 = vmatpush.msra.mxu0 0.0
        %4708 = vmatpush.msra.mxu0 0.0
        %4709 = vmatpush.msra.mxu0 0.0
        %4710 = vmatpush.msra.mxu0 0.0
        %4711 = vmatpush.msra.mxu0 0.0
        %4712 = vmatpush.msra.mxu0 0.0
        %4713 = vmatpush.msra.mxu0 0.0
        %4714 = vmatpush.msra.mxu0 0.0
        %4715 = vmatpush.msra.mxu0 0.0
        %4716 = vmatpush.msra.mxu0 %v4375
        %4717 = vmatpush.msra.mxu0 %v4210
        %4718 = vmatmul.f32.gmra.mxu0 %v4327
        %v4719 = vpop.f32.mrf.mxu0
        %v4720 = vadd.f32 0.0, %v4719
        %4721 = vmatmul.f32.gmra.mxu0 %v4330
        %v4722 = vpop.f32.mrf.mxu0
        %v4723 = vadd.f32 0.0, %v4722
        %4724 = vdwg.mxu0
        %4725 = vmatpush.msra.mxu0 0.0
        %4726 = vmatpush.msra.mxu0 0.0
        %4727 = vmatpush.msra.mxu0 0.0
        %4728 = vmatpush.msra.mxu0 0.0
        %4729 = vmatpush.msra.mxu0 0.0
        %4730 = vmatpush.msra.mxu0 0.0
        %4731 = vmatpush.msra.mxu0 0.0
        %4732 = vmatpush.msra.mxu0 0.0
        %4733 = vmatpush.msra.mxu0 0.0
        %4734 = vmatpush.msra.mxu0 0.0
        %4735 = vmatpush.msra.mxu0 0.0
        %4736 = vmatpush.msra.mxu0 0.0
        %4737 = vmatpush.msra.mxu0 0.0
        %4738 = vmatpush.msra.mxu0 0.0
        %4739 = vmatpush.msra.mxu0 %v4378
        %4740 = vmatpush.msra.mxu0 %v4212
        %4741 = vmatmul.f32.gmra.mxu0 %v4327
        %v4742 = vpop.f32.mrf.mxu0
        %v4743 = vadd.f32 0.0, %v4742
        %4744 = vmatmul.f32.gmra.mxu0 %v4330
        %v4745 = vpop.f32.mrf.mxu0
        %v4746 = vadd.f32 0.0, %v4745
        %4747 = vdwg.mxu0
        %v4748 = vadd.f32 %v3525, %v4398
        %v4749 = vadd.f32 %v3526, %v4421
        %v4750 = vadd.f32 %v3527, %v4444
        %v4751 = vadd.f32 %v3528, %v4467
        %v4752 = vadd.f32 %v3529, %v4490
        %v4753 = vadd.f32 %v3530, %v4513
        %v4754 = vadd.f32 %v3531, %v4536
        %v4755 = vadd.f32 %v3532, %v4559
        %v4756 = vadd.f32 %v3533, %v4582
        %v4757 = vadd.f32 %v3534, %v4605
        %v4758 = vadd.f32 %v3535, %v4628
        %v4759 = vadd.f32 %v3536, %v4651
        %v4760 = vadd.f32 %v3537, %v4674
        %v4761 = vadd.f32 %v3538, %v4697
        %v4762 = vadd.f32 %v3539, %v4720
        %v4763 = vadd.f32 %v3540, %v4743
        %v4764 = vadd.f32 %v3541, %v4401
        %v4765 = vadd.f32 %v3542, %v4424
        %v4766 = vadd.f32 %v3543, %v4447
        %v4767 = vadd.f32 %v3544, %v4470
        %v4768 = vadd.f32 %v3545, %v4493
        %v4769 = vadd.f32 %v3546, %v4516
        %v4770 = vadd.f32 %v3547, %v4539
        %v4771 = vadd.f32 %v3548, %v4562
        %v4772 = vadd.f32 %v3549, %v4585
        %v4773 = vadd.f32 %v3550, %v4608
        %v4774 = vadd.f32 %v3551, %v4631
        %v4775 = vadd.f32 %v3552, %v4654
        %v4776 = vadd.f32 %v3553, %v4677
        %v4777 = vadd.f32 %v3554, %v4700
        %v4778 = vadd.f32 %v3555, %v4723
        %v4779 = vadd.f32 %v3556, %v4746
        %v4780 = vld [vmem:[%s169] sm:$0xf0]
        %v4781 = vld [vmem:[%s169 + $0x10] sm:$0xff]
        %v4782 = vld [vmem:[%s169 + $0x20] sm:$0xf]
        %v4783 = vld [vmem:[%s169 + $0x8] sm:$0xf0]
        %v4784 = vld [vmem:[%s169 + $0x18] sm:$0xff]
        %v4785 = vld [vmem:[%s169 + $0x28] sm:$0xf]
        %v4786 = vld [vmem:[%s175] sm:$0xf0]
        %v4787 = vld [vmem:[%s175 + $0x10] sm:$0xff]
        %v4788 = vld [vmem:[%s175 + $0x20] sm:$0xf]
        %v4789 = vld [vmem:[%s175 + $0x8] sm:$0xf0]
        %v4790 = vld [vmem:[%s175 + $0x18] sm:$0xff]
        %v4791 = vld [vmem:[%s175 + $0x28] sm:$0xf]
        %v4792 = vld [vmem:[%s180] sm:$0xf0]
        %v4793 = vld [vmem:[%s180 + $0x10] sm:$0xff]
        %v4794 = vld [vmem:[%s180 + $0x20] sm:$0xf]
        %v4795 = vld [vmem:[%s180 + $0x8] sm:$0xf0]
        %v4796 = vld [vmem:[%s180 + $0x18] sm:$0xff]
        %v4797 = vld [vmem:[%s180 + $0x28] sm:$0xf]
        %4804 = vrot.lane.b32.xlu0 %v4780, 127
        %v4805 = vpop.permute.xlu0 %4804
        %4806 = vrot.lane.b32.xlu0 %v4783, 127
        %v4807 = vpop.permute.xlu0 %4806
        %4808 = vrot.lane.b32.xlu0 %v4781, 127
        %v4809 = vpop.permute.xlu0 %4808
        %4810 = vrot.lane.b32.xlu0 %v4784, 127
        %v4811 = vpop.permute.xlu0 %4810
        %4812 = vrot.lane.b32.xlu0 %v4782, 127
        %v4813 = vpop.permute.xlu0 %4812
        %4814 = vrot.lane.b32.xlu0 %v4785, 127
        %v4815 = vpop.permute.xlu0 %4814
        %v4816 = vsel %vm197, %v4805, %v4807
        %v4817 = vsel %vm197, %v4809, %v4811
        %v4818 = vsel %vm197, %v4813, %v4815
        %4819 = vrot.lane.b32.xlu0 %v4780, 126
        %v4820 = vpop.permute.xlu0 %4819
        %4821 = vrot.lane.b32.xlu0 %v4783, 126
        %v4822 = vpop.permute.xlu0 %4821
        %4823 = vrot.lane.b32.xlu0 %v4781, 126
        %v4824 = vpop.permute.xlu0 %4823
        %4825 = vrot.lane.b32.xlu0 %v4784, 126
        %v4826 = vpop.permute.xlu0 %4825
        %4827 = vrot.lane.b32.xlu0 %v4782, 126
        %v4828 = vpop.permute.xlu0 %4827
        %4829 = vrot.lane.b32.xlu0 %v4785, 126
        %v4830 = vpop.permute.xlu0 %4829
        %v4831 = vsel %vm210, %v4820, %v4822
        %v4832 = vsel %vm210, %v4824, %v4826
        %v4833 = vsel %vm210, %v4828, %v4830
        %4834 = vrot.lane.b32.xlu0 %v4780, 125
        %v4835 = vpop.permute.xlu0 %4834
        %4836 = vrot.lane.b32.xlu0 %v4783, 125
        %v4837 = vpop.permute.xlu0 %4836
        %4838 = vrot.lane.b32.xlu0 %v4781, 125
        %v4839 = vpop.permute.xlu0 %4838
        %4840 = vrot.lane.b32.xlu0 %v4784, 125
        %v4841 = vpop.permute.xlu0 %4840
        %4842 = vrot.lane.b32.xlu0 %v4782, 125
        %v4843 = vpop.permute.xlu0 %4842
        %4844 = vrot.lane.b32.xlu0 %v4785, 125
        %v4845 = vpop.permute.xlu0 %4844
        %v4846 = vsel %vm223, %v4835, %v4837
        %v4847 = vsel %vm223, %v4839, %v4841
        %v4848 = vsel %vm223, %v4843, %v4845
        %4849 = vrot.lane.b32.xlu0 %v4780, 124
        %v4850 = vpop.permute.xlu0 %4849
        %4851 = vrot.lane.b32.xlu0 %v4783, 124
        %v4852 = vpop.permute.xlu0 %4851
        %4853 = vrot.lane.b32.xlu0 %v4781, 124
        %v4854 = vpop.permute.xlu0 %4853
        %4855 = vrot.lane.b32.xlu0 %v4784, 124
        %v4856 = vpop.permute.xlu0 %4855
        %4857 = vrot.lane.b32.xlu0 %v4782, 124
        %v4858 = vpop.permute.xlu0 %4857
        %4859 = vrot.lane.b32.xlu0 %v4785, 124
        %v4860 = vpop.permute.xlu0 %4859
        %v4861 = vsel %vm236, %v4850, %v4852
        %v4862 = vsel %vm236, %v4854, %v4856
        %v4863 = vsel %vm236, %v4858, %v4860
        %4870 = vrot.lane.b32.xlu0 %v4786, 127
        %v4871 = vpop.permute.xlu0 %4870
        %4872 = vrot.lane.b32.xlu0 %v4789, 127
        %v4873 = vpop.permute.xlu0 %4872
        %4874 = vrot.lane.b32.xlu0 %v4787, 127
        %v4875 = vpop.permute.xlu0 %4874
        %4876 = vrot.lane.b32.xlu0 %v4790, 127
        %v4877 = vpop.permute.xlu0 %4876
        %4878 = vrot.lane.b32.xlu0 %v4788, 127
        %v4879 = vpop.permute.xlu0 %4878
        %4880 = vrot.lane.b32.xlu0 %v4791, 127
        %v4881 = vpop.permute.xlu0 %4880
        %v4882 = vsel %vm197, %v4871, %v4873
        %v4883 = vsel %vm197, %v4875, %v4877
        %v4884 = vsel %vm197, %v4879, %v4881
        %4885 = vrot.lane.b32.xlu0 %v4786, 126
        %v4886 = vpop.permute.xlu0 %4885
        %4887 = vrot.lane.b32.xlu0 %v4789, 126
        %v4888 = vpop.permute.xlu0 %4887
        %4889 = vrot.lane.b32.xlu0 %v4787, 126
        %v4890 = vpop.permute.xlu0 %4889
        %4891 = vrot.lane.b32.xlu0 %v4790, 126
        %v4892 = vpop.permute.xlu0 %4891
        %4893 = vrot.lane.b32.xlu0 %v4788, 126
        %v4894 = vpop.permute.xlu0 %4893
        %4895 = vrot.lane.b32.xlu0 %v4791, 126
        %v4896 = vpop.permute.xlu0 %4895
        %v4897 = vsel %vm210, %v4886, %v4888
        %v4898 = vsel %vm210, %v4890, %v4892
        %v4899 = vsel %vm210, %v4894, %v4896
        %4900 = vrot.lane.b32.xlu0 %v4786, 125
        %v4901 = vpop.permute.xlu0 %4900
        %4902 = vrot.lane.b32.xlu0 %v4789, 125
        %v4903 = vpop.permute.xlu0 %4902
        %4904 = vrot.lane.b32.xlu0 %v4787, 125
        %v4905 = vpop.permute.xlu0 %4904
        %4906 = vrot.lane.b32.xlu0 %v4790, 125
        %v4907 = vpop.permute.xlu0 %4906
        %4908 = vrot.lane.b32.xlu0 %v4788, 125
        %v4909 = vpop.permute.xlu0 %4908
        %4910 = vrot.lane.b32.xlu0 %v4791, 125
        %v4911 = vpop.permute.xlu0 %4910
        %v4912 = vsel %vm223, %v4901, %v4903
        %v4913 = vsel %vm223, %v4905, %v4907
        %v4914 = vsel %vm223, %v4909, %v4911
        %4915 = vrot.lane.b32.xlu0 %v4786, 124
        %v4916 = vpop.permute.xlu0 %4915
        %4917 = vrot.lane.b32.xlu0 %v4789, 124
        %v4918 = vpop.permute.xlu0 %4917
        %4919 = vrot.lane.b32.xlu0 %v4787, 124
        %v4920 = vpop.permute.xlu0 %4919
        %4921 = vrot.lane.b32.xlu0 %v4790, 124
        %v4922 = vpop.permute.xlu0 %4921
        %4923 = vrot.lane.b32.xlu0 %v4788, 124
        %v4924 = vpop.permute.xlu0 %4923
        %4925 = vrot.lane.b32.xlu0 %v4791, 124
        %v4926 = vpop.permute.xlu0 %4925
        %v4927 = vsel %vm236, %v4916, %v4918
        %v4928 = vsel %vm236, %v4920, %v4922
        %v4929 = vsel %vm236, %v4924, %v4926
        %4936 = vrot.lane.b32.xlu0 %v4792, 127
        %v4937 = vpop.permute.xlu0 %4936
        %4938 = vrot.lane.b32.xlu0 %v4795, 127
        %v4939 = vpop.permute.xlu0 %4938
        %4940 = vrot.lane.b32.xlu0 %v4793, 127
        %v4941 = vpop.permute.xlu0 %4940
        %4942 = vrot.lane.b32.xlu0 %v4796, 127
        %v4943 = vpop.permute.xlu0 %4942
        %4944 = vrot.lane.b32.xlu0 %v4794, 127
        %v4945 = vpop.permute.xlu0 %4944
        %4946 = vrot.lane.b32.xlu0 %v4797, 127
        %v4947 = vpop.permute.xlu0 %4946
        %v4948 = vsel %vm197, %v4937, %v4939
        %v4949 = vsel %vm197, %v4941, %v4943
        %v4950 = vsel %vm197, %v4945, %v4947
        %4951 = vrot.lane.b32.xlu0 %v4792, 126
        %v4952 = vpop.permute.xlu0 %4951
        %4953 = vrot.lane.b32.xlu0 %v4795, 126
        %v4954 = vpop.permute.xlu0 %4953
        %4955 = vrot.lane.b32.xlu0 %v4793, 126
        %v4956 = vpop.permute.xlu0 %4955
        %4957 = vrot.lane.b32.xlu0 %v4796, 126
        %v4958 = vpop.permute.xlu0 %4957
        %4959 = vrot.lane.b32.xlu0 %v4794, 126
        %v4960 = vpop.permute.xlu0 %4959
        %4961 = vrot.lane.b32.xlu0 %v4797, 126
        %v4962 = vpop.permute.xlu0 %4961
        %v4963 = vsel %vm210, %v4952, %v4954
        %v4964 = vsel %vm210, %v4956, %v4958
        %v4965 = vsel %vm210, %v4960, %v4962
        %4966 = vrot.lane.b32.xlu0 %v4792, 125
        %v4967 = vpop.permute.xlu0 %4966
        %4968 = vrot.lane.b32.xlu0 %v4795, 125
        %v4969 = vpop.permute.xlu0 %4968
        %4970 = vrot.lane.b32.xlu0 %v4793, 125
        %v4971 = vpop.permute.xlu0 %4970
        %4972 = vrot.lane.b32.xlu0 %v4796, 125
        %v4973 = vpop.permute.xlu0 %4972
        %4974 = vrot.lane.b32.xlu0 %v4794, 125
        %v4975 = vpop.permute.xlu0 %4974
        %4976 = vrot.lane.b32.xlu0 %v4797, 125
        %v4977 = vpop.permute.xlu0 %4976
        %v4978 = vsel %vm223, %v4967, %v4969
        %v4979 = vsel %vm223, %v4971, %v4973
        %v4980 = vsel %vm223, %v4975, %v4977
        %4981 = vrot.lane.b32.xlu0 %v4792, 124
        %v4982 = vpop.permute.xlu0 %4981
        %4983 = vrot.lane.b32.xlu0 %v4795, 124
        %v4984 = vpop.permute.xlu0 %4983
        %4985 = vrot.lane.b32.xlu0 %v4793, 124
        %v4986 = vpop.permute.xlu0 %4985
        %4987 = vrot.lane.b32.xlu0 %v4796, 124
        %v4988 = vpop.permute.xlu0 %4987
        %4989 = vrot.lane.b32.xlu0 %v4794, 124
        %v4990 = vpop.permute.xlu0 %4989
        %4991 = vrot.lane.b32.xlu0 %v4797, 124
        %v4992 = vpop.permute.xlu0 %4991
        %v4993 = vsel %vm236, %v4982, %v4984
        %v4994 = vsel %vm236, %v4986, %v4988
        %v4995 = vsel %vm236, %v4990, %v4992
        %vm4996 = vcmask 1043456
        %v4997 = vrot.slane %v4780, 4
        %v4998 = vrot.slane %v4781, 4
        %v4999 = vsel %vm4996, %v4997, %v4998
        %v5000 = vrot.slane %v4782, 4
        %v5001 = vsel %vm4996, %v4998, %v5000
        %v5002 = vrot.slane %v4816, 4
        %v5003 = vrot.slane %v4817, 4
        %v5004 = vsel %vm4996, %v5002, %v5003
        %v5005 = vrot.slane %v4818, 4
        %v5006 = vsel %vm4996, %v5003, %v5005
        %v5007 = vrot.slane %v4831, 4
        %v5008 = vrot.slane %v4832, 4
        %v5009 = vsel %vm4996, %v5007, %v5008
        %v5010 = vrot.slane %v4833, 4
        %v5011 = vsel %vm4996, %v5008, %v5010
        %v5012 = vrot.slane %v4846, 4
        %v5013 = vrot.slane %v4847, 4
        %v5014 = vsel %vm4996, %v5012, %v5013
        %v5015 = vrot.slane %v4848, 4
        %v5016 = vsel %vm4996, %v5013, %v5015
        %v5017 = vrot.slane %v4861, 4
        %v5018 = vrot.slane %v4862, 4
        %v5019 = vsel %vm4996, %v5017, %v5018
        %v5020 = vrot.slane %v4863, 4
        %v5021 = vsel %vm4996, %v5018, %v5020
        %v5022 = vrot.slane %v4786, 4
        %v5023 = vrot.slane %v4787, 4
        %v5024 = vsel %vm4996, %v5022, %v5023
        %v5025 = vrot.slane %v4788, 4
        %v5026 = vsel %vm4996, %v5023, %v5025
        %v5027 = vrot.slane %v4882, 4
        %v5028 = vrot.slane %v4883, 4
        %v5029 = vsel %vm4996, %v5027, %v5028
        %v5030 = vrot.slane %v4884, 4
        %v5031 = vsel %vm4996, %v5028, %v5030
        %v5032 = vrot.slane %v4897, 4
        %v5033 = vrot.slane %v4898, 4
        %v5034 = vsel %vm4996, %v5032, %v5033
        %v5035 = vrot.slane %v4899, 4
        %v5036 = vsel %vm4996, %v5033, %v5035
        %v5037 = vrot.slane %v4912, 4
        %v5038 = vrot.slane %v4913, 4
        %v5039 = vsel %vm4996, %v5037, %v5038
        %v5040 = vrot.slane %v4914, 4
        %v5041 = vsel %vm4996, %v5038, %v5040
        %v5042 = vrot.slane %v4927, 4
        %v5043 = vrot.slane %v4928, 4
        %v5044 = vsel %vm4996, %v5042, %v5043
        %v5045 = vrot.slane %v4929, 4
        %v5046 = vsel %vm4996, %v5043, %v5045
        %v5047 = vrot.slane %v4792, 4
        %v5048 = vrot.slane %v4793, 4
        %v5049 = vsel %vm4996, %v5047, %v5048
        %v5050 = vrot.slane %v4794, 4
        %v5051 = vsel %vm4996, %v5048, %v5050
        %v5052 = vrot.slane %v4948, 4
        %v5053 = vrot.slane %v4949, 4
        %v5054 = vsel %vm4996, %v5052, %v5053
        %v5055 = vrot.slane %v4950, 4
        %v5056 = vsel %vm4996, %v5053, %v5055
        %v5057 = vrot.slane %v4963, 4
        %v5058 = vrot.slane %v4964, 4
        %v5059 = vsel %vm4996, %v5057, %v5058
        %v5060 = vrot.slane %v4965, 4
        %v5061 = vsel %vm4996, %v5058, %v5060
        %v5062 = vrot.slane %v4978, 4
        %v5063 = vrot.slane %v4979, 4
        %v5064 = vsel %vm4996, %v5062, %v5063
        %v5065 = vrot.slane %v4980, 4
        %v5066 = vsel %vm4996, %v5063, %v5065
        %v5067 = vrot.slane %v4993, 4
        %v5068 = vrot.slane %v4994, 4
        %v5069 = vsel %vm4996, %v5067, %v5068
        %v5070 = vrot.slane %v4995, 4
        %v5071 = vsel %vm4996, %v5068, %v5070
        %v5102 = vrot.slane %v5009, 4
        %v5103 = vsel %vm346, %v5102, %v4999
        %v5104 = vrot.slane %v4999, 4
        %v5105 = vsel %vm346, %v5009, %v5104
        %v5107 = vunpack.c.l.s4 1983009808
        %v5108 = vunpack.c.0.s8 %v5107
        %v5109 = vperm.slane %v5103, %v5108
        %v5111 = vunpack.c.l.s4 1983009808
        %v5112 = vunpack.c.0.s8 %v5111
        %v5113 = vperm.slane %v5105, %v5112
        %v5114 = vrot.slane %v5014, 4
        %v5115 = vsel %vm346, %v5114, %v5004
        %v5116 = vrot.slane %v5004, 4
        %v5117 = vsel %vm346, %v5014, %v5116
        %v5119 = vunpack.c.l.s4 1983009808
        %v5120 = vunpack.c.0.s8 %v5119
        %v5121 = vperm.slane %v5115, %v5120
        %v5123 = vunpack.c.l.s4 1983009808
        %v5124 = vunpack.c.0.s8 %v5123
        %v5125 = vperm.slane %v5117, %v5124
        %v5126 = vrot.slane %v5029, 4
        %v5127 = vsel %vm346, %v5126, %v5019
        %v5128 = vrot.slane %v5019, 4
        %v5129 = vsel %vm346, %v5029, %v5128
        %v5131 = vunpack.c.l.s4 1983009808
        %v5132 = vunpack.c.0.s8 %v5131
        %v5133 = vperm.slane %v5127, %v5132
        %v5135 = vunpack.c.l.s4 1983009808
        %v5136 = vunpack.c.0.s8 %v5135
        %v5137 = vperm.slane %v5129, %v5136
        %v5138 = vrot.slane %v5034, 4
        %v5139 = vsel %vm346, %v5138, %v5024
        %v5140 = vrot.slane %v5024, 4
        %v5141 = vsel %vm346, %v5034, %v5140
        %v5143 = vunpack.c.l.s4 1983009808
        %v5144 = vunpack.c.0.s8 %v5143
        %v5145 = vperm.slane %v5139, %v5144
        %v5147 = vunpack.c.l.s4 1983009808
        %v5148 = vunpack.c.0.s8 %v5147
        %v5149 = vperm.slane %v5141, %v5148
        %v5150 = vrot.slane %v5121, 4
        %v5151 = vsel %vm346, %v5150, %v5109
        %v5152 = vrot.slane %v5109, 4
        %v5153 = vsel %vm346, %v5121, %v5152
        %v5155 = vunpack.c.l.s4 1934713408
        %v5156 = vunpack.c.0.s8 %v5155
        %v5157 = vperm.slane %v5151, %v5156
        %v5159 = vunpack.c.l.s4 1934713408
        %v5160 = vunpack.c.0.s8 %v5159
        %v5161 = vperm.slane %v5153, %v5160
        %v5162 = vrot.slane %v5125, 4
        %v5163 = vsel %vm346, %v5162, %v5113
        %v5164 = vrot.slane %v5113, 4
        %v5165 = vsel %vm346, %v5125, %v5164
        %v5167 = vunpack.c.l.s4 1934713408
        %v5168 = vunpack.c.0.s8 %v5167
        %v5169 = vperm.slane %v5163, %v5168
        %v5171 = vunpack.c.l.s4 1934713408
        %v5172 = vunpack.c.0.s8 %v5171
        %v5173 = vperm.slane %v5165, %v5172
        %v5174 = vrot.slane %v5145, 4
        %v5175 = vsel %vm346, %v5174, %v5133
        %v5176 = vrot.slane %v5133, 4
        %v5177 = vsel %vm346, %v5145, %v5176
        %v5179 = vunpack.c.l.s4 1934713408
        %v5180 = vunpack.c.0.s8 %v5179
        %v5181 = vperm.slane %v5175, %v5180
        %v5183 = vunpack.c.l.s4 1934713408
        %v5184 = vunpack.c.0.s8 %v5183
        %v5185 = vperm.slane %v5177, %v5184
        %v5186 = vrot.slane %v5149, 4
        %v5187 = vsel %vm346, %v5186, %v5137
        %v5188 = vrot.slane %v5137, 4
        %v5189 = vsel %vm346, %v5149, %v5188
        %v5191 = vunpack.c.l.s4 1934713408
        %v5192 = vunpack.c.0.s8 %v5191
        %v5193 = vperm.slane %v5187, %v5192
        %v5195 = vunpack.c.l.s4 1934713408
        %v5196 = vunpack.c.0.s8 %v5195
        %v5197 = vperm.slane %v5189, %v5196
        %v5198 = vrot.slane %v5181, 4
        %v5199 = vsel %vm346, %v5198, %v5157
        %v5200 = vrot.slane %v5157, 4
        %v5201 = vsel %vm346, %v5181, %v5200
        %v5202 = vrot.slane %v5185, 4
        %v5203 = vsel %vm346, %v5202, %v5161
        %v5204 = vrot.slane %v5161, 4
        %v5205 = vsel %vm346, %v5185, %v5204
        %v5206 = vrot.slane %v5193, 4
        %v5207 = vsel %vm346, %v5206, %v5169
        %v5208 = vrot.slane %v5169, 4
        %v5209 = vsel %vm346, %v5193, %v5208
        %v5210 = vrot.slane %v5197, 4
        %v5211 = vsel %vm346, %v5210, %v5173
        %v5212 = vrot.slane %v5173, 4
        %v5213 = vsel %vm346, %v5197, %v5212
        %v5214 = vrot.slane %v5049, 4
        %v5215 = vsel %vm346, %v5214, %v5039
        %v5216 = vrot.slane %v5039, 4
        %v5217 = vsel %vm346, %v5049, %v5216
        %v5219 = vunpack.c.l.s4 1983009808
        %v5220 = vunpack.c.0.s8 %v5219
        %v5221 = vperm.slane %v5215, %v5220
        %v5223 = vunpack.c.l.s4 1983009808
        %v5224 = vunpack.c.0.s8 %v5223
        %v5225 = vperm.slane %v5217, %v5224
        %v5226 = vrot.slane %v5054, 4
        %v5227 = vsel %vm346, %v5226, %v5044
        %v5228 = vrot.slane %v5044, 4
        %v5229 = vsel %vm346, %v5054, %v5228
        %v5231 = vunpack.c.l.s4 1983009808
        %v5232 = vunpack.c.0.s8 %v5231
        %v5233 = vperm.slane %v5227, %v5232
        %v5235 = vunpack.c.l.s4 1983009808
        %v5236 = vunpack.c.0.s8 %v5235
        %v5237 = vperm.slane %v5229, %v5236
        %v5238 = vrot.slane %v5069, 4
        %v5239 = vsel %vm346, %v5238, %v5059
        %v5240 = vrot.slane %v5059, 4
        %v5241 = vsel %vm346, %v5069, %v5240
        %v5243 = vunpack.c.l.s4 1983009808
        %v5244 = vunpack.c.0.s8 %v5243
        %v5245 = vperm.slane %v5239, %v5244
        %v5247 = vunpack.c.l.s4 1983009808
        %v5248 = vunpack.c.0.s8 %v5247
        %v5249 = vperm.slane %v5241, %v5248
        %v5250 = vrot.slane %v5064, 4
        %v5251 = vsel %vm346, 0.0, %v5250
        %v5253 = vunpack.c.l.s4 1983009808
        %v5254 = vunpack.c.0.s8 %v5253
        %v5255 = vperm.slane %v5064, %v5254
        %v5257 = vunpack.c.l.s4 1983009808
        %v5258 = vunpack.c.0.s8 %v5257
        %v5259 = vperm.slane %v5251, %v5258
        %v5260 = vrot.slane %v5233, 4
        %v5261 = vsel %vm346, %v5260, %v5221
        %v5262 = vrot.slane %v5221, 4
        %v5263 = vsel %vm346, %v5233, %v5262
        %v5265 = vunpack.c.l.s4 1934713408
        %v5266 = vunpack.c.0.s8 %v5265
        %v5267 = vperm.slane %v5261, %v5266
        %v5269 = vunpack.c.l.s4 1934713408
        %v5270 = vunpack.c.0.s8 %v5269
        %v5271 = vperm.slane %v5263, %v5270
        %v5272 = vrot.slane %v5237, 4
        %v5273 = vsel %vm346, %v5272, %v5225
        %v5274 = vrot.slane %v5225, 4
        %v5275 = vsel %vm346, %v5237, %v5274
        %v5277 = vunpack.c.l.s4 1934713408
        %v5278 = vunpack.c.0.s8 %v5277
        %v5279 = vperm.slane %v5273, %v5278
        %v5281 = vunpack.c.l.s4 1934713408
        %v5282 = vunpack.c.0.s8 %v5281
        %v5283 = vperm.slane %v5275, %v5282
        %v5284 = vrot.slane %v5255, 4
        %v5285 = vsel %vm346, %v5284, %v5245
        %v5286 = vrot.slane %v5245, 4
        %v5287 = vsel %vm346, %v5255, %v5286
        %v5289 = vunpack.c.l.s4 1934713408
        %v5290 = vunpack.c.0.s8 %v5289
        %v5291 = vperm.slane %v5285, %v5290
        %v5293 = vunpack.c.l.s4 1934713408
        %v5294 = vunpack.c.0.s8 %v5293
        %v5295 = vperm.slane %v5287, %v5294
        %v5296 = vrot.slane %v5259, 4
        %v5297 = vsel %vm346, %v5296, %v5249
        %v5298 = vrot.slane %v5249, 4
        %v5299 = vsel %vm346, %v5259, %v5298
        %v5301 = vunpack.c.l.s4 1934713408
        %v5302 = vunpack.c.0.s8 %v5301
        %v5303 = vperm.slane %v5297, %v5302
        %v5305 = vunpack.c.l.s4 1934713408
        %v5306 = vunpack.c.0.s8 %v5305
        %v5307 = vperm.slane %v5299, %v5306
        %v5308 = vrot.slane %v5291, 4
        %v5309 = vsel %vm346, %v5308, %v5267
        %v5310 = vrot.slane %v5267, 4
        %v5311 = vsel %vm346, %v5291, %v5310
        %v5312 = vrot.slane %v5295, 4
        %v5313 = vsel %vm346, %v5312, %v5271
        %v5314 = vrot.slane %v5271, 4
        %v5315 = vsel %vm346, %v5295, %v5314
        %v5316 = vrot.slane %v5303, 4
        %v5317 = vsel %vm346, %v5316, %v5279
        %v5318 = vrot.slane %v5279, 4
        %v5319 = vsel %vm346, %v5303, %v5318
        %v5320 = vrot.slane %v5307, 4
        %v5321 = vsel %vm346, %v5320, %v5283
        %v5322 = vrot.slane %v5283, 4
        %v5323 = vsel %vm346, %v5307, %v5322
        %v5324 = vrot.slane %v5011, 4
        %v5325 = vsel %vm346, %v5324, %v5001
        %v5326 = vrot.slane %v5001, 4
        %v5327 = vsel %vm346, %v5011, %v5326
        %v5329 = vunpack.c.l.s4 1983009808
        %v5330 = vunpack.c.0.s8 %v5329
        %v5331 = vperm.slane %v5325, %v5330
        %v5333 = vunpack.c.l.s4 1983009808
        %v5334 = vunpack.c.0.s8 %v5333
        %v5335 = vperm.slane %v5327, %v5334
        %v5336 = vrot.slane %v5016, 4
        %v5337 = vsel %vm346, %v5336, %v5006
        %v5338 = vrot.slane %v5006, 4
        %v5339 = vsel %vm346, %v5016, %v5338
        %v5341 = vunpack.c.l.s4 1983009808
        %v5342 = vunpack.c.0.s8 %v5341
        %v5343 = vperm.slane %v5337, %v5342
        %v5345 = vunpack.c.l.s4 1983009808
        %v5346 = vunpack.c.0.s8 %v5345
        %v5347 = vperm.slane %v5339, %v5346
        %v5348 = vrot.slane %v5031, 4
        %v5349 = vsel %vm346, %v5348, %v5021
        %v5350 = vrot.slane %v5021, 4
        %v5351 = vsel %vm346, %v5031, %v5350
        %v5353 = vunpack.c.l.s4 1983009808
        %v5354 = vunpack.c.0.s8 %v5353
        %v5355 = vperm.slane %v5349, %v5354
        %v5357 = vunpack.c.l.s4 1983009808
        %v5358 = vunpack.c.0.s8 %v5357
        %v5359 = vperm.slane %v5351, %v5358
        %v5360 = vrot.slane %v5036, 4
        %v5361 = vsel %vm346, %v5360, %v5026
        %v5362 = vrot.slane %v5026, 4
        %v5363 = vsel %vm346, %v5036, %v5362
        %v5365 = vunpack.c.l.s4 1983009808
        %v5366 = vunpack.c.0.s8 %v5365
        %v5367 = vperm.slane %v5361, %v5366
        %v5369 = vunpack.c.l.s4 1983009808
        %v5370 = vunpack.c.0.s8 %v5369
        %v5371 = vperm.slane %v5363, %v5370
        %v5372 = vrot.slane %v5343, 4
        %v5373 = vsel %vm346, %v5372, %v5331
        %v5374 = vrot.slane %v5331, 4
        %v5375 = vsel %vm346, %v5343, %v5374
        %v5377 = vunpack.c.l.s4 1934713408
        %v5378 = vunpack.c.0.s8 %v5377
        %v5379 = vperm.slane %v5373, %v5378
        %v5381 = vunpack.c.l.s4 1934713408
        %v5382 = vunpack.c.0.s8 %v5381
        %v5383 = vperm.slane %v5375, %v5382
        %v5384 = vrot.slane %v5347, 4
        %v5385 = vsel %vm346, %v5384, %v5335
        %v5386 = vrot.slane %v5335, 4
        %v5387 = vsel %vm346, %v5347, %v5386
        %v5389 = vunpack.c.l.s4 1934713408
        %v5390 = vunpack.c.0.s8 %v5389
        %v5391 = vperm.slane %v5385, %v5390
        %v5393 = vunpack.c.l.s4 1934713408
        %v5394 = vunpack.c.0.s8 %v5393
        %v5395 = vperm.slane %v5387, %v5394
        %v5396 = vrot.slane %v5367, 4
        %v5397 = vsel %vm346, %v5396, %v5355
        %v5398 = vrot.slane %v5355, 4
        %v5399 = vsel %vm346, %v5367, %v5398
        %v5401 = vunpack.c.l.s4 1934713408
        %v5402 = vunpack.c.0.s8 %v5401
        %v5403 = vperm.slane %v5397, %v5402
        %v5405 = vunpack.c.l.s4 1934713408
        %v5406 = vunpack.c.0.s8 %v5405
        %v5407 = vperm.slane %v5399, %v5406
        %v5408 = vrot.slane %v5371, 4
        %v5409 = vsel %vm346, %v5408, %v5359
        %v5410 = vrot.slane %v5359, 4
        %v5411 = vsel %vm346, %v5371, %v5410
        %v5413 = vunpack.c.l.s4 1934713408
        %v5414 = vunpack.c.0.s8 %v5413
        %v5415 = vperm.slane %v5409, %v5414
        %v5417 = vunpack.c.l.s4 1934713408
        %v5418 = vunpack.c.0.s8 %v5417
        %v5419 = vperm.slane %v5411, %v5418
        %v5420 = vrot.slane %v5403, 4
        %v5421 = vsel %vm346, %v5420, %v5379
        %v5422 = vrot.slane %v5379, 4
        %v5423 = vsel %vm346, %v5403, %v5422
        %v5424 = vrot.slane %v5407, 4
        %v5425 = vsel %vm346, %v5424, %v5383
        %v5426 = vrot.slane %v5383, 4
        %v5427 = vsel %vm346, %v5407, %v5426
        %v5428 = vrot.slane %v5415, 4
        %v5429 = vsel %vm346, %v5428, %v5391
        %v5430 = vrot.slane %v5391, 4
        %v5431 = vsel %vm346, %v5415, %v5430
        %v5432 = vrot.slane %v5419, 4
        %v5433 = vsel %vm346, %v5432, %v5395
        %v5434 = vrot.slane %v5395, 4
        %v5435 = vsel %vm346, %v5419, %v5434
        %v5436 = vrot.slane %v5051, 4
        %v5437 = vsel %vm346, %v5436, %v5041
        %v5438 = vrot.slane %v5041, 4
        %v5439 = vsel %vm346, %v5051, %v5438
        %v5441 = vunpack.c.l.s4 1983009808
        %v5442 = vunpack.c.0.s8 %v5441
        %v5443 = vperm.slane %v5437, %v5442
        %v5445 = vunpack.c.l.s4 1983009808
        %v5446 = vunpack.c.0.s8 %v5445
        %v5447 = vperm.slane %v5439, %v5446
        %v5448 = vrot.slane %v5056, 4
        %v5449 = vsel %vm346, %v5448, %v5046
        %v5450 = vrot.slane %v5046, 4
        %v5451 = vsel %vm346, %v5056, %v5450
        %v5453 = vunpack.c.l.s4 1983009808
        %v5454 = vunpack.c.0.s8 %v5453
        %v5455 = vperm.slane %v5449, %v5454
        %v5457 = vunpack.c.l.s4 1983009808
        %v5458 = vunpack.c.0.s8 %v5457
        %v5459 = vperm.slane %v5451, %v5458
        %v5460 = vrot.slane %v5071, 4
        %v5461 = vsel %vm346, %v5460, %v5061
        %v5462 = vrot.slane %v5061, 4
        %v5463 = vsel %vm346, %v5071, %v5462
        %v5465 = vunpack.c.l.s4 1983009808
        %v5466 = vunpack.c.0.s8 %v5465
        %v5467 = vperm.slane %v5461, %v5466
        %v5469 = vunpack.c.l.s4 1983009808
        %v5470 = vunpack.c.0.s8 %v5469
        %v5471 = vperm.slane %v5463, %v5470
        %v5472 = vrot.slane %v5066, 4
        %v5473 = vsel %vm346, 0.0, %v5472
        %v5475 = vunpack.c.l.s4 1983009808
        %v5476 = vunpack.c.0.s8 %v5475
        %v5477 = vperm.slane %v5066, %v5476
        %v5479 = vunpack.c.l.s4 1983009808
        %v5480 = vunpack.c.0.s8 %v5479
        %v5481 = vperm.slane %v5473, %v5480
        %v5482 = vrot.slane %v5455, 4
        %v5483 = vsel %vm346, %v5482, %v5443
        %v5484 = vrot.slane %v5443, 4
        %v5485 = vsel %vm346, %v5455, %v5484
        %v5487 = vunpack.c.l.s4 1934713408
        %v5488 = vunpack.c.0.s8 %v5487
        %v5489 = vperm.slane %v5483, %v5488
        %v5491 = vunpack.c.l.s4 1934713408
        %v5492 = vunpack.c.0.s8 %v5491
        %v5493 = vperm.slane %v5485, %v5492
        %v5494 = vrot.slane %v5459, 4
        %v5495 = vsel %vm346, %v5494, %v5447
        %v5496 = vrot.slane %v5447, 4
        %v5497 = vsel %vm346, %v5459, %v5496
        %v5499 = vunpack.c.l.s4 1934713408
        %v5500 = vunpack.c.0.s8 %v5499
        %v5501 = vperm.slane %v5495, %v5500
        %v5503 = vunpack.c.l.s4 1934713408
        %v5504 = vunpack.c.0.s8 %v5503
        %v5505 = vperm.slane %v5497, %v5504
        %v5506 = vrot.slane %v5477, 4
        %v5507 = vsel %vm346, %v5506, %v5467
        %v5508 = vrot.slane %v5467, 4
        %v5509 = vsel %vm346, %v5477, %v5508
        %v5511 = vunpack.c.l.s4 1934713408
        %v5512 = vunpack.c.0.s8 %v5511
        %v5513 = vperm.slane %v5507, %v5512
        %v5515 = vunpack.c.l.s4 1934713408
        %v5516 = vunpack.c.0.s8 %v5515
        %v5517 = vperm.slane %v5509, %v5516
        %v5518 = vrot.slane %v5481, 4
        %v5519 = vsel %vm346, %v5518, %v5471
        %v5520 = vrot.slane %v5471, 4
        %v5521 = vsel %vm346, %v5481, %v5520
        %v5523 = vunpack.c.l.s4 1934713408
        %v5524 = vunpack.c.0.s8 %v5523
        %v5525 = vperm.slane %v5519, %v5524
        %v5527 = vunpack.c.l.s4 1934713408
        %v5528 = vunpack.c.0.s8 %v5527
        %v5529 = vperm.slane %v5521, %v5528
        %v5530 = vrot.slane %v5513, 4
        %v5531 = vsel %vm346, %v5530, %v5489
        %v5532 = vrot.slane %v5489, 4
        %v5533 = vsel %vm346, %v5513, %v5532
        %v5534 = vrot.slane %v5517, 4
        %v5535 = vsel %vm346, %v5534, %v5493
        %v5536 = vrot.slane %v5493, 4
        %v5537 = vsel %vm346, %v5517, %v5536
        %v5538 = vrot.slane %v5525, 4
        %v5539 = vsel %vm346, %v5538, %v5501
        %v5540 = vrot.slane %v5501, 4
        %v5541 = vsel %vm346, %v5525, %v5540
        %v5542 = vrot.slane %v5529, 4
        %v5543 = vsel %vm346, %v5542, %v5505
        %v5544 = vrot.slane %v5505, 4
        %v5545 = vsel %vm346, %v5529, %v5544
        %s5546 = scalar_lea.vmem %s1, 64
        %v5547 = vld [vmem:[%s5546] sm:$0xff]
        %v5548 = vld [vmem:[%s5546 + $0x8] sm:$0xff]
        %v5550 = vsel %vm1489, %v5547, 0
        %v5553 = vsel %vm1489, %v5548, 0
        %v5556 = vsel %vm936, %v5309, 0
        %v5559 = vsel %vm936, %v5311, 0
        %v5562 = vsel %vm936, %v5313, 0
        %v5565 = vsel %vm936, %v5315, 0
        %v5568 = vsel %vm936, %v5317, 0
        %v5571 = vsel %vm936, %v5319, 0
        %v5574 = vsel %vm936, %v5321, 0
        %v5577 = vsel %vm936, %v5323, 0
        %v5580 = vsel %vm936, %v5531, 0
        %v5583 = vsel %vm936, %v5533, 0
        %v5586 = vsel %vm936, %v5535, 0
        %v5589 = vsel %vm936, %v5537, 0
        %v5592 = vsel %vm936, %v5539, 0
        %v5595 = vsel %vm936, %v5541, 0
        %v5598 = vsel %vm936, %v5543, 0
        %v5601 = vsel %vm936, %v5545, 0
        %5603 = vmatpush.msra.mxu0 0.0
        %5604 = vmatpush.msra.mxu0 0.0
        %5605 = vmatpush.msra.mxu0 0.0
        %5606 = vmatpush.msra.mxu0 0.0
        %5607 = vmatpush.msra.mxu0 0.0
        %5608 = vmatpush.msra.mxu0 0.0
        %5609 = vmatpush.msra.mxu0 0.0
        %5610 = vmatpush.msra.mxu0 0.0
        %5611 = vmatpush.msra.mxu0 0.0
        %5612 = vmatpush.msra.mxu0 0.0
        %5613 = vmatpush.msra.mxu0 0.0
        %5614 = vmatpush.msra.mxu0 0.0
        %5615 = vmatpush.msra.mxu0 0.0
        %5616 = vmatpush.msra.mxu0 0.0
        %5617 = vmatpush.msra.mxu0 %v5556
        %5618 = vmatpush.msra.mxu0 %v5199
        %5619 = vmatmul.f32.gmra.mxu0 %v5550
        %v5620 = vpop.f32.mrf.mxu0
        %v5621 = vadd.f32 0.0, %v5620
        %5622 = vmatmul.f32.gmra.mxu0 %v5553
        %v5623 = vpop.f32.mrf.mxu0
        %v5624 = vadd.f32 0.0, %v5623
        %5625 = vdwg.mxu0
        %5626 = vmatpush.msra.mxu0 0.0
        %5627 = vmatpush.msra.mxu0 0.0
        %5628 = vmatpush.msra.mxu0 0.0
        %5629 = vmatpush.msra.mxu0 0.0
        %5630 = vmatpush.msra.mxu0 0.0
        %5631 = vmatpush.msra.mxu0 0.0
        %5632 = vmatpush.msra.mxu0 0.0
        %5633 = vmatpush.msra.mxu0 0.0
        %5634 = vmatpush.msra.mxu0 0.0
        %5635 = vmatpush.msra.mxu0 0.0
        %5636 = vmatpush.msra.mxu0 0.0
        %5637 = vmatpush.msra.mxu0 0.0
        %5638 = vmatpush.msra.mxu0 0.0
        %5639 = vmatpush.msra.mxu0 0.0
        %5640 = vmatpush.msra.mxu0 %v5559
        %5641 = vmatpush.msra.mxu0 %v5201
        %5642 = vmatmul.f32.gmra.mxu0 %v5550
        %v5643 = vpop.f32.mrf.mxu0
        %v5644 = vadd.f32 0.0, %v5643
        %5645 = vmatmul.f32.gmra.mxu0 %v5553
        %v5646 = vpop.f32.mrf.mxu0
        %v5647 = vadd.f32 0.0, %v5646
        %5648 = vdwg.mxu0
        %5649 = vmatpush.msra.mxu0 0.0
        %5650 = vmatpush.msra.mxu0 0.0
        %5651 = vmatpush.msra.mxu0 0.0
        %5652 = vmatpush.msra.mxu0 0.0
        %5653 = vmatpush.msra.mxu0 0.0
        %5654 = vmatpush.msra.mxu0 0.0
        %5655 = vmatpush.msra.mxu0 0.0
        %5656 = vmatpush.msra.mxu0 0.0
        %5657 = vmatpush.msra.mxu0 0.0
        %5658 = vmatpush.msra.mxu0 0.0
        %5659 = vmatpush.msra.mxu0 0.0
        %5660 = vmatpush.msra.mxu0 0.0
        %5661 = vmatpush.msra.mxu0 0.0
        %5662 = vmatpush.msra.mxu0 0.0
        %5663 = vmatpush.msra.mxu0 %v5562
        %5664 = vmatpush.msra.mxu0 %v5203
        %5665 = vmatmul.f32.gmra.mxu0 %v5550
        %v5666 = vpop.f32.mrf.mxu0
        %v5667 = vadd.f32 0.0, %v5666
        %5668 = vmatmul.f32.gmra.mxu0 %v5553
        %v5669 = vpop.f32.mrf.mxu0
        %v5670 = vadd.f32 0.0, %v5669
        %5671 = vdwg.mxu0
        %5672 = vmatpush.msra.mxu0 0.0
        %5673 = vmatpush.msra.mxu0 0.0
        %5674 = vmatpush.msra.mxu0 0.0
        %5675 = vmatpush.msra.mxu0 0.0
        %5676 = vmatpush.msra.mxu0 0.0
        %5677 = vmatpush.msra.mxu0 0.0
        %5678 = vmatpush.msra.mxu0 0.0
        %5679 = vmatpush.msra.mxu0 0.0
        %5680 = vmatpush.msra.mxu0 0.0
        %5681 = vmatpush.msra.mxu0 0.0
        %5682 = vmatpush.msra.mxu0 0.0
        %5683 = vmatpush.msra.mxu0 0.0
        %5684 = vmatpush.msra.mxu0 0.0
        %5685 = vmatpush.msra.mxu0 0.0
        %5686 = vmatpush.msra.mxu0 %v5565
        %5687 = vmatpush.msra.mxu0 %v5205
        %5688 = vmatmul.f32.gmra.mxu0 %v5550
        %v5689 = vpop.f32.mrf.mxu0
        %v5690 = vadd.f32 0.0, %v5689
        %5691 = vmatmul.f32.gmra.mxu0 %v5553
        %v5692 = vpop.f32.mrf.mxu0
        %v5693 = vadd.f32 0.0, %v5692
        %5694 = vdwg.mxu0
        %5695 = vmatpush.msra.mxu0 0.0
        %5696 = vmatpush.msra.mxu0 0.0
        %5697 = vmatpush.msra.mxu0 0.0
        %5698 = vmatpush.msra.mxu0 0.0
        %5699 = vmatpush.msra.mxu0 0.0
        %5700 = vmatpush.msra.mxu0 0.0
        %5701 = vmatpush.msra.mxu0 0.0
        %5702 = vmatpush.msra.mxu0 0.0
        %5703 = vmatpush.msra.mxu0 0.0
        %5704 = vmatpush.msra.mxu0 0.0
        %5705 = vmatpush.msra.mxu0 0.0
        %5706 = vmatpush.msra.mxu0 0.0
        %5707 = vmatpush.msra.mxu0 0.0
        %5708 = vmatpush.msra.mxu0 0.0
        %5709 = vmatpush.msra.mxu0 %v5568
        %5710 = vmatpush.msra.mxu0 %v5207
        %5711 = vmatmul.f32.gmra.mxu0 %v5550
        %v5712 = vpop.f32.mrf.mxu0
        %v5713 = vadd.f32 0.0, %v5712
        %5714 = vmatmul.f32.gmra.mxu0 %v5553
        %v5715 = vpop.f32.mrf.mxu0
        %v5716 = vadd.f32 0.0, %v5715
        %5717 = vdwg.mxu0
        %5718 = vmatpush.msra.mxu0 0.0
        %5719 = vmatpush.msra.mxu0 0.0
        %5720 = vmatpush.msra.mxu0 0.0
        %5721 = vmatpush.msra.mxu0 0.0
        %5722 = vmatpush.msra.mxu0 0.0
        %5723 = vmatpush.msra.mxu0 0.0
        %5724 = vmatpush.msra.mxu0 0.0
        %5725 = vmatpush.msra.mxu0 0.0
        %5726 = vmatpush.msra.mxu0 0.0
        %5727 = vmatpush.msra.mxu0 0.0
        %5728 = vmatpush.msra.mxu0 0.0
        %5729 = vmatpush.msra.mxu0 0.0
        %5730 = vmatpush.msra.mxu0 0.0
        %5731 = vmatpush.msra.mxu0 0.0
        %5732 = vmatpush.msra.mxu0 %v5571
        %5733 = vmatpush.msra.mxu0 %v5209
        %5734 = vmatmul.f32.gmra.mxu0 %v5550
        %v5735 = vpop.f32.mrf.mxu0
        %v5736 = vadd.f32 0.0, %v5735
        %5737 = vmatmul.f32.gmra.mxu0 %v5553
        %v5738 = vpop.f32.mrf.mxu0
        %v5739 = vadd.f32 0.0, %v5738
        %5740 = vdwg.mxu0
        %5741 = vmatpush.msra.mxu0 0.0
        %5742 = vmatpush.msra.mxu0 0.0
        %5743 = vmatpush.msra.mxu0 0.0
        %5744 = vmatpush.msra.mxu0 0.0
        %5745 = vmatpush.msra.mxu0 0.0
        %5746 = vmatpush.msra.mxu0 0.0
        %5747 = vmatpush.msra.mxu0 0.0
        %5748 = vmatpush.msra.mxu0 0.0
        %5749 = vmatpush.msra.mxu0 0.0
        %5750 = vmatpush.msra.mxu0 0.0
        %5751 = vmatpush.msra.mxu0 0.0
        %5752 = vmatpush.msra.mxu0 0.0
        %5753 = vmatpush.msra.mxu0 0.0
        %5754 = vmatpush.msra.mxu0 0.0
        %5755 = vmatpush.msra.mxu0 %v5574
        %5756 = vmatpush.msra.mxu0 %v5211
        %5757 = vmatmul.f32.gmra.mxu0 %v5550
        %v5758 = vpop.f32.mrf.mxu0
        %v5759 = vadd.f32 0.0, %v5758
        %5760 = vmatmul.f32.gmra.mxu0 %v5553
        %v5761 = vpop.f32.mrf.mxu0
        %v5762 = vadd.f32 0.0, %v5761
        %5763 = vdwg.mxu0
        %5764 = vmatpush.msra.mxu0 0.0
        %5765 = vmatpush.msra.mxu0 0.0
        %5766 = vmatpush.msra.mxu0 0.0
        %5767 = vmatpush.msra.mxu0 0.0
        %5768 = vmatpush.msra.mxu0 0.0
        %5769 = vmatpush.msra.mxu0 0.0
        %5770 = vmatpush.msra.mxu0 0.0
        %5771 = vmatpush.msra.mxu0 0.0
        %5772 = vmatpush.msra.mxu0 0.0
        %5773 = vmatpush.msra.mxu0 0.0
        %5774 = vmatpush.msra.mxu0 0.0
        %5775 = vmatpush.msra.mxu0 0.0
        %5776 = vmatpush.msra.mxu0 0.0
        %5777 = vmatpush.msra.mxu0 0.0
        %5778 = vmatpush.msra.mxu0 %v5577
        %5779 = vmatpush.msra.mxu0 %v5213
        %5780 = vmatmul.f32.gmra.mxu0 %v5550
        %v5781 = vpop.f32.mrf.mxu0
        %v5782 = vadd.f32 0.0, %v5781
        %5783 = vmatmul.f32.gmra.mxu0 %v5553
        %v5784 = vpop.f32.mrf.mxu0
        %v5785 = vadd.f32 0.0, %v5784
        %5786 = vdwg.mxu0
        %5787 = vmatpush.msra.mxu0 0.0
        %5788 = vmatpush.msra.mxu0 0.0
        %5789 = vmatpush.msra.mxu0 0.0
        %5790 = vmatpush.msra.mxu0 0.0
        %5791 = vmatpush.msra.mxu0 0.0
        %5792 = vmatpush.msra.mxu0 0.0
        %5793 = vmatpush.msra.mxu0 0.0
        %5794 = vmatpush.msra.mxu0 0.0
        %5795 = vmatpush.msra.mxu0 0.0
        %5796 = vmatpush.msra.mxu0 0.0
        %5797 = vmatpush.msra.mxu0 0.0
        %5798 = vmatpush.msra.mxu0 0.0
        %5799 = vmatpush.msra.mxu0 0.0
        %5800 = vmatpush.msra.mxu0 0.0
        %5801 = vmatpush.msra.mxu0 %v5580
        %5802 = vmatpush.msra.mxu0 %v5421
        %5803 = vmatmul.f32.gmra.mxu0 %v5550
        %v5804 = vpop.f32.mrf.mxu0
        %v5805 = vadd.f32 0.0, %v5804
        %5806 = vmatmul.f32.gmra.mxu0 %v5553
        %v5807 = vpop.f32.mrf.mxu0
        %v5808 = vadd.f32 0.0, %v5807
        %5809 = vdwg.mxu0
        %5810 = vmatpush.msra.mxu0 0.0
        %5811 = vmatpush.msra.mxu0 0.0
        %5812 = vmatpush.msra.mxu0 0.0
        %5813 = vmatpush.msra.mxu0 0.0
        %5814 = vmatpush.msra.mxu0 0.0
        %5815 = vmatpush.msra.mxu0 0.0
        %5816 = vmatpush.msra.mxu0 0.0
        %5817 = vmatpush.msra.mxu0 0.0
        %5818 = vmatpush.msra.mxu0 0.0
        %5819 = vmatpush.msra.mxu0 0.0
        %5820 = vmatpush.msra.mxu0 0.0
        %5821 = vmatpush.msra.mxu0 0.0
        %5822 = vmatpush.msra.mxu0 0.0
        %5823 = vmatpush.msra.mxu0 0.0
        %5824 = vmatpush.msra.mxu0 %v5583
        %5825 = vmatpush.msra.mxu0 %v5423
        %5826 = vmatmul.f32.gmra.mxu0 %v5550
        %v5827 = vpop.f32.mrf.mxu0
        %v5828 = vadd.f32 0.0, %v5827
        %5829 = vmatmul.f32.gmra.mxu0 %v5553
        %v5830 = vpop.f32.mrf.mxu0
        %v5831 = vadd.f32 0.0, %v5830
        %5832 = vdwg.mxu0
        %5833 = vmatpush.msra.mxu0 0.0
        %5834 = vmatpush.msra.mxu0 0.0
        %5835 = vmatpush.msra.mxu0 0.0
        %5836 = vmatpush.msra.mxu0 0.0
        %5837 = vmatpush.msra.mxu0 0.0
        %5838 = vmatpush.msra.mxu0 0.0
        %5839 = vmatpush.msra.mxu0 0.0
        %5840 = vmatpush.msra.mxu0 0.0
        %5841 = vmatpush.msra.mxu0 0.0
        %5842 = vmatpush.msra.mxu0 0.0
        %5843 = vmatpush.msra.mxu0 0.0
        %5844 = vmatpush.msra.mxu0 0.0
        %5845 = vmatpush.msra.mxu0 0.0
        %5846 = vmatpush.msra.mxu0 0.0
        %5847 = vmatpush.msra.mxu0 %v5586
        %5848 = vmatpush.msra.mxu0 %v5425
        %5849 = vmatmul.f32.gmra.mxu0 %v5550
        %v5850 = vpop.f32.mrf.mxu0
        %v5851 = vadd.f32 0.0, %v5850
        %5852 = vmatmul.f32.gmra.mxu0 %v5553
        %v5853 = vpop.f32.mrf.mxu0
        %v5854 = vadd.f32 0.0, %v5853
        %5855 = vdwg.mxu0
        %5856 = vmatpush.msra.mxu0 0.0
        %5857 = vmatpush.msra.mxu0 0.0
        %5858 = vmatpush.msra.mxu0 0.0
        %5859 = vmatpush.msra.mxu0 0.0
        %5860 = vmatpush.msra.mxu0 0.0
        %5861 = vmatpush.msra.mxu0 0.0
        %5862 = vmatpush.msra.mxu0 0.0
        %5863 = vmatpush.msra.mxu0 0.0
        %5864 = vmatpush.msra.mxu0 0.0
        %5865 = vmatpush.msra.mxu0 0.0
        %5866 = vmatpush.msra.mxu0 0.0
        %5867 = vmatpush.msra.mxu0 0.0
        %5868 = vmatpush.msra.mxu0 0.0
        %5869 = vmatpush.msra.mxu0 0.0
        %5870 = vmatpush.msra.mxu0 %v5589
        %5871 = vmatpush.msra.mxu0 %v5427
        %5872 = vmatmul.f32.gmra.mxu0 %v5550
        %v5873 = vpop.f32.mrf.mxu0
        %v5874 = vadd.f32 0.0, %v5873
        %5875 = vmatmul.f32.gmra.mxu0 %v5553
        %v5876 = vpop.f32.mrf.mxu0
        %v5877 = vadd.f32 0.0, %v5876
        %5878 = vdwg.mxu0
        %5879 = vmatpush.msra.mxu0 0.0
        %5880 = vmatpush.msra.mxu0 0.0
        %5881 = vmatpush.msra.mxu0 0.0
        %5882 = vmatpush.msra.mxu0 0.0
        %5883 = vmatpush.msra.mxu0 0.0
        %5884 = vmatpush.msra.mxu0 0.0
        %5885 = vmatpush.msra.mxu0 0.0
        %5886 = vmatpush.msra.mxu0 0.0
        %5887 = vmatpush.msra.mxu0 0.0
        %5888 = vmatpush.msra.mxu0 0.0
        %5889 = vmatpush.msra.mxu0 0.0
        %5890 = vmatpush.msra.mxu0 0.0
        %5891 = vmatpush.msra.mxu0 0.0
        %5892 = vmatpush.msra.mxu0 0.0
        %5893 = vmatpush.msra.mxu0 %v5592
        %5894 = vmatpush.msra.mxu0 %v5429
        %5895 = vmatmul.f32.gmra.mxu0 %v5550
        %v5896 = vpop.f32.mrf.mxu0
        %v5897 = vadd.f32 0.0, %v5896
        %5898 = vmatmul.f32.gmra.mxu0 %v5553
        %v5899 = vpop.f32.mrf.mxu0
        %v5900 = vadd.f32 0.0, %v5899
        %5901 = vdwg.mxu0
        %5902 = vmatpush.msra.mxu0 0.0
        %5903 = vmatpush.msra.mxu0 0.0
        %5904 = vmatpush.msra.mxu0 0.0
        %5905 = vmatpush.msra.mxu0 0.0
        %5906 = vmatpush.msra.mxu0 0.0
        %5907 = vmatpush.msra.mxu0 0.0
        %5908 = vmatpush.msra.mxu0 0.0
        %5909 = vmatpush.msra.mxu0 0.0
        %5910 = vmatpush.msra.mxu0 0.0
        %5911 = vmatpush.msra.mxu0 0.0
        %5912 = vmatpush.msra.mxu0 0.0
        %5913 = vmatpush.msra.mxu0 0.0
        %5914 = vmatpush.msra.mxu0 0.0
        %5915 = vmatpush.msra.mxu0 0.0
        %5916 = vmatpush.msra.mxu0 %v5595
        %5917 = vmatpush.msra.mxu0 %v5431
        %5918 = vmatmul.f32.gmra.mxu0 %v5550
        %v5919 = vpop.f32.mrf.mxu0
        %v5920 = vadd.f32 0.0, %v5919
        %5921 = vmatmul.f32.gmra.mxu0 %v5553
        %v5922 = vpop.f32.mrf.mxu0
        %v5923 = vadd.f32 0.0, %v5922
        %5924 = vdwg.mxu0
        %5925 = vmatpush.msra.mxu0 0.0
        %5926 = vmatpush.msra.mxu0 0.0
        %5927 = vmatpush.msra.mxu0 0.0
        %5928 = vmatpush.msra.mxu0 0.0
        %5929 = vmatpush.msra.mxu0 0.0
        %5930 = vmatpush.msra.mxu0 0.0
        %5931 = vmatpush.msra.mxu0 0.0
        %5932 = vmatpush.msra.mxu0 0.0
        %5933 = vmatpush.msra.mxu0 0.0
        %5934 = vmatpush.msra.mxu0 0.0
        %5935 = vmatpush.msra.mxu0 0.0
        %5936 = vmatpush.msra.mxu0 0.0
        %5937 = vmatpush.msra.mxu0 0.0
        %5938 = vmatpush.msra.mxu0 0.0
        %5939 = vmatpush.msra.mxu0 %v5598
        %5940 = vmatpush.msra.mxu0 %v5433
        %5941 = vmatmul.f32.gmra.mxu0 %v5550
        %v5942 = vpop.f32.mrf.mxu0
        %v5943 = vadd.f32 0.0, %v5942
        %5944 = vmatmul.f32.gmra.mxu0 %v5553
        %v5945 = vpop.f32.mrf.mxu0
        %v5946 = vadd.f32 0.0, %v5945
        %5947 = vdwg.mxu0
        %5948 = vmatpush.msra.mxu0 0.0
        %5949 = vmatpush.msra.mxu0 0.0
        %5950 = vmatpush.msra.mxu0 0.0
        %5951 = vmatpush.msra.mxu0 0.0
        %5952 = vmatpush.msra.mxu0 0.0
        %5953 = vmatpush.msra.mxu0 0.0
        %5954 = vmatpush.msra.mxu0 0.0
        %5955 = vmatpush.msra.mxu0 0.0
        %5956 = vmatpush.msra.mxu0 0.0
        %5957 = vmatpush.msra.mxu0 0.0
        %5958 = vmatpush.msra.mxu0 0.0
        %5959 = vmatpush.msra.mxu0 0.0
        %5960 = vmatpush.msra.mxu0 0.0
        %5961 = vmatpush.msra.mxu0 0.0
        %5962 = vmatpush.msra.mxu0 %v5601
        %5963 = vmatpush.msra.mxu0 %v5435
        %5964 = vmatmul.f32.gmra.mxu0 %v5550
        %v5965 = vpop.f32.mrf.mxu0
        %v5966 = vadd.f32 0.0, %v5965
        %5967 = vmatmul.f32.gmra.mxu0 %v5553
        %v5968 = vpop.f32.mrf.mxu0
        %v5969 = vadd.f32 0.0, %v5968
        %5970 = vdwg.mxu0
        %v5971 = vadd.f32 %v4748, %v5621
        %v5972 = vadd.f32 %v4749, %v5644
        %v5973 = vadd.f32 %v4750, %v5667
        %v5974 = vadd.f32 %v4751, %v5690
        %v5975 = vadd.f32 %v4752, %v5713
        %v5976 = vadd.f32 %v4753, %v5736
        %v5977 = vadd.f32 %v4754, %v5759
        %v5978 = vadd.f32 %v4755, %v5782
        %v5979 = vadd.f32 %v4756, %v5805
        %v5980 = vadd.f32 %v4757, %v5828
        %v5981 = vadd.f32 %v4758, %v5851
        %v5982 = vadd.f32 %v4759, %v5874
        %v5983 = vadd.f32 %v4760, %v5897
        %v5984 = vadd.f32 %v4761, %v5920
        %v5985 = vadd.f32 %v4762, %v5943
        %v5986 = vadd.f32 %v4763, %v5966
        %v5987 = vadd.f32 %v4764, %v5624
        %v5988 = vadd.f32 %v4765, %v5647
        %v5989 = vadd.f32 %v4766, %v5670
        %v5990 = vadd.f32 %v4767, %v5693
        %v5991 = vadd.f32 %v4768, %v5716
        %v5992 = vadd.f32 %v4769, %v5739
        %v5993 = vadd.f32 %v4770, %v5762
        %v5994 = vadd.f32 %v4771, %v5785
        %v5995 = vadd.f32 %v4772, %v5808
        %v5996 = vadd.f32 %v4773, %v5831
        %v5997 = vadd.f32 %v4774, %v5854
        %v5998 = vadd.f32 %v4775, %v5877
        %v5999 = vadd.f32 %v4776, %v5900
        %v6000 = vadd.f32 %v4777, %v5923
        %v6001 = vadd.f32 %v4778, %v5946
        %v6002 = vadd.f32 %v4779, %v5969
        %6003 = vst [vmem:[%s160] sm:$0xff] %v5971
        %6004 = vst [vmem:[%s160 + $0x8] sm:$0xff] %v5972
        %6005 = vst [vmem:[%s160 + $0x10] sm:$0xff] %v5973
        %6006 = vst [vmem:[%s160 + $0x18] sm:$0xff] %v5974
        %6007 = vst [vmem:[%s160 + $0x20] sm:$0xff] %v5975
        %6008 = vst [vmem:[%s160 + $0x28] sm:$0xff] %v5976
        %6009 = vst [vmem:[%s160 + $0x30] sm:$0xff] %v5977
        %6010 = vst [vmem:[%s160 + $0x38] sm:$0xff] %v5978
        %6011 = vst [vmem:[%s160 + $0x40] sm:$0xff] %v5979
        %6012 = vst [vmem:[%s160 + $0x48] sm:$0xff] %v5980
        %6013 = vst [vmem:[%s160 + $0x50] sm:$0xff] %v5981
        %6014 = vst [vmem:[%s160 + $0x58] sm:$0xff] %v5982
        %6015 = vst [vmem:[%s160 + $0x60] sm:$0xff] %v5983
        %6016 = vst [vmem:[%s160 + $0x68] sm:$0xff] %v5984
        %6017 = vst [vmem:[%s160 + $0x70] sm:$0xff] %v5985
        %6018 = vst [vmem:[%s160 + $0x78] sm:$0xff] %v5986
        %6019 = vst [vmem:[%s160 + $0x80] sm:$0xff] %v5987
        %6020 = vst [vmem:[%s160 + $0x88] sm:$0xff] %v5988
        %6021 = vst [vmem:[%s160 + $0x90] sm:$0xff] %v5989
        %6022 = vst [vmem:[%s160 + $0x98] sm:$0xff] %v5990
        %6023 = vst [vmem:[%s160 + $0xa0] sm:$0xff] %v5991
        %6024 = vst [vmem:[%s160 + $0xa8] sm:$0xff] %v5992
        %6025 = vst [vmem:[%s160 + $0xb0] sm:$0xff] %v5993
        %6026 = vst [vmem:[%s160 + $0xb8] sm:$0xff] %v5994
        %6027 = vst [vmem:[%s160 + $0xc0] sm:$0xff] %v5995
        %6028 = vst [vmem:[%s160 + $0xc8] sm:$0xff] %v5996
        %6029 = vst [vmem:[%s160 + $0xd0] sm:$0xff] %v5997
        %6030 = vst [vmem:[%s160 + $0xd8] sm:$0xff] %v5998
        %6031 = vst [vmem:[%s160 + $0xe0] sm:$0xff] %v5999
        %6032 = vst [vmem:[%s160 + $0xe8] sm:$0xff] %v6000
        %6033 = vst [vmem:[%s160 + $0xf0] sm:$0xff] %v6001
        %6034 = vst [vmem:[%s160 + $0xf8] sm:$0xff] %v6002
        %s6035 = sand.u32 %s87, 1
        %s6036 = scalar_lea.sflag [#allocation3], %s6035
        %s6037 = sand.u32 %s87, 1
        %s6038 = smul.addr %s6037, 256
        %s6039 = scalar_lea.vmem [#allocation2], %s6038
        // Predicated region
        $region29: #{tpu_custom_call.1} parent=27 // pred_check
          %p6040 = pneg %p97
        $region30: #{tpu_custom_call.1} parent=27 // pred_check_branch
          %6042 = sbr.rel (%p6040) target = $region32
        $region31: #{tpu_custom_call.1} parent=27 // pred_region
          %s6043 = smul.u32 16, %s21
          %6045 = vsyncadd %s6036, 0
          %s6046 = smul.addr %s20, 32
          %s6047 = sadd.s32 %s6043, %s6046
          %s6048 = smul.addr %s6047, 8
          %s6049 = scalar_lea.hbm %s2, %s6048
          %s6050 = sshll.u32 %s6039, 4
          %s6051 = int_to_ptr.vmem [resolvable:$true] %s6050
          %s6052 = sshll.u32 %s6049, 4
          %s6053 = int_to_ptr.hbm [resolvable:$true] %s6052
          %6058 = dma.vmem_to_hbm [thread:$0]  %s6051, 4096, %s6053, %s6036, 2048, 2048, 128
        $region32: #{tpu_custom_call.1} parent=27 // pred_fallthru
          _
      $region28: #{tpu_custom_call.1} parent=5 // pred_fallthru
        _
      %p6059 = scmp.le.s32.totalorder 2, %s11
      // Predicated region
      $region33: #{tpu_custom_call.1} parent=5 // pred_check
        %p6060 = pneg %p6059
      $region34: #{tpu_custom_call.1} parent=5 // pred_check_branch
        %6062 = sbr.rel (%p6060) target = $region36
      $region35: #{tpu_custom_call.1} parent=5 // pred_region
        %s6063 = ssub.s32 %s11, 2
        // Predicated region
        $region37: #{tpu_custom_call.1} parent=35 // pred_check
          %p6064 = pneg %p103
        $region38: #{tpu_custom_call.1} parent=35 // pred_check_branch
          %6066 = sbr.rel (%p6064) target = $region40
        $region39: #{tpu_custom_call.1} parent=35 // pred_region
          %s6067 = sand.u32 %s88, 1
          %s6068 = scalar_lea.sflag [#allocation3], %s6067
          %s6069 = sand.u32 %s88, 1
          %s6070 = smul.addr %s6069, 256
          %s6071 = scalar_lea.vmem [#allocation2], %s6070
          %6073 = dma.done %s6068, 4096
        $region40: #{tpu_custom_call.1} parent=35 // pred_fallthru
          _
      $region36: #{tpu_custom_call.1} parent=5 // pred_fallthru
        _
    $region6: #{tpu_custom_call.1} parent=1 // loop_footer
      %s15 = sadd.s32 1, %s11
    $region7: #{tpu_custom_call.1} parent=1 // loop_footer_branch
      %10 = sbr.rel target = $region3
    $region8: #{tpu_custom_call.1} parent=1 // loop_exit
      _
    %6074 = vsyncpa [#allocation3], 1
    %s6075 = scalar_lea.sflag [#allocation3], 1
    %6076 = vsyncpa %s6075, 1

</llo_original>
